<compile_context>
chip_gen: v5e
topology: v5e:2x2
jax: 0.10.0
libtpu: 0.0.40
codegen_flags: <defaults>
</compile_context>

<pallas_src>
import jax
import jax.numpy as jnp
import numpy as np
from jax.experimental import pallas as pl
from jax.experimental.pallas import tpu as pltpu

NEG_INF = -1e30  # finite stand-in for -inf; exp() of it is exactly 0.0 in f32


# ------------------------------------------- fused criss-cross attention ---

def cc_attention_kernel(gamma_ref, x_ref, wq_ref, wk_ref, wv_ref,
                        bq_ref, bk_ref, bv_ref, mask_ref, y_ref):
    """Per-image fused qkv projection + criss-cross attention + residual."""
    H, W, C = x_ref.shape
    x = x_ref[...]                                        # (H, W, C) f32
    x2 = x.reshape(H * W, C)

    # Fused 1x1-conv projections: MXU matmuls on the resident x tile.
    q = (jnp.dot(x2, wq_ref[...], preferred_element_type=jnp.float32)
         + bq_ref[...]).reshape(H, W, -1)                 # (H, W, C8)
    k = (jnp.dot(x2, wk_ref[...], preferred_element_type=jnp.float32)
         + bk_ref[...]).reshape(H, W, -1)                 # (H, W, C8)
    v = (jnp.dot(x2, wv_ref[...], preferred_element_type=jnp.float32)
         + bv_ref[...]).reshape(H, W, C)                  # (H, W, C)

    # W-major views for the column (along-H) branch: on-chip major-dim swap,
    # lane layout (minor dim) unchanged.  v is cast to bf16 first so the swap
    # moves half the bytes.
    qT = pltpu.einshape("hwc->whc", q)                    # (W, H, C8)
    kT = pltpu.einshape("hwc->whc", k)                    # (W, H, C8)
    v_b = v.astype(jnp.bfloat16)                          # (H, W, C) bf16
    vT_b = pltpu.einshape("hwc->whc", v_b)                # (W, H, C) bf16

    # Energies.  Row (along-W): eW[h,w,u] = q[h,w]·k[h,u].
    # Column (along-H), W-major: eH[w,h,s] = q[h,w]·k[s,w].
    eW = jnp.einsum('hwc,huc->hwu', q, k,
                    preferred_element_type=jnp.float32)   # (H, W, W)
    eH = jnp.einsum('whc,wsc->whs', qT, kT,
                    preferred_element_type=jnp.float32)   # (W, H, H)
    eH = eH + mask_ref[...]          # additive -inf self mask on the (h,s) diag

    # Joint softmax over the H + W scores of each pixel (h, w), unnormalized.
    m_row = jnp.max(eW, axis=-1)                          # (H, W)
    m_col = jnp.max(eH, axis=-1)                          # (W, H)
    m = jnp.maximum(m_row, m_col.T)                       # (H, W)
    pW = jnp.exp(eW - m[:, :, None])                      # (H, W, W)
    pH = jnp.exp(eH - m.T[:, :, None])                    # (W, H, H)
    denom = jnp.sum(pW, axis=-1) + jnp.sum(pH, axis=-1).T  # (H, W)

    # gamma / denom folded into a single epilogue scale (EUP reciprocal).
    scale = gamma_ref[0] * pl.reciprocal(denom, approx=True)   # (H, W)

    # Attention-weighted value sums (bf16 operands, f32 accumulation).
    outW = jnp.einsum('hwu,huc->hwc', pW.astype(jnp.bfloat16), v_b,
                      preferred_element_type=jnp.float32)       # (H, W, C)
    outH = jnp.einsum('whs,wsc->whc', pH.astype(jnp.bfloat16), vT_b,
                      preferred_element_type=jnp.float32)       # (W, H, C)
    out = outW + pltpu.einshape("whc->hwc", outH)                # (H, W, C)

    y_ref[...] = scale[:, :, None] * out + x


def cc_attention_forward_nhwc(x_nhwc, wq, bq, wk, bk, wv, bv, gamma):
    B, H, W, C = x_nhwc.shape
    C8 = wq.shape[1]

    mask = jnp.where(jnp.eye(H, dtype=bool), NEG_INF, 0.0).astype(jnp.float32)
    g = jnp.asarray(gamma, jnp.float32).reshape(1)
    bq2 = bq.reshape(1, C8)
    bk2 = bk.reshape(1, C8)
    bv2 = bv.reshape(1, C)

    flops_per_img = (2 * H * W * C * (2 * C8 + C)     # fused projections
                     + 2 * H * W * C8 * (H + W)       # energies
                     + 2 * H * W * C * (H + W))       # attention @ value
    cost = pl.CostEstimate(
        flops=B * flops_per_img,
        transcendentals=B * H * W * (H + W),
        bytes_accessed=4 * (2 * B * H * W * C + C * (2 * C8 + C) + H * H))

    def full2d(d0, d1):
        return pl.BlockSpec((d0, d1), lambda b: (0, 0))

    img = pl.BlockSpec((None, H, W, C), lambda b: (b, 0, 0, 0))

    return pl.pallas_call(
        cc_attention_kernel,
        grid=(B,),
        in_specs=[
            pl.BlockSpec(memory_space=pltpu.MemorySpace.SMEM),   # gamma scalar
            img,                                                 # x
            full2d(C, C8), full2d(C, C8), full2d(C, C),          # wq, wk, wv
            full2d(1, C8), full2d(1, C8), full2d(1, C),          # bq, bk, bv
            full2d(H, H),                                        # -inf mask bias
        ],
        out_specs=img,
        out_shape=jax.ShapeDtypeStruct((B, H, W, C), jnp.float32),
        compiler_params=pltpu.CompilerParams(
            dimension_semantics=("parallel",),
            vmem_limit_bytes=64 * 1024 * 1024),
        cost_estimate=cost,
    )(g, x_nhwc, wq, wk, wv, bq2, bk2, bv2, mask)


# ---------------------------------------------------------------- forward ---

def criss_cross_attention_forward(x, params):
    """x: [B, C, H, W] float32 (NCHW, like the PyTorch module)."""
    wq, bq, wk, bk, wv, bv, gamma = params
    x_nhwc = jnp.transpose(x, (0, 2, 3, 1))               # (B, H, W, C)
    y_nhwc = cc_attention_forward_nhwc(x_nhwc, wq, bq, wk, bk, wv, bv, gamma)
    return jnp.transpose(y_nhwc, (0, 3, 1, 2))            # back to NCHW


# -------------------------------------------------------------- reference ---

def reference_forward(x, params):
    """Pure-JAX transliteration of the PyTorch CrissCrossAttention forward."""
    wq, bq, wk, bk, wv, bv, gamma = params
    B, C, H, W = x.shape

    q = jnp.einsum('bchw,cd->bdhw', x, wq) + bq[None, :, None, None]
    k = jnp.einsum('bchw,cd->bdhw', x, wk) + bk[None, :, None, None]
    v = jnp.einsum('bchw,cd->bdhw', x, wv) + bv[None, :, None, None]

    # energy_H[b,h,w,s] = q[b,:,h,w]·k[b,:,s,w]  (with -inf where s == h)
    eH = jnp.einsum('bdhw,bdsw->bhws', q, k)
    diag = jnp.eye(H, dtype=bool)[None, :, None, :]
    eH = jnp.where(diag, -jnp.inf, eH)
    # energy_W[b,h,w,t] = q[b,:,h,w]·k[b,:,h,t]
    eW = jnp.einsum('bdhw,bdht->bhwt', q, k)

    att = jax.nn.softmax(jnp.concatenate([eH, eW], axis=-1), axis=-1)
    aH = att[..., :H]
    aW = att[..., H:]

    outH = jnp.einsum('bhws,bdsw->bdhw', aH, v)
    outW = jnp.einsum('bhwt,bdht->bdhw', aW, v)
    return gamma * (outH + outW) + x


# ------------------------------------------------------------------- main ---

if __name__ == "__main__":
    B, C, H, W = 2, 64, 16, 16      # in_dim must be >= 8 (query/key = C // 8)
    C8 = C // 8

    key = jax.random.PRNGKey(0)
    kx, kwq, kbq, kwk, kbk, kwv, kbv = jax.random.split(key, 7)

    x = jax.random.normal(kx, (B, C, H, W), dtype=jnp.float32)
    wq = 0.1 * jax.random.normal(kwq, (C, C8), dtype=jnp.float32)
    bq = 0.1 * jax.random.normal(kbq, (C8,), dtype=jnp.float32)
    wk = 0.1 * jax.random.normal(kwk, (C, C8), dtype=jnp.float32)
    bk = 0.1 * jax.random.normal(kbk, (C8,), dtype=jnp.float32)
    wv = 0.1 * jax.random.normal(kwv, (C, C), dtype=jnp.float32)
    bv = 0.1 * jax.random.normal(kbv, (C,), dtype=jnp.float32)
    # gamma is initialized to 0 in the PyTorch module; use a nonzero value so
    # the attention path is actually exercised by the numerical check.
    gamma = jnp.float32(0.7)

    params = (wq, bq, wk, bk, wv, bv, gamma)

    fwd = jax.jit(criss_cross_attention_forward)
    out = jax.block_until_ready(fwd(x, params))
    ref = jax.block_until_ready(reference_forward(x, params))

    np.testing.assert_allclose(np.asarray(out), np.asarray(ref),
                               rtol=1e-2, atol=1e-2)
    print("KERNEL_OK")
</pallas_src>

<mosaic_0001>
module attributes {stable_mosaic.version = 11 : i64} {
  func.func @cc_attention_kernel(%arg0: i32, %arg1: memref<1xf32, #tpu.memory_space<smem>>, %arg2: memref<1x16x16x64xf32, #tpu.memory_space<vmem>>, %arg3: memref<64x8xf32, #tpu.memory_space<vmem>>, %arg4: memref<64x8xf32, #tpu.memory_space<vmem>>, %arg5: memref<64x64xf32, #tpu.memory_space<vmem>>, %arg6: memref<1x8xf32, #tpu.memory_space<vmem>>, %arg7: memref<1x8xf32, #tpu.memory_space<vmem>>, %arg8: memref<1x64xf32, #tpu.memory_space<vmem>>, %arg9: memref<16x16xf32, #tpu.memory_space<vmem>>, %arg10: memref<1x16x16x64xf32, #tpu.memory_space<vmem>>) attributes {dimension_semantics = [#tpu.dimension_semantics<parallel>], iteration_bounds = array<i64: 2>, scalar_prefetch = 0 : i64, scratch_operands = 0 : i64, tpu.core_type = #tpu.core_type<tc>, window_params = [{transform_indices = @transform_0, window_bounds = array<i64: 1>}, {transform_indices = @transform_1, window_bounds = array<i64: 1, 16, 16, 64>}, {pipeline_mode = #tpu.pipeline_mode<synchronous>, transform_indices = @transform_2, window_bounds = array<i64: 64, 8>}, {pipeline_mode = #tpu.pipeline_mode<synchronous>, transform_indices = @transform_3, window_bounds = array<i64: 64, 8>}, {pipeline_mode = #tpu.pipeline_mode<synchronous>, transform_indices = @transform_4, window_bounds = array<i64: 64, 64>}, {pipeline_mode = #tpu.pipeline_mode<synchronous>, transform_indices = @transform_5, window_bounds = array<i64: 1, 8>}, {pipeline_mode = #tpu.pipeline_mode<synchronous>, transform_indices = @transform_6, window_bounds = array<i64: 1, 8>}, {pipeline_mode = #tpu.pipeline_mode<synchronous>, transform_indices = @transform_7, window_bounds = array<i64: 1, 64>}, {pipeline_mode = #tpu.pipeline_mode<synchronous>, transform_indices = @transform_8, window_bounds = array<i64: 16, 16>}, {transform_indices = @transform_9, window_bounds = array<i64: 1, 16, 16, 64>}]} {
    %c0 = arith.constant 0 : index
    %c0_0 = arith.constant 0 : index
    %c0_1 = arith.constant 0 : index
    %c0_2 = arith.constant 0 : index
    %0 = vector.load %arg2[%c0, %c0_0, %c0_1, %c0_2] : memref<1x16x16x64xf32, #tpu.memory_space<vmem>>, vector<1x16x16x64xf32>
    %1 = vector.shape_cast %0 : vector<1x16x16x64xf32> to vector<16x16x64xf32>
    %2 = vector.shape_cast %1 : vector<16x16x64xf32> to vector<256x64xf32>
    %c0_3 = arith.constant 0 : index
    %c0_4 = arith.constant 0 : index
    %3 = vector.load %arg3[%c0_3, %c0_4] : memref<64x8xf32, #tpu.memory_space<vmem>>, vector<64x8xf32>
    %cst = arith.constant dense<0.000000e+00> : vector<256x8xf32>
    %4 = tpu.matmul %2, %3, %cst {dimension_numbers = #tpu.dot_dimension_numbers<[1], [0], [0], [1], [0, 0, 1, 1], [], []>} : vector<256x64xf32>, vector<64x8xf32>, vector<256x8xf32> -> vector<256x8xf32>
    %c0_5 = arith.constant 0 : index
    %c0_6 = arith.constant 0 : index
    %5 = vector.load %arg6[%c0_5, %c0_6] : memref<1x8xf32, #tpu.memory_space<vmem>>, vector<1x8xf32>
    %6 = vector.broadcast %5 : vector<1x8xf32> to vector<256x8xf32>
    %7 = arith.addf %4, %6 : vector<256x8xf32>
    %8 = vector.shape_cast %7 : vector<256x8xf32> to vector<16x16x8xf32>
    %c0_7 = arith.constant 0 : index
    %c0_8 = arith.constant 0 : index
    %9 = vector.load %arg4[%c0_7, %c0_8] : memref<64x8xf32, #tpu.memory_space<vmem>>, vector<64x8xf32>
    %cst_9 = arith.constant dense<0.000000e+00> : vector<256x8xf32>
    %10 = tpu.matmul %2, %9, %cst_9 {dimension_numbers = #tpu.dot_dimension_numbers<[1], [0], [0], [1], [0, 0, 1, 1], [], []>} : vector<256x64xf32>, vector<64x8xf32>, vector<256x8xf32> -> vector<256x8xf32>
    %c0_10 = arith.constant 0 : index
    %c0_11 = arith.constant 0 : index
    %11 = vector.load %arg7[%c0_10, %c0_11] : memref<1x8xf32, #tpu.memory_space<vmem>>, vector<1x8xf32>
    %12 = vector.broadcast %11 : vector<1x8xf32> to vector<256x8xf32>
    %13 = arith.addf %10, %12 : vector<256x8xf32>
    %14 = vector.shape_cast %13 : vector<256x8xf32> to vector<16x16x8xf32>
    %c0_12 = arith.constant 0 : index
    %c0_13 = arith.constant 0 : index
    %15 = vector.load %arg5[%c0_12, %c0_13] : memref<64x64xf32, #tpu.memory_space<vmem>>, vector<64x64xf32>
    %cst_14 = arith.constant dense<0.000000e+00> : vector<256x64xf32>
    %16 = tpu.matmul %2, %15, %cst_14 {dimension_numbers = #tpu.dot_dimension_numbers<[1], [0], [0], [1], [0, 0, 1, 1], [], []>} : vector<256x64xf32>, vector<64x64xf32>, vector<256x64xf32> -> vector<256x64xf32>
    %c0_15 = arith.constant 0 : index
    %c0_16 = arith.constant 0 : index
    %17 = vector.load %arg8[%c0_15, %c0_16] : memref<1x64xf32, #tpu.memory_space<vmem>>, vector<1x64xf32>
    %18 = vector.broadcast %17 : vector<1x64xf32> to vector<256x64xf32>
    %19 = arith.addf %16, %18 : vector<256x64xf32>
    %20 = vector.shape_cast %19 : vector<256x64xf32> to vector<16x16x64xf32>
    %21 = tpu.transpose %8, [1, 0, 2] : vector<16x16x8xf32> -> vector<16x16x8xf32>
    %22 = tpu.transpose %14, [1, 0, 2] : vector<16x16x8xf32> -> vector<16x16x8xf32>
    %23 = arith.truncf %20 : vector<16x16x64xf32> to vector<16x16x64xbf16>
    %24 = tpu.transpose %23, [1, 0, 2] : vector<16x16x64xbf16> -> vector<16x16x64xbf16>
    "tpu.trace_start"() <{level = 10 : i32, message = "hwc,huc->hwu"}> : () -> ()
    %cst_17 = arith.constant dense<0.000000e+00> : vector<16x16x16xf32>
    %25 = tpu.matmul %8, %14, %cst_17 {dimension_numbers = #tpu.dot_dimension_numbers<[2], [2], [1], [1], [0, 0, 0, 1, 1, 1], [0], [0]>} : vector<16x16x8xf32>, vector<16x16x8xf32>, vector<16x16x16xf32> -> vector<16x16x16xf32>
    "tpu.trace_stop"() : () -> ()
    "tpu.trace_start"() <{level = 10 : i32, message = "whc,wsc->whs"}> : () -> ()
    %cst_18 = arith.constant dense<0.000000e+00> : vector<16x16x16xf32>
    %26 = tpu.matmul %21, %22, %cst_18 {dimension_numbers = #tpu.dot_dimension_numbers<[2], [2], [1], [1], [0, 0, 0, 1, 1, 1], [0], [0]>} : vector<16x16x8xf32>, vector<16x16x8xf32>, vector<16x16x16xf32> -> vector<16x16x16xf32>
    "tpu.trace_stop"() : () -> ()
    %c0_19 = arith.constant 0 : index
    %c0_20 = arith.constant 0 : index
    %27 = vector.load %arg9[%c0_19, %c0_20] : memref<16x16xf32, #tpu.memory_space<vmem>>, vector<16x16xf32>
    %28 = vector.shape_cast %27 : vector<16x16xf32> to vector<1x16x16xf32>
    %29 = vector.broadcast %28 : vector<1x16x16xf32> to vector<16x16x16xf32>
    %30 = arith.addf %26, %29 : vector<16x16x16xf32>
    %cst_21 = arith.constant dense<0xFF800000> : vector<16x16xf32>
    %31 = vector.multi_reduction <maximumf>, %25, %cst_21 [2] : vector<16x16x16xf32> to vector<16x16xf32>
    %cst_22 = arith.constant dense<0xFF800000> : vector<16x16xf32>
    %32 = vector.multi_reduction <maximumf>, %30, %cst_22 [2] : vector<16x16x16xf32> to vector<16x16xf32>
    %33 = tpu.transpose %32, [1, 0] : vector<16x16xf32> -> vector<16x16xf32>
    %34 = arith.maximumf %31, %33 : vector<16x16xf32>
    %35 = vector.shape_cast %34 : vector<16x16xf32> to vector<16x16x1xf32>
    %36 = vector.broadcast %35 : vector<16x16x1xf32> to vector<16x16x16xf32>
    %37 = arith.subf %25, %36 : vector<16x16x16xf32>
    %38 = math.exp %37 : vector<16x16x16xf32>
    %39 = tpu.transpose %34, [1, 0] : vector<16x16xf32> -> vector<16x16xf32>
    %40 = vector.shape_cast %39 : vector<16x16xf32> to vector<16x16x1xf32>
    %41 = vector.broadcast %40 : vector<16x16x1xf32> to vector<16x16x16xf32>
    %42 = arith.subf %30, %41 : vector<16x16x16xf32>
    %43 = math.exp %42 : vector<16x16x16xf32>
    %cst_23 = arith.constant dense<0.000000e+00> : vector<16x16xf32>
    %44 = vector.multi_reduction <add>, %38, %cst_23 [2] : vector<16x16x16xf32> to vector<16x16xf32>
    %cst_24 = arith.constant dense<0.000000e+00> : vector<16x16xf32>
    %45 = vector.multi_reduction <add>, %43, %cst_24 [2] : vector<16x16x16xf32> to vector<16x16xf32>
    %46 = tpu.transpose %45, [1, 0] : vector<16x16xf32> -> vector<16x16xf32>
    %47 = arith.addf %44, %46 : vector<16x16xf32>
    %c0_25 = arith.constant 0 : index
    %48 = memref.load %arg1[%c0_25] : memref<1xf32, #tpu.memory_space<smem>>
    %49 = tpu.reciprocal %47 {approx = true} : vector<16x16xf32> -> vector<16x16xf32>
    %50 = vector.broadcast %48 : f32 to vector<16x16xf32>
    %51 = arith.mulf %50, %49 : vector<16x16xf32>
    %52 = arith.truncf %38 : vector<16x16x16xf32> to vector<16x16x16xbf16>
    "tpu.trace_start"() <{level = 10 : i32, message = "hwu,huc->hwc"}> : () -> ()
    %cst_26 = arith.constant dense<0.000000e+00> : vector<16x16x64xf32>
    %53 = tpu.matmul %52, %23, %cst_26 {dimension_numbers = #tpu.dot_dimension_numbers<[2], [1], [1], [2], [0, 0, 0, 1, 1, 2], [0], [0]>} : vector<16x16x16xbf16>, vector<16x16x64xbf16>, vector<16x16x64xf32> -> vector<16x16x64xf32>
    "tpu.trace_stop"() : () -> ()
    %54 = arith.truncf %43 : vector<16x16x16xf32> to vector<16x16x16xbf16>
    "tpu.trace_start"() <{level = 10 : i32, message = "whs,wsc->whc"}> : () -> ()
    %cst_27 = arith.constant dense<0.000000e+00> : vector<16x16x64xf32>
    %55 = tpu.matmul %54, %24, %cst_27 {dimension_numbers = #tpu.dot_dimension_numbers<[2], [1], [1], [2], [0, 0, 0, 1, 1, 2], [0], [0]>} : vector<16x16x16xbf16>, vector<16x16x64xbf16>, vector<16x16x64xf32> -> vector<16x16x64xf32>
    "tpu.trace_stop"() : () -> ()
    %56 = tpu.transpose %55, [1, 0, 2] : vector<16x16x64xf32> -> vector<16x16x64xf32>
    %57 = arith.addf %53, %56 : vector<16x16x64xf32>
    %58 = vector.shape_cast %51 : vector<16x16xf32> to vector<16x16x1xf32>
    %59 = vector.broadcast %58 : vector<16x16x1xf32> to vector<16x16x64xf32>
    %60 = arith.mulf %59, %57 : vector<16x16x64xf32>
    %61 = arith.addf %60, %1 : vector<16x16x64xf32>
    %c0_28 = arith.constant 0 : index
    %c0_29 = arith.constant 0 : index
    %c0_30 = arith.constant 0 : index
    %c0_31 = arith.constant 0 : index
    %62 = vector.load %arg10[%c0_28, %c0_29, %c0_30, %c0_31] : memref<1x16x16x64xf32, #tpu.memory_space<vmem>>, vector<1x16x16x64xf32>
    %63 = vector.shape_cast %62 : vector<1x16x16x64xf32> to vector<16x16x64xf32>
    %64 = vector.shape_cast %61 : vector<16x16x64xf32> to vector<1x16x16x64xf32>
    tpu.vector_store %arg10[%c0_28, %c0_29, %c0_30, %c0_31], %64 {strides = array<i32>} : memref<1x16x16x64xf32, #tpu.memory_space<vmem>>, vector<1x16x16x64xf32>,
    return
  }
  func.func @transform_0(%arg0: i32) -> i32 {
    %c0_i32 = arith.constant 0 : i32
    %c0_i32_0 = arith.constant 0 : i32
    return %c0_i32 : i32
  }
  func.func @transform_1(%arg0: i32) -> (i32, i32, i32, i32) {
    %c0_i32 = arith.constant 0 : i32
    %c0_i32_0 = arith.constant 0 : i32
    %c0_i32_1 = arith.constant 0 : i32
    %c0_i32_2 = arith.constant 0 : i32
    return %arg0, %c0_i32, %c0_i32_0, %c0_i32_1 : i32, i32, i32, i32
  }
  func.func @transform_2(%arg0: i32) -> (i32, i32) {
    %c0_i32 = arith.constant 0 : i32
    %c0_i32_0 = arith.constant 0 : i32
    %c0_i32_1 = arith.constant 0 : i32
    return %c0_i32, %c0_i32_0 : i32, i32
  }
  func.func @transform_3(%arg0: i32) -> (i32, i32) {
    %c0_i32 = arith.constant 0 : i32
    %c0_i32_0 = arith.constant 0 : i32
    %c0_i32_1 = arith.constant 0 : i32
    return %c0_i32, %c0_i32_0 : i32, i32
  }
  func.func @transform_4(%arg0: i32) -> (i32, i32) {
    %c0_i32 = arith.constant 0 : i32
    %c0_i32_0 = arith.constant 0 : i32
    %c0_i32_1 = arith.constant 0 : i32
    return %c0_i32, %c0_i32_0 : i32, i32
  }
  func.func @transform_5(%arg0: i32) -> (i32, i32) {
    %c0_i32 = arith.constant 0 : i32
    %c0_i32_0 = arith.constant 0 : i32
    %c0_i32_1 = arith.constant 0 : i32
    return %c0_i32, %c0_i32_0 : i32, i32
  }
  func.func @transform_6(%arg0: i32) -> (i32, i32) {
    %c0_i32 = arith.constant 0 : i32
    %c0_i32_0 = arith.constant 0 : i32
    %c0_i32_1 = arith.constant 0 : i32
    return %c0_i32, %c0_i32_0 : i32, i32
  }
  func.func @transform_7(%arg0: i32) -> (i32, i32) {
    %c0_i32 = arith.constant 0 : i32
    %c0_i32_0 = arith.constant 0 : i32
    %c0_i32_1 = arith.constant 0 : i32
    return %c0_i32, %c0_i32_0 : i32, i32
  }
  func.func @transform_8(%arg0: i32) -> (i32, i32) {
    %c0_i32 = arith.constant 0 : i32
    %c0_i32_0 = arith.constant 0 : i32
    %c0_i32_1 = arith.constant 0 : i32
    return %c0_i32, %c0_i32_0 : i32, i32
  }
  func.func @transform_9(%arg0: i32) -> (i32, i32, i32, i32) {
    %c0_i32 = arith.constant 0 : i32
    %c0_i32_0 = arith.constant 0 : i32
    %c0_i32_1 = arith.constant 0 : i32
    %c0_i32_2 = arith.constant 0 : i32
    return %arg0, %c0_i32, %c0_i32_0, %c0_i32_1 : i32, i32, i32, i32
  }
}

</mosaic_0001>

<llo_original>
// kernel: criss_cross_attention_forward.1
$region0: #{criss_cross_attention_forward.1}
  #allocation0 [shape = 'u32[]', space=smem, size = 0x4, offset = 0x4, fixed_abs, tag = 'smem constant byte address 0x4 - core index']
  #allocation1 [shape = 'u32[72,128]{1,0:T(1,128)}', space=vmem, size = 0x9000, scoped, tag = 'internal scratch']
  #allocation2 [shape = 'f32[1]{0:T(128)S(6)}', space=smem, size = 0x200, scoped, tag = 'scoped memory for criss_cross_attention_forward.1']
  %s0 = inlined_call_operand.<no memory space> [shape: f32[1], index: 0, kind: input, shape index: {}]
  %s1 = inlined_call_operand.hbm [shape: f32[2,16,16,64], index: 1, kind: input, shape index: {}]
  %s2 = inlined_call_operand.vmem [shape: f32[64,8], index: 2, kind: input, shape index: {}]
  %s3 = inlined_call_operand.vmem [shape: f32[64,8], index: 3, kind: input, shape index: {}]
  %s4 = inlined_call_operand.vmem [shape: f32[64,64], index: 4, kind: input, shape index: {}]
  %s5 = inlined_call_operand.vmem [shape: f32[1,8], index: 5, kind: input, shape index: {}]
  %s6 = inlined_call_operand.vmem [shape: f32[1,8], index: 6, kind: input, shape index: {}]
  %s7 = inlined_call_operand.vmem [shape: f32[1,64], index: 7, kind: input, shape index: {}]
  %s8 = inlined_call_operand.vmem [shape: f32[16,16], index: 8, kind: input, shape index: {}]
  %s9 = inlined_call_operand.hbm [shape: f32[2,16,16,64], index: 9, kind: output, shape index: {}]
  %s10 = sld [smem:[#allocation0]]
  $region73: #{criss_cross_attention_forward.1} parent=0
    _
  %s12 = ssub.s32 1, %s10
  %s13 = scalar_select 0, %s12, %s10
  %14 = sst [smem:[#allocation2]] %s0
  $region1: #{criss_cross_attention_forward.1} parent=0
    #allocation3 [shape = 'u8[262144]{0}', space=vmem, size = 0x40000, scoped, tag = 'input window, operand 1']
    #allocation4 [shape = 's32[2]{0}', space=sflag, size = 0x8, scoped, tag = 'scoped memory for criss_cross_attention_forward.1']
    #allocation5 [shape = 's32[2]{0}', space=sflag, size = 0x8, scoped, tag = 'scoped memory for criss_cross_attention_forward.1']
    #allocation6 [shape = 'u8[262144]{0}', space=vmem, size = 0x40000, scoped, tag = 'output window, operand 0']
    %15 = vsyncpa [#allocation4], 0
    %s16 = scalar_lea.sflag [#allocation4], 1
    %17 = vsyncpa %s16, 0
    %18 = vsyncpa [#allocation5], 0
    %s19 = scalar_lea.sflag [#allocation5], 1
    %20 = vsyncpa %s19, 0
    loop: start=0, step=1, limit=4
    $region2: #{criss_cross_attention_forward.1} parent=1 // loop_pre_header
      _
    $region3: #{criss_cross_attention_forward.1} parent=1 // loop_header
      %s22 = sphi 0, %s26
      %p23 = scmp.ge.s32.totalorder %s22, 4
      %s30 = sphi 0, %s30
      %s32 = sphi 0, %s30
      %s33 = sphi 0, %s32
      %s47 = sphi 0, %s33
      %s53 = sphi 0, %s55
      %s56 = sphi 0, %s53
      %s57 = sphi 0, %s56
      %s73 = sphi 0, %s57
      %s77 = sphi 0, %s77
      %s79 = sphi 0, %s77
      %s80 = sphi 0, %s79
      %s94 = sphi 0, %s80
      %s98 = sphi 0, %s98
      %s100 = sphi 0, %s98
      %s101 = sphi 0, %s100
      %s115 = sphi 0, %s101
      %s119 = sphi 0, %s119
      %s121 = sphi 0, %s119
      %s122 = sphi 0, %s121
      %s136 = sphi 0, %s122
      %s140 = sphi 0, %s140
      %s142 = sphi 0, %s140
      %s143 = sphi 0, %s142
      %s157 = sphi 0, %s143
      %s161 = sphi 0, %s161
      %s163 = sphi 0, %s161
      %s164 = sphi 0, %s163
      %s178 = sphi 0, %s164
      %s182 = sphi 0, %s182
      %s184 = sphi 0, %s182
      %s185 = sphi 0, %s184
      %s199 = sphi 0, %s185
      %s203 = sphi 0, %s203
      %s205 = sphi 0, %s203
      %s206 = sphi 0, %s205
      %s220 = sphi 0, %s206
      %s226 = sphi 0, %s228
      %s229 = sphi 0, %s226
      %s230 = sphi 0, %s229
      %s246 = sphi 0, %s230
    $region4: #{criss_cross_attention_forward.1} parent=1 // loop_header_branch
      %25 = sbr.rel (%p23) target = $region8
    $region5: #{criss_cross_attention_forward.1} parent=1 // loop_body
      %s27 = ssub.s32 %s22, 1
      %s28 = ssub.s32 %s22, 2
      %s29 = sadd.s32 %s22, 1
      %s31 = sadd.s32 %s30, 1
      %p34 = scmp.eq.s32.totalorder %s22, 1
      %p35 = scmp.ne.s32.totalorder %s30, %s32
      %p36 = scmp.eq.s32.totalorder %s22, 0
      %p37 = por %p35, %p36
      %p38 = scmp.ne.s32.totalorder %s30, %s32
      %p39 = scmp.eq.s32.totalorder %s27, 1
      %p40 = por %p38, %p39
      %p41 = scmp.ne.s32.totalorder %s32, %s33
      %p42 = scmp.eq.s32.totalorder %s27, 0
      %p43 = por %p41, %p42
      %p44 = scmp.ne.s32.totalorder %s32, %s33
      %p45 = scmp.eq.s32.totalorder %s28, 1
      %p46 = por %p44, %p45
      %p48 = scmp.ne.s32.totalorder %s33, %s47
      %p49 = scmp.eq.s32.totalorder %s28, 0
      %p50 = por %p48, %p49
      %s51 = ssub.s32 %s22, %s29
      %p52 = scmp.eq.s32.totalorder %s51, 0
      %s54 = sadd.s32 %s53, 1
      %s55 = scalar_select %p52, %s53, %s54
      %p58 = pneg %p52
      %p59 = scmp.eq.s32.totalorder %s22, 1
      %p60 = por %p58, %p59
      %p61 = scmp.ne.s32.totalorder %s53, %s56
      %p62 = scmp.eq.s32.totalorder %s22, 0
      %p63 = por %p61, %p62
      %p64 = scmp.ne.s32.totalorder %s53, %s56
      %p65 = scmp.eq.s32.totalorder %s27, 1
      %p66 = por %p64, %p65
      %p67 = scmp.ne.s32.totalorder %s56, %s57
      %p68 = scmp.eq.s32.totalorder %s27, 0
      %p69 = por %p67, %p68
      %p70 = scmp.ne.s32.totalorder %s56, %s57
      %p71 = scmp.eq.s32.totalorder %s28, 1
      %p72 = por %p70, %p71
      %p74 = scmp.ne.s32.totalorder %s57, %s73
      %p75 = scmp.eq.s32.totalorder %s28, 0
      %p76 = por %p74, %p75
      %s78 = sadd.s32 %s77, 1
      %p81 = scmp.eq.s32.totalorder %s22, 1
      %p82 = scmp.ne.s32.totalorder %s77, %s79
      %p83 = scmp.eq.s32.totalorder %s22, 0
      %p84 = por %p82, %p83
      %p85 = scmp.ne.s32.totalorder %s77, %s79
      %p86 = scmp.eq.s32.totalorder %s27, 1
      %p87 = por %p85, %p86
      %p88 = scmp.ne.s32.totalorder %s79, %s80
      %p89 = scmp.eq.s32.totalorder %s27, 0
      %p90 = por %p88, %p89
      %p91 = scmp.ne.s32.totalorder %s79, %s80
      %p92 = scmp.eq.s32.totalorder %s28, 1
      %p93 = por %p91, %p92
      %p95 = scmp.ne.s32.totalorder %s80, %s94
      %p96 = scmp.eq.s32.totalorder %s28, 0
      %p97 = por %p95, %p96
      %s99 = sadd.s32 %s98, 1
      %p102 = scmp.eq.s32.totalorder %s22, 1
      %p103 = scmp.ne.s32.totalorder %s98, %s100
      %p104 = scmp.eq.s32.totalorder %s22, 0
      %p105 = por %p103, %p104
      %p106 = scmp.ne.s32.totalorder %s98, %s100
      %p107 = scmp.eq.s32.totalorder %s27, 1
      %p108 = por %p106, %p107
      %p109 = scmp.ne.s32.totalorder %s100, %s101
      %p110 = scmp.eq.s32.totalorder %s27, 0
      %p111 = por %p109, %p110
      %p112 = scmp.ne.s32.totalorder %s100, %s101
      %p113 = scmp.eq.s32.totalorder %s28, 1
      %p114 = por %p112, %p113
      %p116 = scmp.ne.s32.totalorder %s101, %s115
      %p117 = scmp.eq.s32.totalorder %s28, 0
      %p118 = por %p116, %p117
      %s120 = sadd.s32 %s119, 1
      %p123 = scmp.eq.s32.totalorder %s22, 1
      %p124 = scmp.ne.s32.totalorder %s119, %s121
      %p125 = scmp.eq.s32.totalorder %s22, 0
      %p126 = por %p124, %p125
      %p127 = scmp.ne.s32.totalorder %s119, %s121
      %p128 = scmp.eq.s32.totalorder %s27, 1
      %p129 = por %p127, %p128
      %p130 = scmp.ne.s32.totalorder %s121, %s122
      %p131 = scmp.eq.s32.totalorder %s27, 0
      %p132 = por %p130, %p131
      %p133 = scmp.ne.s32.totalorder %s121, %s122
      %p134 = scmp.eq.s32.totalorder %s28, 1
      %p135 = por %p133, %p134
      %p137 = scmp.ne.s32.totalorder %s122, %s136
      %p138 = scmp.eq.s32.totalorder %s28, 0
      %p139 = por %p137, %p138
      %s141 = sadd.s32 %s140, 1
      %p144 = scmp.eq.s32.totalorder %s22, 1
      %p145 = scmp.ne.s32.totalorder %s140, %s142
      %p146 = scmp.eq.s32.totalorder %s22, 0
      %p147 = por %p145, %p146
      %p148 = scmp.ne.s32.totalorder %s140, %s142
      %p149 = scmp.eq.s32.totalorder %s27, 1
      %p150 = por %p148, %p149
      %p151 = scmp.ne.s32.totalorder %s142, %s143
      %p152 = scmp.eq.s32.totalorder %s27, 0
      %p153 = por %p151, %p152
      %p154 = scmp.ne.s32.totalorder %s142, %s143
      %p155 = scmp.eq.s32.totalorder %s28, 1
      %p156 = por %p154, %p155
      %p158 = scmp.ne.s32.totalorder %s143, %s157
      %p159 = scmp.eq.s32.totalorder %s28, 0
      %p160 = por %p158, %p159
      %s162 = sadd.s32 %s161, 1
      %p165 = scmp.eq.s32.totalorder %s22, 1
      %p166 = scmp.ne.s32.totalorder %s161, %s163
      %p167 = scmp.eq.s32.totalorder %s22, 0
      %p168 = por %p166, %p167
      %p169 = scmp.ne.s32.totalorder %s161, %s163
      %p170 = scmp.eq.s32.totalorder %s27, 1
      %p171 = por %p169, %p170
      %p172 = scmp.ne.s32.totalorder %s163, %s164
      %p173 = scmp.eq.s32.totalorder %s27, 0
      %p174 = por %p172, %p173
      %p175 = scmp.ne.s32.totalorder %s163, %s164
      %p176 = scmp.eq.s32.totalorder %s28, 1
      %p177 = por %p175, %p176
      %p179 = scmp.ne.s32.totalorder %s164, %s178
      %p180 = scmp.eq.s32.totalorder %s28, 0
      %p181 = por %p179, %p180
      %s183 = sadd.s32 %s182, 1
      %p186 = scmp.eq.s32.totalorder %s22, 1
      %p187 = scmp.ne.s32.totalorder %s182, %s184
      %p188 = scmp.eq.s32.totalorder %s22, 0
      %p189 = por %p187, %p188
      %p190 = scmp.ne.s32.totalorder %s182, %s184
      %p191 = scmp.eq.s32.totalorder %s27, 1
      %p192 = por %p190, %p191
      %p193 = scmp.ne.s32.totalorder %s184, %s185
      %p194 = scmp.eq.s32.totalorder %s27, 0
      %p195 = por %p193, %p194
      %p196 = scmp.ne.s32.totalorder %s184, %s185
      %p197 = scmp.eq.s32.totalorder %s28, 1
      %p198 = por %p196, %p197
      %p200 = scmp.ne.s32.totalorder %s185, %s199
      %p201 = scmp.eq.s32.totalorder %s28, 0
      %p202 = por %p200, %p201
      %s204 = sadd.s32 %s203, 1
      %p207 = scmp.eq.s32.totalorder %s22, 1
      %p208 = scmp.ne.s32.totalorder %s203, %s205
      %p209 = scmp.eq.s32.totalorder %s22, 0
      %p210 = por %p208, %p209
      %p211 = scmp.ne.s32.totalorder %s203, %s205
      %p212 = scmp.eq.s32.totalorder %s27, 1
      %p213 = por %p211, %p212
      %p214 = scmp.ne.s32.totalorder %s205, %s206
      %p215 = scmp.eq.s32.totalorder %s27, 0
      %p216 = por %p214, %p215
      %p217 = scmp.ne.s32.totalorder %s205, %s206
      %p218 = scmp.eq.s32.totalorder %s28, 1
      %p219 = por %p217, %p218
      %p221 = scmp.ne.s32.totalorder %s206, %s220
      %p222 = scmp.eq.s32.totalorder %s28, 0
      %p223 = por %p221, %p222
      %s224 = ssub.s32 %s22, %s29
      %p225 = scmp.eq.s32.totalorder %s224, 0
      %s227 = sadd.s32 %s226, 1
      %s228 = scalar_select %p225, %s226, %s227
      %p231 = pneg %p225
      %p232 = scmp.eq.s32.totalorder %s22, 1
      %p233 = por %p231, %p232
      %p234 = scmp.ne.s32.totalorder %s226, %s229
      %p235 = scmp.eq.s32.totalorder %s22, 0
      %p236 = por %p234, %p235
      %p237 = scmp.ne.s32.totalorder %s226, %s229
      %p238 = scmp.eq.s32.totalorder %s27, 1
      %p239 = por %p237, %p238
      %p240 = scmp.ne.s32.totalorder %s229, %s230
      %p241 = scmp.eq.s32.totalorder %s27, 0
      %p242 = por %p240, %p241
      %p243 = scmp.ne.s32.totalorder %s229, %s230
      %p244 = scmp.eq.s32.totalorder %s28, 1
      %p245 = por %p243, %p244
      %p247 = scmp.ne.s32.totalorder %s230, %s246
      %p248 = scmp.eq.s32.totalorder %s28, 0
      %p249 = por %p247, %p248
      %p250 = scmp.le.s32.totalorder 1, %s22
      %p251 = scmp.lt.s32.totalorder %s22, 3
      %p252 = pnand %p250, %p251
      %p253 = pneg %p252
      // Predicated region
      $region9: #{criss_cross_attention_forward.1} parent=5 // pred_check
        _
      $region10: #{criss_cross_attention_forward.1} parent=5 // pred_check_branch
        %255 = sbr.rel (%p252) target = $region12
      $region11: #{criss_cross_attention_forward.1} parent=5 // pred_region
        %s256 = ssub.s32 %s22, 1
        // Predicated region
        $region13: #{criss_cross_attention_forward.1} parent=11 // pred_check
          %p257 = pneg %p43
        $region14: #{criss_cross_attention_forward.1} parent=11 // pred_check_branch
          %259 = sbr.rel (%p257) target = $region16
        $region15: #{criss_cross_attention_forward.1} parent=11 // pred_region
          _
        $region16: #{criss_cross_attention_forward.1} parent=11 // pred_fallthru
          _
        // Predicated region
        $region17: #{criss_cross_attention_forward.1} parent=11 // pred_check
          %p260 = pneg %p90
        $region18: #{criss_cross_attention_forward.1} parent=11 // pred_check_branch
          %262 = sbr.rel (%p260) target = $region20
        $region19: #{criss_cross_attention_forward.1} parent=11 // pred_region
          _
        $region20: #{criss_cross_attention_forward.1} parent=11 // pred_fallthru
          _
        // Predicated region
        $region21: #{criss_cross_attention_forward.1} parent=11 // pred_check
          %p263 = pneg %p111
        $region22: #{criss_cross_attention_forward.1} parent=11 // pred_check_branch
          %265 = sbr.rel (%p263) target = $region24
        $region23: #{criss_cross_attention_forward.1} parent=11 // pred_region
          _
        $region24: #{criss_cross_attention_forward.1} parent=11 // pred_fallthru
          _
        // Predicated region
        $region25: #{criss_cross_attention_forward.1} parent=11 // pred_check
          %p266 = pneg %p132
        $region26: #{criss_cross_attention_forward.1} parent=11 // pred_check_branch
          %268 = sbr.rel (%p266) target = $region28
        $region27: #{criss_cross_attention_forward.1} parent=11 // pred_region
          _
        $region28: #{criss_cross_attention_forward.1} parent=11 // pred_fallthru
          _
        // Predicated region
        $region29: #{criss_cross_attention_forward.1} parent=11 // pred_check
          %p269 = pneg %p153
        $region30: #{criss_cross_attention_forward.1} parent=11 // pred_check_branch
          %271 = sbr.rel (%p269) target = $region32
        $region31: #{criss_cross_attention_forward.1} parent=11 // pred_region
          _
        $region32: #{criss_cross_attention_forward.1} parent=11 // pred_fallthru
          _
        // Predicated region
        $region33: #{criss_cross_attention_forward.1} parent=11 // pred_check
          %p272 = pneg %p174
        $region34: #{criss_cross_attention_forward.1} parent=11 // pred_check_branch
          %274 = sbr.rel (%p272) target = $region36
        $region35: #{criss_cross_attention_forward.1} parent=11 // pred_region
          _
        $region36: #{criss_cross_attention_forward.1} parent=11 // pred_fallthru
          _
        // Predicated region
        $region37: #{criss_cross_attention_forward.1} parent=11 // pred_check
          %p275 = pneg %p195
        $region38: #{criss_cross_attention_forward.1} parent=11 // pred_check_branch
          %277 = sbr.rel (%p275) target = $region40
        $region39: #{criss_cross_attention_forward.1} parent=11 // pred_region
          _
        $region40: #{criss_cross_attention_forward.1} parent=11 // pred_fallthru
          _
        // Predicated region
        $region41: #{criss_cross_attention_forward.1} parent=11 // pred_check
          %p278 = pneg %p216
        $region42: #{criss_cross_attention_forward.1} parent=11 // pred_check_branch
          %280 = sbr.rel (%p278) target = $region44
        $region43: #{criss_cross_attention_forward.1} parent=11 // pred_region
          _
        $region44: #{criss_cross_attention_forward.1} parent=11 // pred_fallthru
          _
      $region12: #{criss_cross_attention_forward.1} parent=5 // pred_fallthru
        _
      %p281 = scmp.lt.s32.totalorder %s22, 2
      // Predicated region
      $region45: #{criss_cross_attention_forward.1} parent=5 // pred_check
        %p282 = pneg %p281
      $region46: #{criss_cross_attention_forward.1} parent=5 // pred_check_branch
        %284 = sbr.rel (%p282) target = $region48
      $region47: #{criss_cross_attention_forward.1} parent=5 // pred_region
        // Predicated region
        $region49: #{criss_cross_attention_forward.1} parent=47 // pred_check
          %p285 = pneg %p63
        $region50: #{criss_cross_attention_forward.1} parent=47 // pred_check_branch
          %287 = sbr.rel (%p285) target = $region52
        $region51: #{criss_cross_attention_forward.1} parent=47 // pred_region
          %s288 = sand.u32 %s53, 1
          %s289 = scalar_lea.sflag [#allocation4], %s288
          %s290 = sand.u32 %s53, 1
          %s291 = smul.addr %s290, 256
          %s292 = scalar_lea.vmem [#allocation3], %s291
          %294 = vsyncadd %s289, 0
          %s295 = smul.addr %s22, 32
          %s296 = smul.addr %s295, 8
          %s297 = scalar_lea.hbm %s1, %s296
          %s298 = sshll.u32 %s297, 4
          %s299 = int_to_ptr.hbm [resolvable:$true] %s298
          %s300 = sshll.u32 %s292, 4
          %s301 = int_to_ptr.vmem [resolvable:$true] %s300
          %306 = dma.hbm_to_vmem [thread:$0]  %s299, 4096, %s301, %s289, 128, 128, 8
        $region52: #{criss_cross_attention_forward.1} parent=47 // pred_fallthru
          _
      $region48: #{criss_cross_attention_forward.1} parent=5 // pred_fallthru
        _
      %p307 = scmp.le.s32.totalorder 1, %s22
      %p308 = scmp.lt.s32.totalorder %s22, 3
      %p309 = pnand %p307, %p308
      %p310 = pneg %p309
      // Predicated region
      $region53: #{criss_cross_attention_forward.1} parent=5 // pred_check
        _
      $region54: #{criss_cross_attention_forward.1} parent=5 // pred_check_branch
        %312 = sbr.rel (%p309) target = $region56
      $region55: #{criss_cross_attention_forward.1} parent=5 // pred_region
        %s313 = ssub.s32 %s22, 1
        %s314 = sand.u32 %s56, 1
        %s315 = scalar_lea.sflag [#allocation4], %s314
        %s316 = sand.u32 %s56, 1
        %s317 = smul.addr %s316, 256
        %s318 = scalar_lea.vmem [#allocation3], %s317
        // Predicated region
        $region57: #{criss_cross_attention_forward.1} parent=55 // pred_check
          %p319 = pneg %p69
        $region58: #{criss_cross_attention_forward.1} parent=55 // pred_check_branch
          %321 = sbr.rel (%p319) target = $region60
        $region59: #{criss_cross_attention_forward.1} parent=55 // pred_region
          %323 = dma.done %s315, 4096
        $region60: #{criss_cross_attention_forward.1} parent=55 // pred_fallthru
          _
        %p324 = pneg %p43
        %p325 = pneg %p40
        %s326 = sand.u32 %s56, 1
        %s327 = scalar_lea.sflag [#allocation4], %s326
        %s328 = sand.u32 %s56, 1
        %s329 = smul.addr %s328, 256
        %s330 = scalar_lea.vmem [#allocation3], %s329
        %p331 = pneg %p69
        %p332 = pneg %p66
        %p333 = pneg %p90
        %p334 = pneg %p87
        %p335 = pneg %p111
        %p336 = pneg %p108
        %p337 = pneg %p132
        %p338 = pneg %p129
        %p339 = pneg %p153
        %p340 = pneg %p150
        %p341 = pneg %p174
        %p342 = pneg %p171
        %p343 = pneg %p195
        %p344 = pneg %p192
        %p345 = pneg %p216
        %p346 = pneg %p213
        %p347 = pneg %p242
        %p348 = pneg %p239
        %s349 = sand.u32 %s229, 1
        %s350 = scalar_lea.sflag [#allocation5], %s349
        %s351 = sand.u32 %s229, 1
        %s352 = smul.addr %s351, 256
        %s353 = scalar_lea.vmem [#allocation6], %s352
        %v355 = vld [vmem:[%s318] sm:$0xff]
        %v356 = vld [vmem:[%s318 + $0x8] sm:$0xff]
        %v357 = vld [vmem:[%s318 + $0x10] sm:$0xff]
        %v358 = vld [vmem:[%s318 + $0x18] sm:$0xff]
        %v359 = vld [vmem:[%s318 + $0x20] sm:$0xff]
        %v360 = vld [vmem:[%s318 + $0x28] sm:$0xff]
        %v361 = vld [vmem:[%s318 + $0x30] sm:$0xff]
        %v362 = vld [vmem:[%s318 + $0x38] sm:$0xff]
        %v363 = vld [vmem:[%s318 + $0x40] sm:$0xff]
        %v364 = vld [vmem:[%s318 + $0x48] sm:$0xff]
        %v365 = vld [vmem:[%s318 + $0x50] sm:$0xff]
        %v366 = vld [vmem:[%s318 + $0x58] sm:$0xff]
        %v367 = vld [vmem:[%s318 + $0x60] sm:$0xff]
        %v368 = vld [vmem:[%s318 + $0x68] sm:$0xff]
        %v369 = vld [vmem:[%s318 + $0x70] sm:$0xff]
        %v370 = vld [vmem:[%s318 + $0x78] sm:$0xff]
        %v371 = vld [vmem:[%s318 + $0x80] sm:$0xff]
        %v372 = vld [vmem:[%s318 + $0x88] sm:$0xff]
        %v373 = vld [vmem:[%s318 + $0x90] sm:$0xff]
        %v374 = vld [vmem:[%s318 + $0x98] sm:$0xff]
        %v375 = vld [vmem:[%s318 + $0xa0] sm:$0xff]
        %v376 = vld [vmem:[%s318 + $0xa8] sm:$0xff]
        %v377 = vld [vmem:[%s318 + $0xb0] sm:$0xff]
        %v378 = vld [vmem:[%s318 + $0xb8] sm:$0xff]
        %v379 = vld [vmem:[%s318 + $0xc0] sm:$0xff]
        %v380 = vld [vmem:[%s318 + $0xc8] sm:$0xff]
        %v381 = vld [vmem:[%s318 + $0xd0] sm:$0xff]
        %v382 = vld [vmem:[%s318 + $0xd8] sm:$0xff]
        %v383 = vld [vmem:[%s318 + $0xe0] sm:$0xff]
        %v384 = vld [vmem:[%s318 + $0xe8] sm:$0xff]
        %v385 = vld [vmem:[%s318 + $0xf0] sm:$0xff]
        %v386 = vld [vmem:[%s318 + $0xf8] sm:$0xff]
        %v387 = vld [vmem:[%s2] sm:$0xff]
        %v388 = vld [vmem:[%s2 + $0x8] sm:$0xff]
        %v389 = vld [vmem:[%s2 + $0x10] sm:$0xff]
        %v390 = vld [vmem:[%s2 + $0x18] sm:$0xff]
        %v391 = vld [vmem:[%s2 + $0x20] sm:$0xff]
        %v392 = vld [vmem:[%s2 + $0x28] sm:$0xff]
        %v393 = vld [vmem:[%s2 + $0x30] sm:$0xff]
        %v394 = vld [vmem:[%s2 + $0x38] sm:$0xff]
        %v395 = vld [vmem:[%s5] sm:$0x1]
        %v397 = vperm.slane %v395, 0
        %vm399 = vcmask 523264
        %v401 = vsel %vm399, %v355, 0
        %v404 = vsel %vm399, %v356, 0
        %v407 = vsel %vm399, %v357, 0
        %v410 = vsel %vm399, %v358, 0
        %v413 = vsel %vm399, %v359, 0
        %v416 = vsel %vm399, %v360, 0
        %v419 = vsel %vm399, %v361, 0
        %v422 = vsel %vm399, %v362, 0
        %v425 = vsel %vm399, %v363, 0
        %v428 = vsel %vm399, %v364, 0
        %v431 = vsel %vm399, %v365, 0
        %v434 = vsel %vm399, %v366, 0
        %v437 = vsel %vm399, %v367, 0
        %v440 = vsel %vm399, %v368, 0
        %v443 = vsel %vm399, %v369, 0
        %v446 = vsel %vm399, %v370, 0
        %v449 = vsel %vm399, %v371, 0
        %v452 = vsel %vm399, %v372, 0
        %v455 = vsel %vm399, %v373, 0
        %v458 = vsel %vm399, %v374, 0
        %v461 = vsel %vm399, %v375, 0
        %v464 = vsel %vm399, %v376, 0
        %v467 = vsel %vm399, %v377, 0
        %v470 = vsel %vm399, %v378, 0
        %v473 = vsel %vm399, %v379, 0
        %v476 = vsel %vm399, %v380, 0
        %v479 = vsel %vm399, %v381, 0
        %v482 = vsel %vm399, %v382, 0
        %v485 = vsel %vm399, %v383, 0
        %v488 = vsel %vm399, %v384, 0
        %v491 = vsel %vm399, %v385, 0
        %v494 = vsel %vm399, %v386, 0
        %496 = vmatpush.msra.mxu0 0.0
        %497 = vmatpush.msra.mxu0 0.0
        %498 = vmatpush.msra.mxu0 0.0
        %499 = vmatpush.msra.mxu0 0.0
        %500 = vmatpush.msra.mxu0 0.0
        %501 = vmatpush.msra.mxu0 0.0
        %502 = vmatpush.msra.mxu0 0.0
        %503 = vmatpush.msra.mxu0 0.0
        %504 = vmatpush.msra.mxu0 %v394
        %505 = vmatpush.msra.mxu0 %v393
        %506 = vmatpush.msra.mxu0 %v392
        %507 = vmatpush.msra.mxu0 %v391
        %508 = vmatpush.msra.mxu0 %v390
        %509 = vmatpush.msra.mxu0 %v389
        %510 = vmatpush.msra.mxu0 %v388
        %511 = vmatpush.msra.mxu0 %v387
        %512 = vmatmul.f32.gmra.mxu0 %v401
        %v513 = vpop.f32.mrf.mxu0
        %v514 = vadd.f32 %v397, %v513
        %515 = vmatmul.f32.gmra.mxu0 %v404
        %v516 = vpop.f32.mrf.mxu0
        %v517 = vadd.f32 %v397, %v516
        %518 = vmatmul.f32.gmra.mxu0 %v407
        %v519 = vpop.f32.mrf.mxu0
        %v520 = vadd.f32 %v397, %v519
        %521 = vmatmul.f32.gmra.mxu0 %v410
        %v522 = vpop.f32.mrf.mxu0
        %v523 = vadd.f32 %v397, %v522
        %524 = vmatmul.f32.gmra.mxu0 %v413
        %v525 = vpop.f32.mrf.mxu0
        %v526 = vadd.f32 %v397, %v525
        %527 = vmatmul.f32.gmra.mxu0 %v416
        %v528 = vpop.f32.mrf.mxu0
        %v529 = vadd.f32 %v397, %v528
        %530 = vmatmul.f32.gmra.mxu0 %v419
        %v531 = vpop.f32.mrf.mxu0
        %v532 = vadd.f32 %v397, %v531
        %533 = vmatmul.f32.gmra.mxu0 %v422
        %v534 = vpop.f32.mrf.mxu0
        %v535 = vadd.f32 %v397, %v534
        %536 = vmatmul.f32.gmra.mxu0 %v425
        %v537 = vpop.f32.mrf.mxu0
        %v538 = vadd.f32 %v397, %v537
        %539 = vmatmul.f32.gmra.mxu0 %v428
        %v540 = vpop.f32.mrf.mxu0
        %v541 = vadd.f32 %v397, %v540
        %542 = vmatmul.f32.gmra.mxu0 %v431
        %v543 = vpop.f32.mrf.mxu0
        %v544 = vadd.f32 %v397, %v543
        %545 = vmatmul.f32.gmra.mxu0 %v434
        %v546 = vpop.f32.mrf.mxu0
        %v547 = vadd.f32 %v397, %v546
        %548 = vmatmul.f32.gmra.mxu0 %v437
        %v549 = vpop.f32.mrf.mxu0
        %v550 = vadd.f32 %v397, %v549
        %551 = vmatmul.f32.gmra.mxu0 %v440
        %v552 = vpop.f32.mrf.mxu0
        %v553 = vadd.f32 %v397, %v552
        %554 = vmatmul.f32.gmra.mxu0 %v443
        %v555 = vpop.f32.mrf.mxu0
        %v556 = vadd.f32 %v397, %v555
        %557 = vmatmul.f32.gmra.mxu0 %v446
        %v558 = vpop.f32.mrf.mxu0
        %v559 = vadd.f32 %v397, %v558
        %560 = vmatmul.f32.gmra.mxu0 %v449
        %v561 = vpop.f32.mrf.mxu0
        %v562 = vadd.f32 %v397, %v561
        %563 = vmatmul.f32.gmra.mxu0 %v452
        %v564 = vpop.f32.mrf.mxu0
        %v565 = vadd.f32 %v397, %v564
        %566 = vmatmul.f32.gmra.mxu0 %v455
        %v567 = vpop.f32.mrf.mxu0
        %v568 = vadd.f32 %v397, %v567
        %569 = vmatmul.f32.gmra.mxu0 %v458
        %v570 = vpop.f32.mrf.mxu0
        %v571 = vadd.f32 %v397, %v570
        %572 = vmatmul.f32.gmra.mxu0 %v461
        %v573 = vpop.f32.mrf.mxu0
        %v574 = vadd.f32 %v397, %v573
        %575 = vmatmul.f32.gmra.mxu0 %v464
        %v576 = vpop.f32.mrf.mxu0
        %v577 = vadd.f32 %v397, %v576
        %578 = vmatmul.f32.gmra.mxu0 %v467
        %v579 = vpop.f32.mrf.mxu0
        %v580 = vadd.f32 %v397, %v579
        %581 = vmatmul.f32.gmra.mxu0 %v470
        %v582 = vpop.f32.mrf.mxu0
        %v583 = vadd.f32 %v397, %v582
        %584 = vmatmul.f32.gmra.mxu0 %v473
        %v585 = vpop.f32.mrf.mxu0
        %v586 = vadd.f32 %v397, %v585
        %587 = vmatmul.f32.gmra.mxu0 %v476
        %v588 = vpop.f32.mrf.mxu0
        %v589 = vadd.f32 %v397, %v588
        %590 = vmatmul.f32.gmra.mxu0 %v479
        %v591 = vpop.f32.mrf.mxu0
        %v592 = vadd.f32 %v397, %v591
        %593 = vmatmul.f32.gmra.mxu0 %v482
        %v594 = vpop.f32.mrf.mxu0
        %v595 = vadd.f32 %v397, %v594
        %596 = vmatmul.f32.gmra.mxu0 %v485
        %v597 = vpop.f32.mrf.mxu0
        %v598 = vadd.f32 %v397, %v597
        %599 = vmatmul.f32.gmra.mxu0 %v488
        %v600 = vpop.f32.mrf.mxu0
        %v601 = vadd.f32 %v397, %v600
        %602 = vmatmul.f32.gmra.mxu0 %v491
        %v603 = vpop.f32.mrf.mxu0
        %v604 = vadd.f32 %v397, %v603
        %605 = vmatmul.f32.gmra.mxu0 %v494
        %v606 = vpop.f32.mrf.mxu0
        %v607 = vadd.f32 %v397, %v606
        %608 = vdwg.mxu0
        %v609 = vld [vmem:[%s3] sm:$0xff]
        %v610 = vld [vmem:[%s3 + $0x8] sm:$0xff]
        %v611 = vld [vmem:[%s3 + $0x10] sm:$0xff]
        %v612 = vld [vmem:[%s3 + $0x18] sm:$0xff]
        %v613 = vld [vmem:[%s3 + $0x20] sm:$0xff]
        %v614 = vld [vmem:[%s3 + $0x28] sm:$0xff]
        %v615 = vld [vmem:[%s3 + $0x30] sm:$0xff]
        %v616 = vld [vmem:[%s3 + $0x38] sm:$0xff]
        %v617 = vld [vmem:[%s6] sm:$0x1]
        %v619 = vperm.slane %v617, 0
        %621 = vmatpush.msra.mxu0 0.0
        %622 = vmatpush.msra.mxu0 0.0
        %623 = vmatpush.msra.mxu0 0.0
        %624 = vmatpush.msra.mxu0 0.0
        %625 = vmatpush.msra.mxu0 0.0
        %626 = vmatpush.msra.mxu0 0.0
        %627 = vmatpush.msra.mxu0 0.0
        %628 = vmatpush.msra.mxu0 0.0
        %629 = vmatpush.msra.mxu0 %v616
        %630 = vmatpush.msra.mxu0 %v615
        %631 = vmatpush.msra.mxu0 %v614
        %632 = vmatpush.msra.mxu0 %v613
        %633 = vmatpush.msra.mxu0 %v612
        %634 = vmatpush.msra.mxu0 %v611
        %635 = vmatpush.msra.mxu0 %v610
        %636 = vmatpush.msra.mxu0 %v609
        %637 = vmatmul.f32.gmra.mxu0 %v401
        %v638 = vpop.f32.mrf.mxu0
        %v639 = vadd.f32 %v619, %v638
        %640 = vmatmul.f32.gmra.mxu0 %v404
        %v641 = vpop.f32.mrf.mxu0
        %v642 = vadd.f32 %v619, %v641
        %643 = vmatmul.f32.gmra.mxu0 %v407
        %v644 = vpop.f32.mrf.mxu0
        %v645 = vadd.f32 %v619, %v644
        %646 = vmatmul.f32.gmra.mxu0 %v410
        %v647 = vpop.f32.mrf.mxu0
        %v648 = vadd.f32 %v619, %v647
        %649 = vmatmul.f32.gmra.mxu0 %v413
        %v650 = vpop.f32.mrf.mxu0
        %v651 = vadd.f32 %v619, %v650
        %652 = vmatmul.f32.gmra.mxu0 %v416
        %v653 = vpop.f32.mrf.mxu0
        %v654 = vadd.f32 %v619, %v653
        %655 = vmatmul.f32.gmra.mxu0 %v419
        %v656 = vpop.f32.mrf.mxu0
        %v657 = vadd.f32 %v619, %v656
        %658 = vmatmul.f32.gmra.mxu0 %v422
        %v659 = vpop.f32.mrf.mxu0
        %v660 = vadd.f32 %v619, %v659
        %661 = vmatmul.f32.gmra.mxu0 %v425
        %v662 = vpop.f32.mrf.mxu0
        %v663 = vadd.f32 %v619, %v662
        %664 = vmatmul.f32.gmra.mxu0 %v428
        %v665 = vpop.f32.mrf.mxu0
        %v666 = vadd.f32 %v619, %v665
        %667 = vmatmul.f32.gmra.mxu0 %v431
        %v668 = vpop.f32.mrf.mxu0
        %v669 = vadd.f32 %v619, %v668
        %670 = vmatmul.f32.gmra.mxu0 %v434
        %v671 = vpop.f32.mrf.mxu0
        %v672 = vadd.f32 %v619, %v671
        %673 = vmatmul.f32.gmra.mxu0 %v437
        %v674 = vpop.f32.mrf.mxu0
        %v675 = vadd.f32 %v619, %v674
        %676 = vmatmul.f32.gmra.mxu0 %v440
        %v677 = vpop.f32.mrf.mxu0
        %v678 = vadd.f32 %v619, %v677
        %679 = vmatmul.f32.gmra.mxu0 %v443
        %v680 = vpop.f32.mrf.mxu0
        %v681 = vadd.f32 %v619, %v680
        %682 = vmatmul.f32.gmra.mxu0 %v446
        %v683 = vpop.f32.mrf.mxu0
        %v684 = vadd.f32 %v619, %v683
        %685 = vmatmul.f32.gmra.mxu0 %v449
        %v686 = vpop.f32.mrf.mxu0
        %v687 = vadd.f32 %v619, %v686
        %688 = vmatmul.f32.gmra.mxu0 %v452
        %v689 = vpop.f32.mrf.mxu0
        %v690 = vadd.f32 %v619, %v689
        %691 = vmatmul.f32.gmra.mxu0 %v455
        %v692 = vpop.f32.mrf.mxu0
        %v693 = vadd.f32 %v619, %v692
        %694 = vmatmul.f32.gmra.mxu0 %v458
        %v695 = vpop.f32.mrf.mxu0
        %v696 = vadd.f32 %v619, %v695
        %697 = vmatmul.f32.gmra.mxu0 %v461
        %v698 = vpop.f32.mrf.mxu0
        %v699 = vadd.f32 %v619, %v698
        %700 = vmatmul.f32.gmra.mxu0 %v464
        %v701 = vpop.f32.mrf.mxu0
        %v702 = vadd.f32 %v619, %v701
        %703 = vmatmul.f32.gmra.mxu0 %v467
        %v704 = vpop.f32.mrf.mxu0
        %v705 = vadd.f32 %v619, %v704
        %706 = vmatmul.f32.gmra.mxu0 %v470
        %v707 = vpop.f32.mrf.mxu0
        %v708 = vadd.f32 %v619, %v707
        %709 = vmatmul.f32.gmra.mxu0 %v473
        %v710 = vpop.f32.mrf.mxu0
        %v711 = vadd.f32 %v619, %v710
        %712 = vmatmul.f32.gmra.mxu0 %v476
        %v713 = vpop.f32.mrf.mxu0
        %v714 = vadd.f32 %v619, %v713
        %715 = vmatmul.f32.gmra.mxu0 %v479
        %v716 = vpop.f32.mrf.mxu0
        %v717 = vadd.f32 %v619, %v716
        %718 = vmatmul.f32.gmra.mxu0 %v482
        %v719 = vpop.f32.mrf.mxu0
        %v720 = vadd.f32 %v619, %v719
        %721 = vmatmul.f32.gmra.mxu0 %v485
        %v722 = vpop.f32.mrf.mxu0
        %v723 = vadd.f32 %v619, %v722
        %724 = vmatmul.f32.gmra.mxu0 %v488
        %v725 = vpop.f32.mrf.mxu0
        %v726 = vadd.f32 %v619, %v725
        %727 = vmatmul.f32.gmra.mxu0 %v491
        %v728 = vpop.f32.mrf.mxu0
        %v729 = vadd.f32 %v619, %v728
        %730 = vmatmul.f32.gmra.mxu0 %v494
        %v731 = vpop.f32.mrf.mxu0
        %v732 = vadd.f32 %v619, %v731
        %733 = vdwg.mxu0
        %v734 = vld [vmem:[%s4] sm:$0xff]
        %v735 = vld [vmem:[%s4 + $0x8] sm:$0xff]
        %v736 = vld [vmem:[%s4 + $0x10] sm:$0xff]
        %v737 = vld [vmem:[%s4 + $0x18] sm:$0xff]
        %v738 = vld [vmem:[%s4 + $0x20] sm:$0xff]
        %v739 = vld [vmem:[%s4 + $0x28] sm:$0xff]
        %v740 = vld [vmem:[%s4 + $0x30] sm:$0xff]
        %v741 = vld [vmem:[%s4 + $0x38] sm:$0xff]
        %v742 = vld [vmem:[%s7] sm:$0x1]
        %v744 = vperm.slane %v742, 0
        %746 = vmatpush.msra.mxu0 0.0
        %747 = vmatpush.msra.mxu0 0.0
        %748 = vmatpush.msra.mxu0 0.0
        %749 = vmatpush.msra.mxu0 0.0
        %750 = vmatpush.msra.mxu0 0.0
        %751 = vmatpush.msra.mxu0 0.0
        %752 = vmatpush.msra.mxu0 0.0
        %753 = vmatpush.msra.mxu0 0.0
        %754 = vmatpush.msra.mxu0 %v741
        %755 = vmatpush.msra.mxu0 %v740
        %756 = vmatpush.msra.mxu0 %v739
        %757 = vmatpush.msra.mxu0 %v738
        %758 = vmatpush.msra.mxu0 %v737
        %759 = vmatpush.msra.mxu0 %v736
        %760 = vmatpush.msra.mxu0 %v735
        %761 = vmatpush.msra.mxu0 %v734
        %762 = vmatmul.f32.gmra.mxu0 %v401
        %v763 = vpop.f32.mrf.mxu0
        %v764 = vadd.f32 %v744, %v763
        %765 = vmatmul.f32.gmra.mxu0 %v404
        %v766 = vpop.f32.mrf.mxu0
        %v767 = vadd.f32 %v744, %v766
        %768 = vmatmul.f32.gmra.mxu0 %v407
        %v769 = vpop.f32.mrf.mxu0
        %v770 = vadd.f32 %v744, %v769
        %771 = vmatmul.f32.gmra.mxu0 %v410
        %v772 = vpop.f32.mrf.mxu0
        %v773 = vadd.f32 %v744, %v772
        %774 = vmatmul.f32.gmra.mxu0 %v413
        %v775 = vpop.f32.mrf.mxu0
        %v776 = vadd.f32 %v744, %v775
        %777 = vmatmul.f32.gmra.mxu0 %v416
        %v778 = vpop.f32.mrf.mxu0
        %v779 = vadd.f32 %v744, %v778
        %780 = vmatmul.f32.gmra.mxu0 %v419
        %v781 = vpop.f32.mrf.mxu0
        %v782 = vadd.f32 %v744, %v781
        %783 = vmatmul.f32.gmra.mxu0 %v422
        %v784 = vpop.f32.mrf.mxu0
        %v785 = vadd.f32 %v744, %v784
        %786 = vmatmul.f32.gmra.mxu0 %v425
        %v787 = vpop.f32.mrf.mxu0
        %v788 = vadd.f32 %v744, %v787
        %789 = vmatmul.f32.gmra.mxu0 %v428
        %v790 = vpop.f32.mrf.mxu0
        %v791 = vadd.f32 %v744, %v790
        %792 = vmatmul.f32.gmra.mxu0 %v431
        %v793 = vpop.f32.mrf.mxu0
        %v794 = vadd.f32 %v744, %v793
        %795 = vmatmul.f32.gmra.mxu0 %v434
        %v796 = vpop.f32.mrf.mxu0
        %v797 = vadd.f32 %v744, %v796
        %798 = vmatmul.f32.gmra.mxu0 %v437
        %v799 = vpop.f32.mrf.mxu0
        %v800 = vadd.f32 %v744, %v799
        %801 = vmatmul.f32.gmra.mxu0 %v440
        %v802 = vpop.f32.mrf.mxu0
        %v803 = vadd.f32 %v744, %v802
        %804 = vmatmul.f32.gmra.mxu0 %v443
        %v805 = vpop.f32.mrf.mxu0
        %v806 = vadd.f32 %v744, %v805
        %807 = vmatmul.f32.gmra.mxu0 %v446
        %v808 = vpop.f32.mrf.mxu0
        %v809 = vadd.f32 %v744, %v808
        %810 = vmatmul.f32.gmra.mxu0 %v449
        %v811 = vpop.f32.mrf.mxu0
        %v812 = vadd.f32 %v744, %v811
        %813 = vmatmul.f32.gmra.mxu0 %v452
        %v814 = vpop.f32.mrf.mxu0
        %v815 = vadd.f32 %v744, %v814
        %816 = vmatmul.f32.gmra.mxu0 %v455
        %v817 = vpop.f32.mrf.mxu0
        %v818 = vadd.f32 %v744, %v817
        %819 = vmatmul.f32.gmra.mxu0 %v458
        %v820 = vpop.f32.mrf.mxu0
        %v821 = vadd.f32 %v744, %v820
        %822 = vmatmul.f32.gmra.mxu0 %v461
        %v823 = vpop.f32.mrf.mxu0
        %v824 = vadd.f32 %v744, %v823
        %825 = vmatmul.f32.gmra.mxu0 %v464
        %v826 = vpop.f32.mrf.mxu0
        %v827 = vadd.f32 %v744, %v826
        %828 = vmatmul.f32.gmra.mxu0 %v467
        %v829 = vpop.f32.mrf.mxu0
        %v830 = vadd.f32 %v744, %v829
        %831 = vmatmul.f32.gmra.mxu0 %v470
        %v832 = vpop.f32.mrf.mxu0
        %v833 = vadd.f32 %v744, %v832
        %834 = vmatmul.f32.gmra.mxu0 %v473
        %v835 = vpop.f32.mrf.mxu0
        %v836 = vadd.f32 %v744, %v835
        %837 = vmatmul.f32.gmra.mxu0 %v476
        %v838 = vpop.f32.mrf.mxu0
        %v839 = vadd.f32 %v744, %v838
        %840 = vmatmul.f32.gmra.mxu0 %v479
        %v841 = vpop.f32.mrf.mxu0
        %v842 = vadd.f32 %v744, %v841
        %843 = vmatmul.f32.gmra.mxu0 %v482
        %v844 = vpop.f32.mrf.mxu0
        %v845 = vadd.f32 %v744, %v844
        %846 = vmatmul.f32.gmra.mxu0 %v485
        %v847 = vpop.f32.mrf.mxu0
        %v848 = vadd.f32 %v744, %v847
        %849 = vmatmul.f32.gmra.mxu0 %v488
        %v850 = vpop.f32.mrf.mxu0
        %v851 = vadd.f32 %v744, %v850
        %852 = vmatmul.f32.gmra.mxu0 %v491
        %v853 = vpop.f32.mrf.mxu0
        %v854 = vadd.f32 %v744, %v853
        %855 = vmatmul.f32.gmra.mxu0 %v494
        %v856 = vpop.f32.mrf.mxu0
        %v857 = vadd.f32 %v744, %v856
        %858 = vdwg.mxu0
        %v859 = vrot.slane %v526, 4
        %vm860 = vcmask 1047556
        %v861 = vsel %vm860, %v859, %v514
        %v862 = vrot.slane %v514, 4
        %v863 = vsel %vm860, %v526, %v862
        %v865 = vunpack.c.l.s4 1983009808
        %v866 = vunpack.c.0.s8 %v865
        %v867 = vperm.slane %v861, %v866
        %v869 = vunpack.c.l.s4 1983009808
        %v870 = vunpack.c.0.s8 %v869
        %v871 = vperm.slane %v863, %v870
        %v872 = vrot.slane %v532, 4
        %v873 = vsel %vm860, %v872, %v520
        %v874 = vrot.slane %v520, 4
        %v875 = vsel %vm860, %v532, %v874
        %v877 = vunpack.c.l.s4 1983009808
        %v878 = vunpack.c.0.s8 %v877
        %v879 = vperm.slane %v873, %v878
        %v881 = vunpack.c.l.s4 1983009808
        %v882 = vunpack.c.0.s8 %v881
        %v883 = vperm.slane %v875, %v882
        %v884 = vrot.slane %v550, 4
        %v885 = vsel %vm860, %v884, %v538
        %v886 = vrot.slane %v538, 4
        %v887 = vsel %vm860, %v550, %v886
        %v889 = vunpack.c.l.s4 1983009808
        %v890 = vunpack.c.0.s8 %v889
        %v891 = vperm.slane %v885, %v890
        %v893 = vunpack.c.l.s4 1983009808
        %v894 = vunpack.c.0.s8 %v893
        %v895 = vperm.slane %v887, %v894
        %v896 = vrot.slane %v556, 4
        %v897 = vsel %vm860, %v896, %v544
        %v898 = vrot.slane %v544, 4
        %v899 = vsel %vm860, %v556, %v898
        %v901 = vunpack.c.l.s4 1983009808
        %v902 = vunpack.c.0.s8 %v901
        %v903 = vperm.slane %v897, %v902
        %v905 = vunpack.c.l.s4 1983009808
        %v906 = vunpack.c.0.s8 %v905
        %v907 = vperm.slane %v899, %v906
        %v908 = vrot.slane %v879, 4
        %v909 = vsel %vm860, %v908, %v867
        %v910 = vrot.slane %v867, 4
        %v911 = vsel %vm860, %v879, %v910
        %v913 = vunpack.c.l.s4 1934713408
        %v914 = vunpack.c.0.s8 %v913
        %v915 = vperm.slane %v909, %v914
        %v917 = vunpack.c.l.s4 1934713408
        %v918 = vunpack.c.0.s8 %v917
        %v919 = vperm.slane %v911, %v918
        %v920 = vrot.slane %v883, 4
        %v921 = vsel %vm860, %v920, %v871
        %v922 = vrot.slane %v871, 4
        %v923 = vsel %vm860, %v883, %v922
        %v925 = vunpack.c.l.s4 1934713408
        %v926 = vunpack.c.0.s8 %v925
        %v927 = vperm.slane %v921, %v926
        %v929 = vunpack.c.l.s4 1934713408
        %v930 = vunpack.c.0.s8 %v929
        %v931 = vperm.slane %v923, %v930
        %v932 = vrot.slane %v903, 4
        %v933 = vsel %vm860, %v932, %v891
        %v934 = vrot.slane %v891, 4
        %v935 = vsel %vm860, %v903, %v934
        %v937 = vunpack.c.l.s4 1934713408
        %v938 = vunpack.c.0.s8 %v937
        %v939 = vperm.slane %v933, %v938
        %v941 = vunpack.c.l.s4 1934713408
        %v942 = vunpack.c.0.s8 %v941
        %v943 = vperm.slane %v935, %v942
        %v944 = vrot.slane %v907, 4
        %v945 = vsel %vm860, %v944, %v895
        %v946 = vrot.slane %v895, 4
        %v947 = vsel %vm860, %v907, %v946
        %v949 = vunpack.c.l.s4 1934713408
        %v950 = vunpack.c.0.s8 %v949
        %v951 = vperm.slane %v945, %v950
        %v953 = vunpack.c.l.s4 1934713408
        %v954 = vunpack.c.0.s8 %v953
        %v955 = vperm.slane %v947, %v954
        %v956 = vrot.slane %v939, 4
        %v957 = vsel %vm860, %v956, %v915
        %v958 = vrot.slane %v915, 4
        %v959 = vsel %vm860, %v939, %v958
        %v960 = vrot.slane %v943, 4
        %v961 = vsel %vm860, %v960, %v919
        %v962 = vrot.slane %v919, 4
        %v963 = vsel %vm860, %v943, %v962
        %v964 = vrot.slane %v951, 4
        %v965 = vsel %vm860, %v964, %v927
        %v966 = vrot.slane %v927, 4
        %v967 = vsel %vm860, %v951, %v966
        %v968 = vrot.slane %v955, 4
        %v969 = vsel %vm860, %v968, %v931
        %v970 = vrot.slane %v931, 4
        %v971 = vsel %vm860, %v955, %v970
        %v972 = vrot.slane %v574, 4
        %v973 = vsel %vm860, %v972, %v562
        %v974 = vrot.slane %v562, 4
        %v975 = vsel %vm860, %v574, %v974
        %v977 = vunpack.c.l.s4 1983009808
        %v978 = vunpack.c.0.s8 %v977
        %v979 = vperm.slane %v973, %v978
        %v981 = vunpack.c.l.s4 1983009808
        %v982 = vunpack.c.0.s8 %v981
        %v983 = vperm.slane %v975, %v982
        %v984 = vrot.slane %v580, 4
        %v985 = vsel %vm860, %v984, %v568
        %v986 = vrot.slane %v568, 4
        %v987 = vsel %vm860, %v580, %v986
        %v989 = vunpack.c.l.s4 1983009808
        %v990 = vunpack.c.0.s8 %v989
        %v991 = vperm.slane %v985, %v990
        %v993 = vunpack.c.l.s4 1983009808
        %v994 = vunpack.c.0.s8 %v993
        %v995 = vperm.slane %v987, %v994
        %v996 = vrot.slane %v598, 4
        %v997 = vsel %vm860, %v996, %v586
        %v998 = vrot.slane %v586, 4
        %v999 = vsel %vm860, %v598, %v998
        %v1001 = vunpack.c.l.s4 1983009808
        %v1002 = vunpack.c.0.s8 %v1001
        %v1003 = vperm.slane %v997, %v1002
        %v1005 = vunpack.c.l.s4 1983009808
        %v1006 = vunpack.c.0.s8 %v1005
        %v1007 = vperm.slane %v999, %v1006
        %v1008 = vrot.slane %v604, 4
        %v1009 = vsel %vm860, %v1008, %v592
        %v1010 = vrot.slane %v592, 4
        %v1011 = vsel %vm860, %v604, %v1010
        %v1013 = vunpack.c.l.s4 1983009808
        %v1014 = vunpack.c.0.s8 %v1013
        %v1015 = vperm.slane %v1009, %v1014
        %v1017 = vunpack.c.l.s4 1983009808
        %v1018 = vunpack.c.0.s8 %v1017
        %v1019 = vperm.slane %v1011, %v1018
        %v1020 = vrot.slane %v991, 4
        %v1021 = vsel %vm860, %v1020, %v979
        %v1022 = vrot.slane %v979, 4
        %v1023 = vsel %vm860, %v991, %v1022
        %v1025 = vunpack.c.l.s4 1934713408
        %v1026 = vunpack.c.0.s8 %v1025
        %v1027 = vperm.slane %v1021, %v1026
        %v1029 = vunpack.c.l.s4 1934713408
        %v1030 = vunpack.c.0.s8 %v1029
        %v1031 = vperm.slane %v1023, %v1030
        %v1032 = vrot.slane %v995, 4
        %v1033 = vsel %vm860, %v1032, %v983
        %v1034 = vrot.slane %v983, 4
        %v1035 = vsel %vm860, %v995, %v1034
        %v1037 = vunpack.c.l.s4 1934713408
        %v1038 = vunpack.c.0.s8 %v1037
        %v1039 = vperm.slane %v1033, %v1038
        %v1041 = vunpack.c.l.s4 1934713408
        %v1042 = vunpack.c.0.s8 %v1041
        %v1043 = vperm.slane %v1035, %v1042
        %v1044 = vrot.slane %v1015, 4
        %v1045 = vsel %vm860, %v1044, %v1003
        %v1046 = vrot.slane %v1003, 4
        %v1047 = vsel %vm860, %v1015, %v1046
        %v1049 = vunpack.c.l.s4 1934713408
        %v1050 = vunpack.c.0.s8 %v1049
        %v1051 = vperm.slane %v1045, %v1050
        %v1053 = vunpack.c.l.s4 1934713408
        %v1054 = vunpack.c.0.s8 %v1053
        %v1055 = vperm.slane %v1047, %v1054
        %v1056 = vrot.slane %v1019, 4
        %v1057 = vsel %vm860, %v1056, %v1007
        %v1058 = vrot.slane %v1007, 4
        %v1059 = vsel %vm860, %v1019, %v1058
        %v1061 = vunpack.c.l.s4 1934713408
        %v1062 = vunpack.c.0.s8 %v1061
        %v1063 = vperm.slane %v1057, %v1062
        %v1065 = vunpack.c.l.s4 1934713408
        %v1066 = vunpack.c.0.s8 %v1065
        %v1067 = vperm.slane %v1059, %v1066
        %v1068 = vrot.slane %v1051, 4
        %v1069 = vsel %vm860, %v1068, %v1027
        %v1070 = vrot.slane %v1027, 4
        %v1071 = vsel %vm860, %v1051, %v1070
        %v1072 = vrot.slane %v1055, 4
        %v1073 = vsel %vm860, %v1072, %v1031
        %v1074 = vrot.slane %v1031, 4
        %v1075 = vsel %vm860, %v1055, %v1074
        %v1076 = vrot.slane %v1063, 4
        %v1077 = vsel %vm860, %v1076, %v1039
        %v1078 = vrot.slane %v1039, 4
        %v1079 = vsel %vm860, %v1063, %v1078
        %v1080 = vrot.slane %v1067, 4
        %v1081 = vsel %vm860, %v1080, %v1043
        %v1082 = vrot.slane %v1043, 4
        %v1083 = vsel %vm860, %v1067, %v1082
        %v1084 = vrot.slane %v529, 4
        %v1085 = vsel %vm860, %v1084, %v517
        %v1086 = vrot.slane %v517, 4
        %v1087 = vsel %vm860, %v529, %v1086
        %v1089 = vunpack.c.l.s4 1983009808
        %v1090 = vunpack.c.0.s8 %v1089
        %v1091 = vperm.slane %v1085, %v1090
        %v1093 = vunpack.c.l.s4 1983009808
        %v1094 = vunpack.c.0.s8 %v1093
        %v1095 = vperm.slane %v1087, %v1094
        %v1096 = vrot.slane %v535, 4
        %v1097 = vsel %vm860, %v1096, %v523
        %v1098 = vrot.slane %v523, 4
        %v1099 = vsel %vm860, %v535, %v1098
        %v1101 = vunpack.c.l.s4 1983009808
        %v1102 = vunpack.c.0.s8 %v1101
        %v1103 = vperm.slane %v1097, %v1102
        %v1105 = vunpack.c.l.s4 1983009808
        %v1106 = vunpack.c.0.s8 %v1105
        %v1107 = vperm.slane %v1099, %v1106
        %v1108 = vrot.slane %v553, 4
        %v1109 = vsel %vm860, %v1108, %v541
        %v1110 = vrot.slane %v541, 4
        %v1111 = vsel %vm860, %v553, %v1110
        %v1113 = vunpack.c.l.s4 1983009808
        %v1114 = vunpack.c.0.s8 %v1113
        %v1115 = vperm.slane %v1109, %v1114
        %v1117 = vunpack.c.l.s4 1983009808
        %v1118 = vunpack.c.0.s8 %v1117
        %v1119 = vperm.slane %v1111, %v1118
        %v1120 = vrot.slane %v559, 4
        %v1121 = vsel %vm860, %v1120, %v547
        %v1122 = vrot.slane %v547, 4
        %v1123 = vsel %vm860, %v559, %v1122
        %v1125 = vunpack.c.l.s4 1983009808
        %v1126 = vunpack.c.0.s8 %v1125
        %v1127 = vperm.slane %v1121, %v1126
        %v1129 = vunpack.c.l.s4 1983009808
        %v1130 = vunpack.c.0.s8 %v1129
        %v1131 = vperm.slane %v1123, %v1130
        %v1132 = vrot.slane %v1103, 4
        %v1133 = vsel %vm860, %v1132, %v1091
        %v1134 = vrot.slane %v1091, 4
        %v1135 = vsel %vm860, %v1103, %v1134
        %v1137 = vunpack.c.l.s4 1934713408
        %v1138 = vunpack.c.0.s8 %v1137
        %v1139 = vperm.slane %v1133, %v1138
        %v1141 = vunpack.c.l.s4 1934713408
        %v1142 = vunpack.c.0.s8 %v1141
        %v1143 = vperm.slane %v1135, %v1142
        %v1144 = vrot.slane %v1107, 4
        %v1145 = vsel %vm860, %v1144, %v1095
        %v1146 = vrot.slane %v1095, 4
        %v1147 = vsel %vm860, %v1107, %v1146
        %v1149 = vunpack.c.l.s4 1934713408
        %v1150 = vunpack.c.0.s8 %v1149
        %v1151 = vperm.slane %v1145, %v1150
        %v1153 = vunpack.c.l.s4 1934713408
        %v1154 = vunpack.c.0.s8 %v1153
        %v1155 = vperm.slane %v1147, %v1154
        %v1156 = vrot.slane %v1127, 4
        %v1157 = vsel %vm860, %v1156, %v1115
        %v1158 = vrot.slane %v1115, 4
        %v1159 = vsel %vm860, %v1127, %v1158
        %v1161 = vunpack.c.l.s4 1934713408
        %v1162 = vunpack.c.0.s8 %v1161
        %v1163 = vperm.slane %v1157, %v1162
        %v1165 = vunpack.c.l.s4 1934713408
        %v1166 = vunpack.c.0.s8 %v1165
        %v1167 = vperm.slane %v1159, %v1166
        %v1168 = vrot.slane %v1131, 4
        %v1169 = vsel %vm860, %v1168, %v1119
        %v1170 = vrot.slane %v1119, 4
        %v1171 = vsel %vm860, %v1131, %v1170
        %v1173 = vunpack.c.l.s4 1934713408
        %v1174 = vunpack.c.0.s8 %v1173
        %v1175 = vperm.slane %v1169, %v1174
        %v1177 = vunpack.c.l.s4 1934713408
        %v1178 = vunpack.c.0.s8 %v1177
        %v1179 = vperm.slane %v1171, %v1178
        %v1180 = vrot.slane %v1163, 4
        %v1181 = vsel %vm860, %v1180, %v1139
        %v1182 = vrot.slane %v1139, 4
        %v1183 = vsel %vm860, %v1163, %v1182
        %v1184 = vrot.slane %v1167, 4
        %v1185 = vsel %vm860, %v1184, %v1143
        %v1186 = vrot.slane %v1143, 4
        %v1187 = vsel %vm860, %v1167, %v1186
        %v1188 = vrot.slane %v1175, 4
        %v1189 = vsel %vm860, %v1188, %v1151
        %v1190 = vrot.slane %v1151, 4
        %v1191 = vsel %vm860, %v1175, %v1190
        %v1192 = vrot.slane %v1179, 4
        %v1193 = vsel %vm860, %v1192, %v1155
        %v1194 = vrot.slane %v1155, 4
        %v1195 = vsel %vm860, %v1179, %v1194
        %v1196 = vrot.slane %v577, 4
        %v1197 = vsel %vm860, %v1196, %v565
        %v1198 = vrot.slane %v565, 4
        %v1199 = vsel %vm860, %v577, %v1198
        %v1201 = vunpack.c.l.s4 1983009808
        %v1202 = vunpack.c.0.s8 %v1201
        %v1203 = vperm.slane %v1197, %v1202
        %v1205 = vunpack.c.l.s4 1983009808
        %v1206 = vunpack.c.0.s8 %v1205
        %v1207 = vperm.slane %v1199, %v1206
        %v1208 = vrot.slane %v583, 4
        %v1209 = vsel %vm860, %v1208, %v571
        %v1210 = vrot.slane %v571, 4
        %v1211 = vsel %vm860, %v583, %v1210
        %v1213 = vunpack.c.l.s4 1983009808
        %v1214 = vunpack.c.0.s8 %v1213
        %v1215 = vperm.slane %v1209, %v1214
        %v1217 = vunpack.c.l.s4 1983009808
        %v1218 = vunpack.c.0.s8 %v1217
        %v1219 = vperm.slane %v1211, %v1218
        %v1220 = vrot.slane %v601, 4
        %v1221 = vsel %vm860, %v1220, %v589
        %v1222 = vrot.slane %v589, 4
        %v1223 = vsel %vm860, %v601, %v1222
        %v1225 = vunpack.c.l.s4 1983009808
        %v1226 = vunpack.c.0.s8 %v1225
        %v1227 = vperm.slane %v1221, %v1226
        %v1229 = vunpack.c.l.s4 1983009808
        %v1230 = vunpack.c.0.s8 %v1229
        %v1231 = vperm.slane %v1223, %v1230
        %v1232 = vrot.slane %v607, 4
        %v1233 = vsel %vm860, %v1232, %v595
        %v1234 = vrot.slane %v595, 4
        %v1235 = vsel %vm860, %v607, %v1234
        %v1237 = vunpack.c.l.s4 1983009808
        %v1238 = vunpack.c.0.s8 %v1237
        %v1239 = vperm.slane %v1233, %v1238
        %v1241 = vunpack.c.l.s4 1983009808
        %v1242 = vunpack.c.0.s8 %v1241
        %v1243 = vperm.slane %v1235, %v1242
        %v1244 = vrot.slane %v1215, 4
        %v1245 = vsel %vm860, %v1244, %v1203
        %v1246 = vrot.slane %v1203, 4
        %v1247 = vsel %vm860, %v1215, %v1246
        %v1249 = vunpack.c.l.s4 1934713408
        %v1250 = vunpack.c.0.s8 %v1249
        %v1251 = vperm.slane %v1245, %v1250
        %v1253 = vunpack.c.l.s4 1934713408
        %v1254 = vunpack.c.0.s8 %v1253
        %v1255 = vperm.slane %v1247, %v1254
        %v1256 = vrot.slane %v1219, 4
        %v1257 = vsel %vm860, %v1256, %v1207
        %v1258 = vrot.slane %v1207, 4
        %v1259 = vsel %vm860, %v1219, %v1258
        %v1261 = vunpack.c.l.s4 1934713408
        %v1262 = vunpack.c.0.s8 %v1261
        %v1263 = vperm.slane %v1257, %v1262
        %v1265 = vunpack.c.l.s4 1934713408
        %v1266 = vunpack.c.0.s8 %v1265
        %v1267 = vperm.slane %v1259, %v1266
        %v1268 = vrot.slane %v1239, 4
        %v1269 = vsel %vm860, %v1268, %v1227
        %v1270 = vrot.slane %v1227, 4
        %v1271 = vsel %vm860, %v1239, %v1270
        %v1273 = vunpack.c.l.s4 1934713408
        %v1274 = vunpack.c.0.s8 %v1273
        %v1275 = vperm.slane %v1269, %v1274
        %v1277 = vunpack.c.l.s4 1934713408
        %v1278 = vunpack.c.0.s8 %v1277
        %v1279 = vperm.slane %v1271, %v1278
        %v1280 = vrot.slane %v1243, 4
        %v1281 = vsel %vm860, %v1280, %v1231
        %v1282 = vrot.slane %v1231, 4
        %v1283 = vsel %vm860, %v1243, %v1282
        %v1285 = vunpack.c.l.s4 1934713408
        %v1286 = vunpack.c.0.s8 %v1285
        %v1287 = vperm.slane %v1281, %v1286
        %v1289 = vunpack.c.l.s4 1934713408
        %v1290 = vunpack.c.0.s8 %v1289
        %v1291 = vperm.slane %v1283, %v1290
        %v1292 = vrot.slane %v1275, 4
        %v1293 = vsel %vm860, %v1292, %v1251
        %v1294 = vrot.slane %v1251, 4
        %v1295 = vsel %vm860, %v1275, %v1294
        %v1296 = vrot.slane %v1279, 4
        %v1297 = vsel %vm860, %v1296, %v1255
        %v1298 = vrot.slane %v1255, 4
        %v1299 = vsel %vm860, %v1279, %v1298
        %v1300 = vrot.slane %v1287, 4
        %v1301 = vsel %vm860, %v1300, %v1263
        %v1302 = vrot.slane %v1263, 4
        %v1303 = vsel %vm860, %v1287, %v1302
        %v1304 = vrot.slane %v1291, 4
        %v1305 = vsel %vm860, %v1304, %v1267
        %v1306 = vrot.slane %v1267, 4
        %v1307 = vsel %vm860, %v1291, %v1306
        %v1308 = vrot.slane %v651, 4
        %v1309 = vsel %vm860, %v1308, %v639
        %v1310 = vrot.slane %v639, 4
        %v1311 = vsel %vm860, %v651, %v1310
        %v1313 = vunpack.c.l.s4 1983009808
        %v1314 = vunpack.c.0.s8 %v1313
        %v1315 = vperm.slane %v1309, %v1314
        %v1317 = vunpack.c.l.s4 1983009808
        %v1318 = vunpack.c.0.s8 %v1317
        %v1319 = vperm.slane %v1311, %v1318
        %v1320 = vrot.slane %v657, 4
        %v1321 = vsel %vm860, %v1320, %v645
        %v1322 = vrot.slane %v645, 4
        %v1323 = vsel %vm860, %v657, %v1322
        %v1325 = vunpack.c.l.s4 1983009808
        %v1326 = vunpack.c.0.s8 %v1325
        %v1327 = vperm.slane %v1321, %v1326
        %v1329 = vunpack.c.l.s4 1983009808
        %v1330 = vunpack.c.0.s8 %v1329
        %v1331 = vperm.slane %v1323, %v1330
        %v1332 = vrot.slane %v675, 4
        %v1333 = vsel %vm860, %v1332, %v663
        %v1334 = vrot.slane %v663, 4
        %v1335 = vsel %vm860, %v675, %v1334
        %v1337 = vunpack.c.l.s4 1983009808
        %v1338 = vunpack.c.0.s8 %v1337
        %v1339 = vperm.slane %v1333, %v1338
        %v1341 = vunpack.c.l.s4 1983009808
        %v1342 = vunpack.c.0.s8 %v1341
        %v1343 = vperm.slane %v1335, %v1342
        %v1344 = vrot.slane %v681, 4
        %v1345 = vsel %vm860, %v1344, %v669
        %v1346 = vrot.slane %v669, 4
        %v1347 = vsel %vm860, %v681, %v1346
        %v1349 = vunpack.c.l.s4 1983009808
        %v1350 = vunpack.c.0.s8 %v1349
        %v1351 = vperm.slane %v1345, %v1350
        %v1353 = vunpack.c.l.s4 1983009808
        %v1354 = vunpack.c.0.s8 %v1353
        %v1355 = vperm.slane %v1347, %v1354
        %v1356 = vrot.slane %v1327, 4
        %v1357 = vsel %vm860, %v1356, %v1315
        %v1358 = vrot.slane %v1315, 4
        %v1359 = vsel %vm860, %v1327, %v1358
        %v1361 = vunpack.c.l.s4 1934713408
        %v1362 = vunpack.c.0.s8 %v1361
        %v1363 = vperm.slane %v1357, %v1362
        %v1365 = vunpack.c.l.s4 1934713408
        %v1366 = vunpack.c.0.s8 %v1365
        %v1367 = vperm.slane %v1359, %v1366
        %v1368 = vrot.slane %v1331, 4
        %v1369 = vsel %vm860, %v1368, %v1319
        %v1370 = vrot.slane %v1319, 4
        %v1371 = vsel %vm860, %v1331, %v1370
        %v1373 = vunpack.c.l.s4 1934713408
        %v1374 = vunpack.c.0.s8 %v1373
        %v1375 = vperm.slane %v1369, %v1374
        %v1377 = vunpack.c.l.s4 1934713408
        %v1378 = vunpack.c.0.s8 %v1377
        %v1379 = vperm.slane %v1371, %v1378
        %v1380 = vrot.slane %v1351, 4
        %v1381 = vsel %vm860, %v1380, %v1339
        %v1382 = vrot.slane %v1339, 4
        %v1383 = vsel %vm860, %v1351, %v1382
        %v1385 = vunpack.c.l.s4 1934713408
        %v1386 = vunpack.c.0.s8 %v1385
        %v1387 = vperm.slane %v1381, %v1386
        %v1389 = vunpack.c.l.s4 1934713408
        %v1390 = vunpack.c.0.s8 %v1389
        %v1391 = vperm.slane %v1383, %v1390
        %v1392 = vrot.slane %v1355, 4
        %v1393 = vsel %vm860, %v1392, %v1343
        %v1394 = vrot.slane %v1343, 4
        %v1395 = vsel %vm860, %v1355, %v1394
        %v1397 = vunpack.c.l.s4 1934713408
        %v1398 = vunpack.c.0.s8 %v1397
        %v1399 = vperm.slane %v1393, %v1398
        %v1401 = vunpack.c.l.s4 1934713408
        %v1402 = vunpack.c.0.s8 %v1401
        %v1403 = vperm.slane %v1395, %v1402
        %v1404 = vrot.slane %v1387, 4
        %v1405 = vsel %vm860, %v1404, %v1363
        %v1406 = vrot.slane %v1363, 4
        %v1407 = vsel %vm860, %v1387, %v1406
        %v1408 = vrot.slane %v1391, 4
        %v1409 = vsel %vm860, %v1408, %v1367
        %v1410 = vrot.slane %v1367, 4
        %v1411 = vsel %vm860, %v1391, %v1410
        %v1412 = vrot.slane %v1399, 4
        %v1413 = vsel %vm860, %v1412, %v1375
        %v1414 = vrot.slane %v1375, 4
        %v1415 = vsel %vm860, %v1399, %v1414
        %v1416 = vrot.slane %v1403, 4
        %v1417 = vsel %vm860, %v1416, %v1379
        %v1418 = vrot.slane %v1379, 4
        %v1419 = vsel %vm860, %v1403, %v1418
        %v1420 = vrot.slane %v699, 4
        %v1421 = vsel %vm860, %v1420, %v687
        %v1422 = vrot.slane %v687, 4
        %v1423 = vsel %vm860, %v699, %v1422
        %v1425 = vunpack.c.l.s4 1983009808
        %v1426 = vunpack.c.0.s8 %v1425
        %v1427 = vperm.slane %v1421, %v1426
        %v1429 = vunpack.c.l.s4 1983009808
        %v1430 = vunpack.c.0.s8 %v1429
        %v1431 = vperm.slane %v1423, %v1430
        %v1432 = vrot.slane %v705, 4
        %v1433 = vsel %vm860, %v1432, %v693
        %v1434 = vrot.slane %v693, 4
        %v1435 = vsel %vm860, %v705, %v1434
        %v1437 = vunpack.c.l.s4 1983009808
        %v1438 = vunpack.c.0.s8 %v1437
        %v1439 = vperm.slane %v1433, %v1438
        %v1441 = vunpack.c.l.s4 1983009808
        %v1442 = vunpack.c.0.s8 %v1441
        %v1443 = vperm.slane %v1435, %v1442
        %v1444 = vrot.slane %v723, 4
        %v1445 = vsel %vm860, %v1444, %v711
        %v1446 = vrot.slane %v711, 4
        %v1447 = vsel %vm860, %v723, %v1446
        %v1449 = vunpack.c.l.s4 1983009808
        %v1450 = vunpack.c.0.s8 %v1449
        %v1451 = vperm.slane %v1445, %v1450
        %v1453 = vunpack.c.l.s4 1983009808
        %v1454 = vunpack.c.0.s8 %v1453
        %v1455 = vperm.slane %v1447, %v1454
        %v1456 = vrot.slane %v729, 4
        %v1457 = vsel %vm860, %v1456, %v717
        %v1458 = vrot.slane %v717, 4
        %v1459 = vsel %vm860, %v729, %v1458
        %v1461 = vunpack.c.l.s4 1983009808
        %v1462 = vunpack.c.0.s8 %v1461
        %v1463 = vperm.slane %v1457, %v1462
        %v1465 = vunpack.c.l.s4 1983009808
        %v1466 = vunpack.c.0.s8 %v1465
        %v1467 = vperm.slane %v1459, %v1466
        %v1468 = vrot.slane %v1439, 4
        %v1469 = vsel %vm860, %v1468, %v1427
        %v1470 = vrot.slane %v1427, 4
        %v1471 = vsel %vm860, %v1439, %v1470
        %v1473 = vunpack.c.l.s4 1934713408
        %v1474 = vunpack.c.0.s8 %v1473
        %v1475 = vperm.slane %v1469, %v1474
        %v1477 = vunpack.c.l.s4 1934713408
        %v1478 = vunpack.c.0.s8 %v1477
        %v1479 = vperm.slane %v1471, %v1478
        %v1480 = vrot.slane %v1443, 4
        %v1481 = vsel %vm860, %v1480, %v1431
        %v1482 = vrot.slane %v1431, 4
        %v1483 = vsel %vm860, %v1443, %v1482
        %v1485 = vunpack.c.l.s4 1934713408
        %v1486 = vunpack.c.0.s8 %v1485
        %v1487 = vperm.slane %v1481, %v1486
        %v1489 = vunpack.c.l.s4 1934713408
        %v1490 = vunpack.c.0.s8 %v1489
        %v1491 = vperm.slane %v1483, %v1490
        %v1492 = vrot.slane %v1463, 4
        %v1493 = vsel %vm860, %v1492, %v1451
        %v1494 = vrot.slane %v1451, 4
        %v1495 = vsel %vm860, %v1463, %v1494
        %v1497 = vunpack.c.l.s4 1934713408
        %v1498 = vunpack.c.0.s8 %v1497
        %v1499 = vperm.slane %v1493, %v1498
        %v1501 = vunpack.c.l.s4 1934713408
        %v1502 = vunpack.c.0.s8 %v1501
        %v1503 = vperm.slane %v1495, %v1502
        %v1504 = vrot.slane %v1467, 4
        %v1505 = vsel %vm860, %v1504, %v1455
        %v1506 = vrot.slane %v1455, 4
        %v1507 = vsel %vm860, %v1467, %v1506
        %v1509 = vunpack.c.l.s4 1934713408
        %v1510 = vunpack.c.0.s8 %v1509
        %v1511 = vperm.slane %v1505, %v1510
        %v1513 = vunpack.c.l.s4 1934713408
        %v1514 = vunpack.c.0.s8 %v1513
        %v1515 = vperm.slane %v1507, %v1514
        %v1516 = vrot.slane %v1499, 4
        %v1517 = vsel %vm860, %v1516, %v1475
        %v1518 = vrot.slane %v1475, 4
        %v1519 = vsel %vm860, %v1499, %v1518
        %v1520 = vrot.slane %v1503, 4
        %v1521 = vsel %vm860, %v1520, %v1479
        %v1522 = vrot.slane %v1479, 4
        %v1523 = vsel %vm860, %v1503, %v1522
        %v1524 = vrot.slane %v1511, 4
        %v1525 = vsel %vm860, %v1524, %v1487
        %v1526 = vrot.slane %v1487, 4
        %v1527 = vsel %vm860, %v1511, %v1526
        %v1528 = vrot.slane %v1515, 4
        %v1529 = vsel %vm860, %v1528, %v1491
        %v1530 = vrot.slane %v1491, 4
        %v1531 = vsel %vm860, %v1515, %v1530
        %v1532 = vrot.slane %v654, 4
        %v1533 = vsel %vm860, %v1532, %v642
        %v1534 = vrot.slane %v642, 4
        %v1535 = vsel %vm860, %v654, %v1534
        %v1537 = vunpack.c.l.s4 1983009808
        %v1538 = vunpack.c.0.s8 %v1537
        %v1539 = vperm.slane %v1533, %v1538
        %v1541 = vunpack.c.l.s4 1983009808
        %v1542 = vunpack.c.0.s8 %v1541
        %v1543 = vperm.slane %v1535, %v1542
        %v1544 = vrot.slane %v660, 4
        %v1545 = vsel %vm860, %v1544, %v648
        %v1546 = vrot.slane %v648, 4
        %v1547 = vsel %vm860, %v660, %v1546
        %v1549 = vunpack.c.l.s4 1983009808
        %v1550 = vunpack.c.0.s8 %v1549
        %v1551 = vperm.slane %v1545, %v1550
        %v1553 = vunpack.c.l.s4 1983009808
        %v1554 = vunpack.c.0.s8 %v1553
        %v1555 = vperm.slane %v1547, %v1554
        %v1556 = vrot.slane %v678, 4
        %v1557 = vsel %vm860, %v1556, %v666
        %v1558 = vrot.slane %v666, 4
        %v1559 = vsel %vm860, %v678, %v1558
        %v1561 = vunpack.c.l.s4 1983009808
        %v1562 = vunpack.c.0.s8 %v1561
        %v1563 = vperm.slane %v1557, %v1562
        %v1565 = vunpack.c.l.s4 1983009808
        %v1566 = vunpack.c.0.s8 %v1565
        %v1567 = vperm.slane %v1559, %v1566
        %v1568 = vrot.slane %v684, 4
        %v1569 = vsel %vm860, %v1568, %v672
        %v1570 = vrot.slane %v672, 4
        %v1571 = vsel %vm860, %v684, %v1570
        %v1573 = vunpack.c.l.s4 1983009808
        %v1574 = vunpack.c.0.s8 %v1573
        %v1575 = vperm.slane %v1569, %v1574
        %v1577 = vunpack.c.l.s4 1983009808
        %v1578 = vunpack.c.0.s8 %v1577
        %v1579 = vperm.slane %v1571, %v1578
        %v1580 = vrot.slane %v1551, 4
        %v1581 = vsel %vm860, %v1580, %v1539
        %v1582 = vrot.slane %v1539, 4
        %v1583 = vsel %vm860, %v1551, %v1582
        %v1585 = vunpack.c.l.s4 1934713408
        %v1586 = vunpack.c.0.s8 %v1585
        %v1587 = vperm.slane %v1581, %v1586
        %v1589 = vunpack.c.l.s4 1934713408
        %v1590 = vunpack.c.0.s8 %v1589
        %v1591 = vperm.slane %v1583, %v1590
        %v1592 = vrot.slane %v1555, 4
        %v1593 = vsel %vm860, %v1592, %v1543
        %v1594 = vrot.slane %v1543, 4
        %v1595 = vsel %vm860, %v1555, %v1594
        %v1597 = vunpack.c.l.s4 1934713408
        %v1598 = vunpack.c.0.s8 %v1597
        %v1599 = vperm.slane %v1593, %v1598
        %v1601 = vunpack.c.l.s4 1934713408
        %v1602 = vunpack.c.0.s8 %v1601
        %v1603 = vperm.slane %v1595, %v1602
        %v1604 = vrot.slane %v1575, 4
        %v1605 = vsel %vm860, %v1604, %v1563
        %v1606 = vrot.slane %v1563, 4
        %v1607 = vsel %vm860, %v1575, %v1606
        %v1609 = vunpack.c.l.s4 1934713408
        %v1610 = vunpack.c.0.s8 %v1609
        %v1611 = vperm.slane %v1605, %v1610
        %v1613 = vunpack.c.l.s4 1934713408
        %v1614 = vunpack.c.0.s8 %v1613
        %v1615 = vperm.slane %v1607, %v1614
        %v1616 = vrot.slane %v1579, 4
        %v1617 = vsel %vm860, %v1616, %v1567
        %v1618 = vrot.slane %v1567, 4
        %v1619 = vsel %vm860, %v1579, %v1618
        %v1621 = vunpack.c.l.s4 1934713408
        %v1622 = vunpack.c.0.s8 %v1621
        %v1623 = vperm.slane %v1617, %v1622
        %v1625 = vunpack.c.l.s4 1934713408
        %v1626 = vunpack.c.0.s8 %v1625
        %v1627 = vperm.slane %v1619, %v1626
        %v1628 = vrot.slane %v1611, 4
        %v1629 = vsel %vm860, %v1628, %v1587
        %v1630 = vrot.slane %v1587, 4
        %v1631 = vsel %vm860, %v1611, %v1630
        %v1632 = vrot.slane %v1615, 4
        %v1633 = vsel %vm860, %v1632, %v1591
        %v1634 = vrot.slane %v1591, 4
        %v1635 = vsel %vm860, %v1615, %v1634
        %v1636 = vrot.slane %v1623, 4
        %v1637 = vsel %vm860, %v1636, %v1599
        %v1638 = vrot.slane %v1599, 4
        %v1639 = vsel %vm860, %v1623, %v1638
        %v1640 = vrot.slane %v1627, 4
        %v1641 = vsel %vm860, %v1640, %v1603
        %v1642 = vrot.slane %v1603, 4
        %v1643 = vsel %vm860, %v1627, %v1642
        %v1644 = vrot.slane %v702, 4
        %v1645 = vsel %vm860, %v1644, %v690
        %v1646 = vrot.slane %v690, 4
        %v1647 = vsel %vm860, %v702, %v1646
        %v1649 = vunpack.c.l.s4 1983009808
        %v1650 = vunpack.c.0.s8 %v1649
        %v1651 = vperm.slane %v1645, %v1650
        %v1653 = vunpack.c.l.s4 1983009808
        %v1654 = vunpack.c.0.s8 %v1653
        %v1655 = vperm.slane %v1647, %v1654
        %v1656 = vrot.slane %v708, 4
        %v1657 = vsel %vm860, %v1656, %v696
        %v1658 = vrot.slane %v696, 4
        %v1659 = vsel %vm860, %v708, %v1658
        %v1661 = vunpack.c.l.s4 1983009808
        %v1662 = vunpack.c.0.s8 %v1661
        %v1663 = vperm.slane %v1657, %v1662
        %v1665 = vunpack.c.l.s4 1983009808
        %v1666 = vunpack.c.0.s8 %v1665
        %v1667 = vperm.slane %v1659, %v1666
        %v1668 = vrot.slane %v726, 4
        %v1669 = vsel %vm860, %v1668, %v714
        %v1670 = vrot.slane %v714, 4
        %v1671 = vsel %vm860, %v726, %v1670
        %v1673 = vunpack.c.l.s4 1983009808
        %v1674 = vunpack.c.0.s8 %v1673
        %v1675 = vperm.slane %v1669, %v1674
        %v1677 = vunpack.c.l.s4 1983009808
        %v1678 = vunpack.c.0.s8 %v1677
        %v1679 = vperm.slane %v1671, %v1678
        %v1680 = vrot.slane %v732, 4
        %v1681 = vsel %vm860, %v1680, %v720
        %v1682 = vrot.slane %v720, 4
        %v1683 = vsel %vm860, %v732, %v1682
        %v1685 = vunpack.c.l.s4 1983009808
        %v1686 = vunpack.c.0.s8 %v1685
        %v1687 = vperm.slane %v1681, %v1686
        %v1689 = vunpack.c.l.s4 1983009808
        %v1690 = vunpack.c.0.s8 %v1689
        %v1691 = vperm.slane %v1683, %v1690
        %v1692 = vrot.slane %v1663, 4
        %v1693 = vsel %vm860, %v1692, %v1651
        %v1694 = vrot.slane %v1651, 4
        %v1695 = vsel %vm860, %v1663, %v1694
        %v1697 = vunpack.c.l.s4 1934713408
        %v1698 = vunpack.c.0.s8 %v1697
        %v1699 = vperm.slane %v1693, %v1698
        %v1701 = vunpack.c.l.s4 1934713408
        %v1702 = vunpack.c.0.s8 %v1701
        %v1703 = vperm.slane %v1695, %v1702
        %v1704 = vrot.slane %v1667, 4
        %v1705 = vsel %vm860, %v1704, %v1655
        %v1706 = vrot.slane %v1655, 4
        %v1707 = vsel %vm860, %v1667, %v1706
        %v1709 = vunpack.c.l.s4 1934713408
        %v1710 = vunpack.c.0.s8 %v1709
        %v1711 = vperm.slane %v1705, %v1710
        %v1713 = vunpack.c.l.s4 1934713408
        %v1714 = vunpack.c.0.s8 %v1713
        %v1715 = vperm.slane %v1707, %v1714
        %v1716 = vrot.slane %v1687, 4
        %v1717 = vsel %vm860, %v1716, %v1675
        %v1718 = vrot.slane %v1675, 4
        %v1719 = vsel %vm860, %v1687, %v1718
        %v1721 = vunpack.c.l.s4 1934713408
        %v1722 = vunpack.c.0.s8 %v1721
        %v1723 = vperm.slane %v1717, %v1722
        %v1725 = vunpack.c.l.s4 1934713408
        %v1726 = vunpack.c.0.s8 %v1725
        %v1727 = vperm.slane %v1719, %v1726
        %v1728 = vrot.slane %v1691, 4
        %v1729 = vsel %vm860, %v1728, %v1679
        %v1730 = vrot.slane %v1679, 4
        %v1731 = vsel %vm860, %v1691, %v1730
        %v1733 = vunpack.c.l.s4 1934713408
        %v1734 = vunpack.c.0.s8 %v1733
        %v1735 = vperm.slane %v1729, %v1734
        %v1737 = vunpack.c.l.s4 1934713408
        %v1738 = vunpack.c.0.s8 %v1737
        %v1739 = vperm.slane %v1731, %v1738
        %v1740 = vrot.slane %v1723, 4
        %v1741 = vsel %vm860, %v1740, %v1699
        %v1742 = vrot.slane %v1699, 4
        %v1743 = vsel %vm860, %v1723, %v1742
        %v1744 = vrot.slane %v1727, 4
        %v1745 = vsel %vm860, %v1744, %v1703
        %v1746 = vrot.slane %v1703, 4
        %v1747 = vsel %vm860, %v1727, %v1746
        %v1748 = vrot.slane %v1735, 4
        %v1749 = vsel %vm860, %v1748, %v1711
        %v1750 = vrot.slane %v1711, 4
        %v1751 = vsel %vm860, %v1735, %v1750
        %v1752 = vrot.slane %v1739, 4
        %v1753 = vsel %vm860, %v1752, %v1715
        %v1754 = vrot.slane %v1715, 4
        %v1755 = vsel %vm860, %v1739, %v1754
        %v1756 = vpack.c.bf16 %v764, %v764
        %v1757 = vpack.c.bf16 %v767, %v767
        %v1758 = vpack.c.bf16 %v770, %v770
        %v1759 = vpack.c.bf16 %v773, %v773
        %v1760 = vpack.c.bf16 %v776, %v776
        %v1761 = vpack.c.bf16 %v779, %v779
        %v1762 = vpack.c.bf16 %v782, %v782
        %v1763 = vpack.c.bf16 %v785, %v785
        %v1764 = vpack.c.bf16 %v788, %v788
        %v1765 = vpack.c.bf16 %v791, %v791
        %v1766 = vpack.c.bf16 %v794, %v794
        %v1767 = vpack.c.bf16 %v797, %v797
        %v1768 = vpack.c.bf16 %v800, %v800
        %v1769 = vpack.c.bf16 %v803, %v803
        %v1770 = vpack.c.bf16 %v806, %v806
        %v1771 = vpack.c.bf16 %v809, %v809
        %v1772 = vpack.c.bf16 %v812, %v812
        %v1773 = vpack.c.bf16 %v815, %v815
        %v1774 = vpack.c.bf16 %v818, %v818
        %v1775 = vpack.c.bf16 %v821, %v821
        %v1776 = vpack.c.bf16 %v824, %v824
        %v1777 = vpack.c.bf16 %v827, %v827
        %v1778 = vpack.c.bf16 %v830, %v830
        %v1779 = vpack.c.bf16 %v833, %v833
        %v1780 = vpack.c.bf16 %v836, %v836
        %v1781 = vpack.c.bf16 %v839, %v839
        %v1782 = vpack.c.bf16 %v842, %v842
        %v1783 = vpack.c.bf16 %v845, %v845
        %v1784 = vpack.c.bf16 %v848, %v848
        %v1785 = vpack.c.bf16 %v851, %v851
        %v1786 = vpack.c.bf16 %v854, %v854
        %v1787 = vpack.c.bf16 %v857, %v857
        %v1788 = vrot.slane %v1764, 4
        %vm1789 = vcmask 1047556
        %v1790 = vsel %vm1789, %v1788, %v1756
        %v1792 = vunpack.c.l.s4 1983009808
        %v1793 = vunpack.c.0.s8 %v1792
        %v1794 = vperm.slane %v1790, %v1793
        %v1795 = vrot.slane %v1768, 4
        %v1796 = vsel %vm1789, %v1795, %v1760
        %v1798 = vunpack.c.l.s4 1983009808
        %v1799 = vunpack.c.0.s8 %v1798
        %v1800 = vperm.slane %v1796, %v1799
        %v1801 = vrot.slane %v1800, 4
        %v1802 = vsel %vm1789, %v1801, %v1794
        %v1803 = vrot.slane %v1794, 4
        %v1804 = vsel %vm1789, %v1800, %v1803
        %v1806 = vunpack.c.l.s4 1934713408
        %v1807 = vunpack.c.0.s8 %v1806
        %v1808 = vperm.slane %v1802, %v1807
        %v1810 = vunpack.c.l.s4 1934713408
        %v1811 = vunpack.c.0.s8 %v1810
        %v1812 = vperm.slane %v1804, %v1811
        %v1813 = vrot.slane %v1808, 4
        %v1814 = vsel %vm1789, 0, %v1813
        %v1815 = vrot.slane %v1812, 4
        %v1816 = vsel %vm1789, 0, %v1815
        %v1817 = vrot.slane %v1766, 4
        %v1818 = vsel %vm1789, %v1817, %v1758
        %v1820 = vunpack.c.l.s4 1983009808
        %v1821 = vunpack.c.0.s8 %v1820
        %v1822 = vperm.slane %v1818, %v1821
        %v1823 = vrot.slane %v1770, 4
        %v1824 = vsel %vm1789, %v1823, %v1762
        %v1826 = vunpack.c.l.s4 1983009808
        %v1827 = vunpack.c.0.s8 %v1826
        %v1828 = vperm.slane %v1824, %v1827
        %v1829 = vrot.slane %v1828, 4
        %v1830 = vsel %vm1789, %v1829, %v1822
        %v1831 = vrot.slane %v1822, 4
        %v1832 = vsel %vm1789, %v1828, %v1831
        %v1834 = vunpack.c.l.s4 1934713408
        %v1835 = vunpack.c.0.s8 %v1834
        %v1836 = vperm.slane %v1830, %v1835
        %v1838 = vunpack.c.l.s4 1934713408
        %v1839 = vunpack.c.0.s8 %v1838
        %v1840 = vperm.slane %v1832, %v1839
        %v1841 = vrot.slane %v1836, 4
        %v1842 = vsel %vm1789, 0, %v1841
        %v1843 = vrot.slane %v1840, 4
        %v1844 = vsel %vm1789, 0, %v1843
        %v1845 = vrot.slane %v1780, 4
        %v1846 = vsel %vm1789, %v1845, %v1772
        %v1848 = vunpack.c.l.s4 1983009808
        %v1849 = vunpack.c.0.s8 %v1848
        %v1850 = vperm.slane %v1846, %v1849
        %v1851 = vrot.slane %v1784, 4
        %v1852 = vsel %vm1789, %v1851, %v1776
        %v1854 = vunpack.c.l.s4 1983009808
        %v1855 = vunpack.c.0.s8 %v1854
        %v1856 = vperm.slane %v1852, %v1855
        %v1857 = vrot.slane %v1856, 4
        %v1858 = vsel %vm1789, %v1857, %v1850
        %v1859 = vrot.slane %v1850, 4
        %v1860 = vsel %vm1789, %v1856, %v1859
        %v1862 = vunpack.c.l.s4 1934713408
        %v1863 = vunpack.c.0.s8 %v1862
        %v1864 = vperm.slane %v1858, %v1863
        %v1866 = vunpack.c.l.s4 1934713408
        %v1867 = vunpack.c.0.s8 %v1866
        %v1868 = vperm.slane %v1860, %v1867
        %v1869 = vrot.slane %v1864, 4
        %v1870 = vsel %vm1789, 0, %v1869
        %v1871 = vrot.slane %v1868, 4
        %v1872 = vsel %vm1789, 0, %v1871
        %v1873 = vrot.slane %v1782, 4
        %v1874 = vsel %vm1789, %v1873, %v1774
        %v1876 = vunpack.c.l.s4 1983009808
        %v1877 = vunpack.c.0.s8 %v1876
        %v1878 = vperm.slane %v1874, %v1877
        %v1879 = vrot.slane %v1786, 4
        %v1880 = vsel %vm1789, %v1879, %v1778
        %v1882 = vunpack.c.l.s4 1983009808
        %v1883 = vunpack.c.0.s8 %v1882
        %v1884 = vperm.slane %v1880, %v1883
        %v1885 = vrot.slane %v1884, 4
        %v1886 = vsel %vm1789, %v1885, %v1878
        %v1887 = vrot.slane %v1878, 4
        %v1888 = vsel %vm1789, %v1884, %v1887
        %v1890 = vunpack.c.l.s4 1934713408
        %v1891 = vunpack.c.0.s8 %v1890
        %v1892 = vperm.slane %v1886, %v1891
        %v1894 = vunpack.c.l.s4 1934713408
        %v1895 = vunpack.c.0.s8 %v1894
        %v1896 = vperm.slane %v1888, %v1895
        %v1897 = vrot.slane %v1892, 4
        %v1898 = vsel %vm1789, 0, %v1897
        %v1899 = vrot.slane %v1896, 4
        %v1900 = vsel %vm1789, 0, %v1899
        %v1901 = vrot.slane %v1765, 4
        %v1902 = vsel %vm1789, %v1901, %v1757
        %v1904 = vunpack.c.l.s4 1983009808
        %v1905 = vunpack.c.0.s8 %v1904
        %v1906 = vperm.slane %v1902, %v1905
        %v1907 = vrot.slane %v1769, 4
        %v1908 = vsel %vm1789, %v1907, %v1761
        %v1910 = vunpack.c.l.s4 1983009808
        %v1911 = vunpack.c.0.s8 %v1910
        %v1912 = vperm.slane %v1908, %v1911
        %v1913 = vrot.slane %v1912, 4
        %v1914 = vsel %vm1789, %v1913, %v1906
        %v1915 = vrot.slane %v1906, 4
        %v1916 = vsel %vm1789, %v1912, %v1915
        %v1918 = vunpack.c.l.s4 1934713408
        %v1919 = vunpack.c.0.s8 %v1918
        %v1920 = vperm.slane %v1914, %v1919
        %v1922 = vunpack.c.l.s4 1934713408
        %v1923 = vunpack.c.0.s8 %v1922
        %v1924 = vperm.slane %v1916, %v1923
        %v1925 = vrot.slane %v1920, 4
        %v1926 = vsel %vm1789, 0, %v1925
        %v1927 = vrot.slane %v1924, 4
        %v1928 = vsel %vm1789, 0, %v1927
        %v1929 = vrot.slane %v1767, 4
        %v1930 = vsel %vm1789, %v1929, %v1759
        %v1932 = vunpack.c.l.s4 1983009808
        %v1933 = vunpack.c.0.s8 %v1932
        %v1934 = vperm.slane %v1930, %v1933
        %v1935 = vrot.slane %v1771, 4
        %v1936 = vsel %vm1789, %v1935, %v1763
        %v1938 = vunpack.c.l.s4 1983009808
        %v1939 = vunpack.c.0.s8 %v1938
        %v1940 = vperm.slane %v1936, %v1939
        %v1941 = vrot.slane %v1940, 4
        %v1942 = vsel %vm1789, %v1941, %v1934
        %v1943 = vrot.slane %v1934, 4
        %v1944 = vsel %vm1789, %v1940, %v1943
        %v1946 = vunpack.c.l.s4 1934713408
        %v1947 = vunpack.c.0.s8 %v1946
        %v1948 = vperm.slane %v1942, %v1947
        %v1950 = vunpack.c.l.s4 1934713408
        %v1951 = vunpack.c.0.s8 %v1950
        %v1952 = vperm.slane %v1944, %v1951
        %v1953 = vrot.slane %v1948, 4
        %v1954 = vsel %vm1789, 0, %v1953
        %v1955 = vrot.slane %v1952, 4
        %v1956 = vsel %vm1789, 0, %v1955
        %v1957 = vrot.slane %v1781, 4
        %v1958 = vsel %vm1789, %v1957, %v1773
        %v1960 = vunpack.c.l.s4 1983009808
        %v1961 = vunpack.c.0.s8 %v1960
        %v1962 = vperm.slane %v1958, %v1961
        %v1963 = vrot.slane %v1785, 4
        %v1964 = vsel %vm1789, %v1963, %v1777
        %v1966 = vunpack.c.l.s4 1983009808
        %v1967 = vunpack.c.0.s8 %v1966
        %v1968 = vperm.slane %v1964, %v1967
        %v1969 = vrot.slane %v1968, 4
        %v1970 = vsel %vm1789, %v1969, %v1962
        %v1971 = vrot.slane %v1962, 4
        %v1972 = vsel %vm1789, %v1968, %v1971
        %v1974 = vunpack.c.l.s4 1934713408
        %v1975 = vunpack.c.0.s8 %v1974
        %v1976 = vperm.slane %v1970, %v1975
        %v1978 = vunpack.c.l.s4 1934713408
        %v1979 = vunpack.c.0.s8 %v1978
        %v1980 = vperm.slane %v1972, %v1979
        %v1981 = vrot.slane %v1976, 4
        %v1982 = vsel %vm1789, 0, %v1981
        %v1983 = vrot.slane %v1980, 4
        %v1984 = vsel %vm1789, 0, %v1983
        %v1985 = vrot.slane %v1783, 4
        %v1986 = vsel %vm1789, %v1985, %v1775
        %v1988 = vunpack.c.l.s4 1983009808
        %v1989 = vunpack.c.0.s8 %v1988
        %v1990 = vperm.slane %v1986, %v1989
        %v1991 = vrot.slane %v1787, 4
        %v1992 = vsel %vm1789, %v1991, %v1779
        %v1994 = vunpack.c.l.s4 1983009808
        %v1995 = vunpack.c.0.s8 %v1994
        %v1996 = vperm.slane %v1992, %v1995
        %v1997 = vrot.slane %v1996, 4
        %v1998 = vsel %vm1789, %v1997, %v1990
        %v1999 = vrot.slane %v1990, 4
        %v2000 = vsel %vm1789, %v1996, %v1999
        %v2002 = vunpack.c.l.s4 1934713408
        %v2003 = vunpack.c.0.s8 %v2002
        %v2004 = vperm.slane %v1998, %v2003
        %v2006 = vunpack.c.l.s4 1934713408
        %v2007 = vunpack.c.0.s8 %v2006
        %v2008 = vperm.slane %v2000, %v2007
        %v2009 = vrot.slane %v2004, 4
        %v2010 = vsel %vm1789, 0, %v2009
        %v2011 = vrot.slane %v2008, 4
        %v2012 = vsel %vm1789, 0, %v2011
        %v2015 = vpack.i.b16 %v1836, %v1808
        %v2016 = vshrl.u32 %v1808, 16
        %v2017 = vshrl.u32 %v1836, 16
        %v2018 = vpack.i.b16 %v2017, %v2016
        %v2021 = vpack.i.b16 %v1842, %v1814
        %v2022 = vshrl.u32 %v1814, 16
        %v2023 = vshrl.u32 %v1842, 16
        %v2024 = vpack.i.b16 %v2023, %v2022
        %v2027 = vpack.i.b16 %v1840, %v1812
        %v2028 = vshrl.u32 %v1812, 16
        %v2029 = vshrl.u32 %v1840, 16
        %v2030 = vpack.i.b16 %v2029, %v2028
        %v2033 = vpack.i.b16 %v1844, %v1816
        %v2034 = vshrl.u32 %v1816, 16
        %v2035 = vshrl.u32 %v1844, 16
        %v2036 = vpack.i.b16 %v2035, %v2034
        %v2039 = vpack.i.b16 %v1948, %v1920
        %v2040 = vshrl.u32 %v1920, 16
        %v2041 = vshrl.u32 %v1948, 16
        %v2042 = vpack.i.b16 %v2041, %v2040
        %v2045 = vpack.i.b16 %v1954, %v1926
        %v2046 = vshrl.u32 %v1926, 16
        %v2047 = vshrl.u32 %v1954, 16
        %v2048 = vpack.i.b16 %v2047, %v2046
        %v2051 = vpack.i.b16 %v1952, %v1924
        %v2052 = vshrl.u32 %v1924, 16
        %v2053 = vshrl.u32 %v1952, 16
        %v2054 = vpack.i.b16 %v2053, %v2052
        %v2057 = vpack.i.b16 %v1956, %v1928
        %v2058 = vshrl.u32 %v1928, 16
        %v2059 = vshrl.u32 %v1956, 16
        %v2060 = vpack.i.b16 %v2059, %v2058
        %v2063 = vpack.i.b16 %v1892, %v1864
        %v2064 = vshrl.u32 %v1864, 16
        %v2065 = vshrl.u32 %v1892, 16
        %v2066 = vpack.i.b16 %v2065, %v2064
        %v2069 = vpack.i.b16 %v1898, %v1870
        %v2070 = vshrl.u32 %v1870, 16
        %v2071 = vshrl.u32 %v1898, 16
        %v2072 = vpack.i.b16 %v2071, %v2070
        %v2075 = vpack.i.b16 %v1896, %v1868
        %v2076 = vshrl.u32 %v1868, 16
        %v2077 = vshrl.u32 %v1896, 16
        %v2078 = vpack.i.b16 %v2077, %v2076
        %v2081 = vpack.i.b16 %v1900, %v1872
        %v2082 = vshrl.u32 %v1872, 16
        %v2083 = vshrl.u32 %v1900, 16
        %v2084 = vpack.i.b16 %v2083, %v2082
        %v2087 = vpack.i.b16 %v2004, %v1976
        %v2088 = vshrl.u32 %v1976, 16
        %v2089 = vshrl.u32 %v2004, 16
        %v2090 = vpack.i.b16 %v2089, %v2088
        %v2093 = vpack.i.b16 %v2010, %v1982
        %v2094 = vshrl.u32 %v1982, 16
        %v2095 = vshrl.u32 %v2010, 16
        %v2096 = vpack.i.b16 %v2095, %v2094
        %v2099 = vpack.i.b16 %v2008, %v1980
        %v2100 = vshrl.u32 %v1980, 16
        %v2101 = vshrl.u32 %v2008, 16
        %v2102 = vpack.i.b16 %v2101, %v2100
        %v2105 = vpack.i.b16 %v2012, %v1984
        %v2106 = vshrl.u32 %v1984, 16
        %v2107 = vshrl.u32 %v2012, 16
        %v2108 = vpack.i.b16 %v2107, %v2106
        %vm2109 = vcmask 64512
        %v2111 = vsel %vm2109, %v514, 0
        %v2114 = vsel %vm2109, %v517, 0
        %v2117 = vsel %vm2109, %v639, 0
        %v2120 = vsel %vm2109, %v642, 0
        %2122 = vmatpush.xpose.msra.mxu0 0.0
        %2123 = vmatpush.xpose.msra.mxu0 0.0
        %2124 = vmatpush.xpose.msra.mxu0 0.0
        %2125 = vmatpush.xpose.msra.mxu0 0.0
        %2126 = vmatpush.xpose.msra.mxu0 0.0
        %2127 = vmatpush.xpose.msra.mxu0 0.0
        %2128 = vmatpush.xpose.msra.mxu0 0.0
        %2129 = vmatpush.xpose.msra.mxu0 0.0
        %2130 = vmatpush.xpose.msra.mxu0 0.0
        %2131 = vmatpush.xpose.msra.mxu0 0.0
        %2132 = vmatpush.xpose.msra.mxu0 0.0
        %2133 = vmatpush.xpose.msra.mxu0 0.0
        %2134 = vmatpush.xpose.msra.mxu0 0.0
        %2135 = vmatpush.xpose.msra.mxu0 0.0
        %2136 = vmatpush.xpose.msra.mxu0 %v2120
        %2137 = vmatpush.xpose.msra.mxu0 %v2117
        %2138 = vmatmul.f32.gmra.mxu0 %v2111
        %v2139 = vpop.f32.mrf.mxu0
        %v2140 = vadd.f32 0.0, %v2139
        %2141 = vmatmul.f32.gmra.mxu0 %v2114
        %v2142 = vpop.f32.mrf.mxu0
        %v2143 = vadd.f32 0.0, %v2142
        %2144 = vdwg.mxu0
        %v2146 = vsel %vm2109, %v520, 0
        %v2149 = vsel %vm2109, %v523, 0
        %v2152 = vsel %vm2109, %v645, 0
        %v2155 = vsel %vm2109, %v648, 0
        %2157 = vmatpush.xpose.msra.mxu0 0.0
        %2158 = vmatpush.xpose.msra.mxu0 0.0
        %2159 = vmatpush.xpose.msra.mxu0 0.0
        %2160 = vmatpush.xpose.msra.mxu0 0.0
        %2161 = vmatpush.xpose.msra.mxu0 0.0
        %2162 = vmatpush.xpose.msra.mxu0 0.0
        %2163 = vmatpush.xpose.msra.mxu0 0.0
        %2164 = vmatpush.xpose.msra.mxu0 0.0
        %2165 = vmatpush.xpose.msra.mxu0 0.0
        %2166 = vmatpush.xpose.msra.mxu0 0.0
        %2167 = vmatpush.xpose.msra.mxu0 0.0
        %2168 = vmatpush.xpose.msra.mxu0 0.0
        %2169 = vmatpush.xpose.msra.mxu0 0.0
        %2170 = vmatpush.xpose.msra.mxu0 0.0
        %2171 = vmatpush.xpose.msra.mxu0 %v2155
        %2172 = vmatpush.xpose.msra.mxu0 %v2152
        %2173 = vmatmul.f32.gmra.mxu0 %v2146
        %v2174 = vpop.f32.mrf.mxu0
        %v2175 = vadd.f32 0.0, %v2174
        %2176 = vmatmul.f32.gmra.mxu0 %v2149
        %v2177 = vpop.f32.mrf.mxu0
        %v2178 = vadd.f32 0.0, %v2177
        %2179 = vdwg.mxu0
        %v2181 = vsel %vm2109, %v526, 0
        %v2184 = vsel %vm2109, %v529, 0
        %v2187 = vsel %vm2109, %v651, 0
        %v2190 = vsel %vm2109, %v654, 0
        %2192 = vmatpush.xpose.msra.mxu0 0.0
        %2193 = vmatpush.xpose.msra.mxu0 0.0
        %2194 = vmatpush.xpose.msra.mxu0 0.0
        %2195 = vmatpush.xpose.msra.mxu0 0.0
        %2196 = vmatpush.xpose.msra.mxu0 0.0
        %2197 = vmatpush.xpose.msra.mxu0 0.0
        %2198 = vmatpush.xpose.msra.mxu0 0.0
        %2199 = vmatpush.xpose.msra.mxu0 0.0
        %2200 = vmatpush.xpose.msra.mxu0 0.0
        %2201 = vmatpush.xpose.msra.mxu0 0.0
        %2202 = vmatpush.xpose.msra.mxu0 0.0
        %2203 = vmatpush.xpose.msra.mxu0 0.0
        %2204 = vmatpush.xpose.msra.mxu0 0.0
        %2205 = vmatpush.xpose.msra.mxu0 0.0
        %2206 = vmatpush.xpose.msra.mxu0 %v2190
        %2207 = vmatpush.xpose.msra.mxu0 %v2187
        %2208 = vmatmul.f32.gmra.mxu0 %v2181
        %v2209 = vpop.f32.mrf.mxu0
        %v2210 = vadd.f32 0.0, %v2209
        %2211 = vmatmul.f32.gmra.mxu0 %v2184
        %v2212 = vpop.f32.mrf.mxu0
        %v2213 = vadd.f32 0.0, %v2212
        %2214 = vdwg.mxu0
        %v2216 = vsel %vm2109, %v532, 0
        %v2219 = vsel %vm2109, %v535, 0
        %v2222 = vsel %vm2109, %v657, 0
        %v2225 = vsel %vm2109, %v660, 0
        %2227 = vmatpush.xpose.msra.mxu0 0.0
        %2228 = vmatpush.xpose.msra.mxu0 0.0
        %2229 = vmatpush.xpose.msra.mxu0 0.0
        %2230 = vmatpush.xpose.msra.mxu0 0.0
        %2231 = vmatpush.xpose.msra.mxu0 0.0
        %2232 = vmatpush.xpose.msra.mxu0 0.0
        %2233 = vmatpush.xpose.msra.mxu0 0.0
        %2234 = vmatpush.xpose.msra.mxu0 0.0
        %2235 = vmatpush.xpose.msra.mxu0 0.0
        %2236 = vmatpush.xpose.msra.mxu0 0.0
        %2237 = vmatpush.xpose.msra.mxu0 0.0
        %2238 = vmatpush.xpose.msra.mxu0 0.0
        %2239 = vmatpush.xpose.msra.mxu0 0.0
        %2240 = vmatpush.xpose.msra.mxu0 0.0
        %2241 = vmatpush.xpose.msra.mxu0 %v2225
        %2242 = vmatpush.xpose.msra.mxu0 %v2222
        %2243 = vmatmul.f32.gmra.mxu0 %v2216
        %v2244 = vpop.f32.mrf.mxu0
        %v2245 = vadd.f32 0.0, %v2244
        %2246 = vmatmul.f32.gmra.mxu0 %v2219
        %v2247 = vpop.f32.mrf.mxu0
        %v2248 = vadd.f32 0.0, %v2247
        %2249 = vdwg.mxu0
        %v2251 = vsel %vm2109, %v538, 0
        %v2254 = vsel %vm2109, %v541, 0
        %v2257 = vsel %vm2109, %v663, 0
        %v2260 = vsel %vm2109, %v666, 0
        %2262 = vmatpush.xpose.msra.mxu0 0.0
        %2263 = vmatpush.xpose.msra.mxu0 0.0
        %2264 = vmatpush.xpose.msra.mxu0 0.0
        %2265 = vmatpush.xpose.msra.mxu0 0.0
        %2266 = vmatpush.xpose.msra.mxu0 0.0
        %2267 = vmatpush.xpose.msra.mxu0 0.0
        %2268 = vmatpush.xpose.msra.mxu0 0.0
        %2269 = vmatpush.xpose.msra.mxu0 0.0
        %2270 = vmatpush.xpose.msra.mxu0 0.0
        %2271 = vmatpush.xpose.msra.mxu0 0.0
        %2272 = vmatpush.xpose.msra.mxu0 0.0
        %2273 = vmatpush.xpose.msra.mxu0 0.0
        %2274 = vmatpush.xpose.msra.mxu0 0.0
        %2275 = vmatpush.xpose.msra.mxu0 0.0
        %2276 = vmatpush.xpose.msra.mxu0 %v2260
        %2277 = vmatpush.xpose.msra.mxu0 %v2257
        %2278 = vmatmul.f32.gmra.mxu0 %v2251
        %v2279 = vpop.f32.mrf.mxu0
        %v2280 = vadd.f32 0.0, %v2279
        %2281 = vmatmul.f32.gmra.mxu0 %v2254
        %v2282 = vpop.f32.mrf.mxu0
        %v2283 = vadd.f32 0.0, %v2282
        %2284 = vdwg.mxu0
        %v2286 = vsel %vm2109, %v544, 0
        %v2289 = vsel %vm2109, %v547, 0
        %v2292 = vsel %vm2109, %v669, 0
        %v2295 = vsel %vm2109, %v672, 0
        %2297 = vmatpush.xpose.msra.mxu0 0.0
        %2298 = vmatpush.xpose.msra.mxu0 0.0
        %2299 = vmatpush.xpose.msra.mxu0 0.0
        %2300 = vmatpush.xpose.msra.mxu0 0.0
        %2301 = vmatpush.xpose.msra.mxu0 0.0
        %2302 = vmatpush.xpose.msra.mxu0 0.0
        %2303 = vmatpush.xpose.msra.mxu0 0.0
        %2304 = vmatpush.xpose.msra.mxu0 0.0
        %2305 = vmatpush.xpose.msra.mxu0 0.0
        %2306 = vmatpush.xpose.msra.mxu0 0.0
        %2307 = vmatpush.xpose.msra.mxu0 0.0
        %2308 = vmatpush.xpose.msra.mxu0 0.0
        %2309 = vmatpush.xpose.msra.mxu0 0.0
        %2310 = vmatpush.xpose.msra.mxu0 0.0
        %2311 = vmatpush.xpose.msra.mxu0 %v2295
        %2312 = vmatpush.xpose.msra.mxu0 %v2292
        %2313 = vmatmul.f32.gmra.mxu0 %v2286
        %v2314 = vpop.f32.mrf.mxu0
        %v2315 = vadd.f32 0.0, %v2314
        %2316 = vmatmul.f32.gmra.mxu0 %v2289
        %v2317 = vpop.f32.mrf.mxu0
        %v2318 = vadd.f32 0.0, %v2317
        %2319 = vdwg.mxu0
        %v2321 = vsel %vm2109, %v550, 0
        %v2324 = vsel %vm2109, %v553, 0
        %v2327 = vsel %vm2109, %v675, 0
        %v2330 = vsel %vm2109, %v678, 0
        %2332 = vmatpush.xpose.msra.mxu0 0.0
        %2333 = vmatpush.xpose.msra.mxu0 0.0
        %2334 = vmatpush.xpose.msra.mxu0 0.0
        %2335 = vmatpush.xpose.msra.mxu0 0.0
        %2336 = vmatpush.xpose.msra.mxu0 0.0
        %2337 = vmatpush.xpose.msra.mxu0 0.0
        %2338 = vmatpush.xpose.msra.mxu0 0.0
        %2339 = vmatpush.xpose.msra.mxu0 0.0
        %2340 = vmatpush.xpose.msra.mxu0 0.0
        %2341 = vmatpush.xpose.msra.mxu0 0.0
        %2342 = vmatpush.xpose.msra.mxu0 0.0
        %2343 = vmatpush.xpose.msra.mxu0 0.0
        %2344 = vmatpush.xpose.msra.mxu0 0.0
        %2345 = vmatpush.xpose.msra.mxu0 0.0
        %2346 = vmatpush.xpose.msra.mxu0 %v2330
        %2347 = vmatpush.xpose.msra.mxu0 %v2327
        %2348 = vmatmul.f32.gmra.mxu0 %v2321
        %v2349 = vpop.f32.mrf.mxu0
        %v2350 = vadd.f32 0.0, %v2349
        %2351 = vmatmul.f32.gmra.mxu0 %v2324
        %v2352 = vpop.f32.mrf.mxu0
        %v2353 = vadd.f32 0.0, %v2352
        %2354 = vdwg.mxu0
        %v2356 = vsel %vm2109, %v556, 0
        %v2359 = vsel %vm2109, %v559, 0
        %v2362 = vsel %vm2109, %v681, 0
        %v2365 = vsel %vm2109, %v684, 0
        %2367 = vmatpush.xpose.msra.mxu0 0.0
        %2368 = vmatpush.xpose.msra.mxu0 0.0
        %2369 = vmatpush.xpose.msra.mxu0 0.0
        %2370 = vmatpush.xpose.msra.mxu0 0.0
        %2371 = vmatpush.xpose.msra.mxu0 0.0
        %2372 = vmatpush.xpose.msra.mxu0 0.0
        %2373 = vmatpush.xpose.msra.mxu0 0.0
        %2374 = vmatpush.xpose.msra.mxu0 0.0
        %2375 = vmatpush.xpose.msra.mxu0 0.0
        %2376 = vmatpush.xpose.msra.mxu0 0.0
        %2377 = vmatpush.xpose.msra.mxu0 0.0
        %2378 = vmatpush.xpose.msra.mxu0 0.0
        %2379 = vmatpush.xpose.msra.mxu0 0.0
        %2380 = vmatpush.xpose.msra.mxu0 0.0
        %2381 = vmatpush.xpose.msra.mxu0 %v2365
        %2382 = vmatpush.xpose.msra.mxu0 %v2362
        %2383 = vmatmul.f32.gmra.mxu0 %v2356
        %v2384 = vpop.f32.mrf.mxu0
        %v2385 = vadd.f32 0.0, %v2384
        %2386 = vmatmul.f32.gmra.mxu0 %v2359
        %v2387 = vpop.f32.mrf.mxu0
        %v2388 = vadd.f32 0.0, %v2387
        %2389 = vdwg.mxu0
        %v2391 = vsel %vm2109, %v562, 0
        %v2394 = vsel %vm2109, %v565, 0
        %v2397 = vsel %vm2109, %v687, 0
        %v2400 = vsel %vm2109, %v690, 0
        %2402 = vmatpush.xpose.msra.mxu0 0.0
        %2403 = vmatpush.xpose.msra.mxu0 0.0
        %2404 = vmatpush.xpose.msra.mxu0 0.0
        %2405 = vmatpush.xpose.msra.mxu0 0.0
        %2406 = vmatpush.xpose.msra.mxu0 0.0
        %2407 = vmatpush.xpose.msra.mxu0 0.0
        %2408 = vmatpush.xpose.msra.mxu0 0.0
        %2409 = vmatpush.xpose.msra.mxu0 0.0
        %2410 = vmatpush.xpose.msra.mxu0 0.0
        %2411 = vmatpush.xpose.msra.mxu0 0.0
        %2412 = vmatpush.xpose.msra.mxu0 0.0
        %2413 = vmatpush.xpose.msra.mxu0 0.0
        %2414 = vmatpush.xpose.msra.mxu0 0.0
        %2415 = vmatpush.xpose.msra.mxu0 0.0
        %2416 = vmatpush.xpose.msra.mxu0 %v2400
        %2417 = vmatpush.xpose.msra.mxu0 %v2397
        %2418 = vmatmul.f32.gmra.mxu0 %v2391
        %v2419 = vpop.f32.mrf.mxu0
        %v2420 = vadd.f32 0.0, %v2419
        %2421 = vmatmul.f32.gmra.mxu0 %v2394
        %v2422 = vpop.f32.mrf.mxu0
        %v2423 = vadd.f32 0.0, %v2422
        %2424 = vdwg.mxu0
        %v2426 = vsel %vm2109, %v568, 0
        %v2429 = vsel %vm2109, %v571, 0
        %v2432 = vsel %vm2109, %v693, 0
        %v2435 = vsel %vm2109, %v696, 0
        %2437 = vmatpush.xpose.msra.mxu0 0.0
        %2438 = vmatpush.xpose.msra.mxu0 0.0
        %2439 = vmatpush.xpose.msra.mxu0 0.0
        %2440 = vmatpush.xpose.msra.mxu0 0.0
        %2441 = vmatpush.xpose.msra.mxu0 0.0
        %2442 = vmatpush.xpose.msra.mxu0 0.0
        %2443 = vmatpush.xpose.msra.mxu0 0.0
        %2444 = vmatpush.xpose.msra.mxu0 0.0
        %2445 = vmatpush.xpose.msra.mxu0 0.0
        %2446 = vmatpush.xpose.msra.mxu0 0.0
        %2447 = vmatpush.xpose.msra.mxu0 0.0
        %2448 = vmatpush.xpose.msra.mxu0 0.0
        %2449 = vmatpush.xpose.msra.mxu0 0.0
        %2450 = vmatpush.xpose.msra.mxu0 0.0
        %2451 = vmatpush.xpose.msra.mxu0 %v2435
        %2452 = vmatpush.xpose.msra.mxu0 %v2432
        %2453 = vmatmul.f32.gmra.mxu0 %v2426
        %v2454 = vpop.f32.mrf.mxu0
        %v2455 = vadd.f32 0.0, %v2454
        %2456 = vmatmul.f32.gmra.mxu0 %v2429
        %v2457 = vpop.f32.mrf.mxu0
        %v2458 = vadd.f32 0.0, %v2457
        %2459 = vdwg.mxu0
        %v2461 = vsel %vm2109, %v574, 0
        %v2464 = vsel %vm2109, %v577, 0
        %v2467 = vsel %vm2109, %v699, 0
        %v2470 = vsel %vm2109, %v702, 0
        %2472 = vmatpush.xpose.msra.mxu0 0.0
        %2473 = vmatpush.xpose.msra.mxu0 0.0
        %2474 = vmatpush.xpose.msra.mxu0 0.0
        %2475 = vmatpush.xpose.msra.mxu0 0.0
        %2476 = vmatpush.xpose.msra.mxu0 0.0
        %2477 = vmatpush.xpose.msra.mxu0 0.0
        %2478 = vmatpush.xpose.msra.mxu0 0.0
        %2479 = vmatpush.xpose.msra.mxu0 0.0
        %2480 = vmatpush.xpose.msra.mxu0 0.0
        %2481 = vmatpush.xpose.msra.mxu0 0.0
        %2482 = vmatpush.xpose.msra.mxu0 0.0
        %2483 = vmatpush.xpose.msra.mxu0 0.0
        %2484 = vmatpush.xpose.msra.mxu0 0.0
        %2485 = vmatpush.xpose.msra.mxu0 0.0
        %2486 = vmatpush.xpose.msra.mxu0 %v2470
        %2487 = vmatpush.xpose.msra.mxu0 %v2467
        %2488 = vmatmul.f32.gmra.mxu0 %v2461
        %v2489 = vpop.f32.mrf.mxu0
        %v2490 = vadd.f32 0.0, %v2489
        %2491 = vmatmul.f32.gmra.mxu0 %v2464
        %v2492 = vpop.f32.mrf.mxu0
        %v2493 = vadd.f32 0.0, %v2492
        %2494 = vdwg.mxu0
        %v2496 = vsel %vm2109, %v580, 0
        %v2499 = vsel %vm2109, %v583, 0
        %v2502 = vsel %vm2109, %v705, 0
        %v2505 = vsel %vm2109, %v708, 0
        %2507 = vmatpush.xpose.msra.mxu0 0.0
        %2508 = vmatpush.xpose.msra.mxu0 0.0
        %2509 = vmatpush.xpose.msra.mxu0 0.0
        %2510 = vmatpush.xpose.msra.mxu0 0.0
        %2511 = vmatpush.xpose.msra.mxu0 0.0
        %2512 = vmatpush.xpose.msra.mxu0 0.0
        %2513 = vmatpush.xpose.msra.mxu0 0.0
        %2514 = vmatpush.xpose.msra.mxu0 0.0
        %2515 = vmatpush.xpose.msra.mxu0 0.0
        %2516 = vmatpush.xpose.msra.mxu0 0.0
        %2517 = vmatpush.xpose.msra.mxu0 0.0
        %2518 = vmatpush.xpose.msra.mxu0 0.0
        %2519 = vmatpush.xpose.msra.mxu0 0.0
        %2520 = vmatpush.xpose.msra.mxu0 0.0
        %2521 = vmatpush.xpose.msra.mxu0 %v2505
        %2522 = vmatpush.xpose.msra.mxu0 %v2502
        %2523 = vmatmul.f32.gmra.mxu0 %v2496
        %v2524 = vpop.f32.mrf.mxu0
        %v2525 = vadd.f32 0.0, %v2524
        %2526 = vmatmul.f32.gmra.mxu0 %v2499
        %v2527 = vpop.f32.mrf.mxu0
        %v2528 = vadd.f32 0.0, %v2527
        %2529 = vdwg.mxu0
        %v2531 = vsel %vm2109, %v586, 0
        %v2534 = vsel %vm2109, %v589, 0
        %v2537 = vsel %vm2109, %v711, 0
        %v2540 = vsel %vm2109, %v714, 0
        %2542 = vmatpush.xpose.msra.mxu0 0.0
        %2543 = vmatpush.xpose.msra.mxu0 0.0
        %2544 = vmatpush.xpose.msra.mxu0 0.0
        %2545 = vmatpush.xpose.msra.mxu0 0.0
        %2546 = vmatpush.xpose.msra.mxu0 0.0
        %2547 = vmatpush.xpose.msra.mxu0 0.0
        %2548 = vmatpush.xpose.msra.mxu0 0.0
        %2549 = vmatpush.xpose.msra.mxu0 0.0
        %2550 = vmatpush.xpose.msra.mxu0 0.0
        %2551 = vmatpush.xpose.msra.mxu0 0.0
        %2552 = vmatpush.xpose.msra.mxu0 0.0
        %2553 = vmatpush.xpose.msra.mxu0 0.0
        %2554 = vmatpush.xpose.msra.mxu0 0.0
        %2555 = vmatpush.xpose.msra.mxu0 0.0
        %2556 = vmatpush.xpose.msra.mxu0 %v2540
        %2557 = vmatpush.xpose.msra.mxu0 %v2537
        %2558 = vmatmul.f32.gmra.mxu0 %v2531
        %v2559 = vpop.f32.mrf.mxu0
        %v2560 = vadd.f32 0.0, %v2559
        %2561 = vmatmul.f32.gmra.mxu0 %v2534
        %v2562 = vpop.f32.mrf.mxu0
        %v2563 = vadd.f32 0.0, %v2562
        %2564 = vdwg.mxu0
        %v2566 = vsel %vm2109, %v592, 0
        %v2569 = vsel %vm2109, %v595, 0
        %v2572 = vsel %vm2109, %v717, 0
        %v2575 = vsel %vm2109, %v720, 0
        %2577 = vmatpush.xpose.msra.mxu0 0.0
        %2578 = vmatpush.xpose.msra.mxu0 0.0
        %2579 = vmatpush.xpose.msra.mxu0 0.0
        %2580 = vmatpush.xpose.msra.mxu0 0.0
        %2581 = vmatpush.xpose.msra.mxu0 0.0
        %2582 = vmatpush.xpose.msra.mxu0 0.0
        %2583 = vmatpush.xpose.msra.mxu0 0.0
        %2584 = vmatpush.xpose.msra.mxu0 0.0
        %2585 = vmatpush.xpose.msra.mxu0 0.0
        %2586 = vmatpush.xpose.msra.mxu0 0.0
        %2587 = vmatpush.xpose.msra.mxu0 0.0
        %2588 = vmatpush.xpose.msra.mxu0 0.0
        %2589 = vmatpush.xpose.msra.mxu0 0.0
        %2590 = vmatpush.xpose.msra.mxu0 0.0
        %2591 = vmatpush.xpose.msra.mxu0 %v2575
        %2592 = vmatpush.xpose.msra.mxu0 %v2572
        %2593 = vmatmul.f32.gmra.mxu0 %v2566
        %v2594 = vpop.f32.mrf.mxu0
        %v2595 = vadd.f32 0.0, %v2594
        %2596 = vmatmul.f32.gmra.mxu0 %v2569
        %v2597 = vpop.f32.mrf.mxu0
        %v2598 = vadd.f32 0.0, %v2597
        %2599 = vdwg.mxu0
        %v2601 = vsel %vm2109, %v598, 0
        %v2604 = vsel %vm2109, %v601, 0
        %v2607 = vsel %vm2109, %v723, 0
        %v2610 = vsel %vm2109, %v726, 0
        %2612 = vmatpush.xpose.msra.mxu0 0.0
        %2613 = vmatpush.xpose.msra.mxu0 0.0
        %2614 = vmatpush.xpose.msra.mxu0 0.0
        %2615 = vmatpush.xpose.msra.mxu0 0.0
        %2616 = vmatpush.xpose.msra.mxu0 0.0
        %2617 = vmatpush.xpose.msra.mxu0 0.0
        %2618 = vmatpush.xpose.msra.mxu0 0.0
        %2619 = vmatpush.xpose.msra.mxu0 0.0
        %2620 = vmatpush.xpose.msra.mxu0 0.0
        %2621 = vmatpush.xpose.msra.mxu0 0.0
        %2622 = vmatpush.xpose.msra.mxu0 0.0
        %2623 = vmatpush.xpose.msra.mxu0 0.0
        %2624 = vmatpush.xpose.msra.mxu0 0.0
        %2625 = vmatpush.xpose.msra.mxu0 0.0
        %2626 = vmatpush.xpose.msra.mxu0 %v2610
        %2627 = vmatpush.xpose.msra.mxu0 %v2607
        %2628 = vmatmul.f32.gmra.mxu0 %v2601
        %v2629 = vpop.f32.mrf.mxu0
        %v2630 = vadd.f32 0.0, %v2629
        %2631 = vmatmul.f32.gmra.mxu0 %v2604
        %v2632 = vpop.f32.mrf.mxu0
        %v2633 = vadd.f32 0.0, %v2632
        %2634 = vdwg.mxu0
        %v2636 = vsel %vm2109, %v604, 0
        %v2639 = vsel %vm2109, %v607, 0
        %v2642 = vsel %vm2109, %v729, 0
        %v2645 = vsel %vm2109, %v732, 0
        %2647 = vmatpush.xpose.msra.mxu0 0.0
        %2648 = vmatpush.xpose.msra.mxu0 0.0
        %2649 = vmatpush.xpose.msra.mxu0 0.0
        %2650 = vmatpush.xpose.msra.mxu0 0.0
        %2651 = vmatpush.xpose.msra.mxu0 0.0
        %2652 = vmatpush.xpose.msra.mxu0 0.0
        %2653 = vmatpush.xpose.msra.mxu0 0.0
        %2654 = vmatpush.xpose.msra.mxu0 0.0
        %2655 = vmatpush.xpose.msra.mxu0 0.0
        %2656 = vmatpush.xpose.msra.mxu0 0.0
        %2657 = vmatpush.xpose.msra.mxu0 0.0
        %2658 = vmatpush.xpose.msra.mxu0 0.0
        %2659 = vmatpush.xpose.msra.mxu0 0.0
        %2660 = vmatpush.xpose.msra.mxu0 0.0
        %2661 = vmatpush.xpose.msra.mxu0 %v2645
        %2662 = vmatpush.xpose.msra.mxu0 %v2642
        %2663 = vmatmul.f32.gmra.mxu0 %v2636
        %v2664 = vpop.f32.mrf.mxu0
        %v2665 = vadd.f32 0.0, %v2664
        %2666 = vmatmul.f32.gmra.mxu0 %v2639
        %v2667 = vpop.f32.mrf.mxu0
        %v2668 = vadd.f32 0.0, %v2667
        %2669 = vdwg.mxu0
        %v2670 = vld [vmem:[%s8] sm:$0xff]
        %v2671 = vld [vmem:[%s8 + $0x8] sm:$0xff]
        %v2673 = vsel %vm2109, %v957, 0
        %v2676 = vsel %vm2109, %v1069, 0
        %v2679 = vsel %vm2109, %v1405, 0
        %v2682 = vsel %vm2109, %v1517, 0
        %2684 = vmatpush.xpose.msra.mxu0 0.0
        %2685 = vmatpush.xpose.msra.mxu0 0.0
        %2686 = vmatpush.xpose.msra.mxu0 0.0
        %2687 = vmatpush.xpose.msra.mxu0 0.0
        %2688 = vmatpush.xpose.msra.mxu0 0.0
        %2689 = vmatpush.xpose.msra.mxu0 0.0
        %2690 = vmatpush.xpose.msra.mxu0 0.0
        %2691 = vmatpush.xpose.msra.mxu0 0.0
        %2692 = vmatpush.xpose.msra.mxu0 0.0
        %2693 = vmatpush.xpose.msra.mxu0 0.0
        %2694 = vmatpush.xpose.msra.mxu0 0.0
        %2695 = vmatpush.xpose.msra.mxu0 0.0
        %2696 = vmatpush.xpose.msra.mxu0 0.0
        %2697 = vmatpush.xpose.msra.mxu0 0.0
        %2698 = vmatpush.xpose.msra.mxu0 %v2682
        %2699 = vmatpush.xpose.msra.mxu0 %v2679
        %2700 = vmatmul.f32.gmra.mxu0 %v2673
        %v2701 = vpop.f32.mrf.mxu0
        %v2702 = vadd.f32 %v2670, %v2701
        %2703 = vmatmul.f32.gmra.mxu0 %v2676
        %v2704 = vpop.f32.mrf.mxu0
        %v2705 = vadd.f32 %v2671, %v2704
        %2706 = vdwg.mxu0
        %v2708 = vsel %vm2109, %v959, 0
        %v2711 = vsel %vm2109, %v1071, 0
        %v2714 = vsel %vm2109, %v1407, 0
        %v2717 = vsel %vm2109, %v1519, 0
        %2719 = vmatpush.xpose.msra.mxu0 0.0
        %2720 = vmatpush.xpose.msra.mxu0 0.0
        %2721 = vmatpush.xpose.msra.mxu0 0.0
        %2722 = vmatpush.xpose.msra.mxu0 0.0
        %2723 = vmatpush.xpose.msra.mxu0 0.0
        %2724 = vmatpush.xpose.msra.mxu0 0.0
        %2725 = vmatpush.xpose.msra.mxu0 0.0
        %2726 = vmatpush.xpose.msra.mxu0 0.0
        %2727 = vmatpush.xpose.msra.mxu0 0.0
        %2728 = vmatpush.xpose.msra.mxu0 0.0
        %2729 = vmatpush.xpose.msra.mxu0 0.0
        %2730 = vmatpush.xpose.msra.mxu0 0.0
        %2731 = vmatpush.xpose.msra.mxu0 0.0
        %2732 = vmatpush.xpose.msra.mxu0 0.0
        %2733 = vmatpush.xpose.msra.mxu0 %v2717
        %2734 = vmatpush.xpose.msra.mxu0 %v2714
        %2735 = vmatmul.f32.gmra.mxu0 %v2708
        %v2736 = vpop.f32.mrf.mxu0
        %v2737 = vadd.f32 %v2670, %v2736
        %2738 = vmatmul.f32.gmra.mxu0 %v2711
        %v2739 = vpop.f32.mrf.mxu0
        %v2740 = vadd.f32 %v2671, %v2739
        %2741 = vdwg.mxu0
        %v2743 = vsel %vm2109, %v961, 0
        %v2746 = vsel %vm2109, %v1073, 0
        %v2749 = vsel %vm2109, %v1409, 0
        %v2752 = vsel %vm2109, %v1521, 0
        %2754 = vmatpush.xpose.msra.mxu0 0.0
        %2755 = vmatpush.xpose.msra.mxu0 0.0
        %2756 = vmatpush.xpose.msra.mxu0 0.0
        %2757 = vmatpush.xpose.msra.mxu0 0.0
        %2758 = vmatpush.xpose.msra.mxu0 0.0
        %2759 = vmatpush.xpose.msra.mxu0 0.0
        %2760 = vmatpush.xpose.msra.mxu0 0.0
        %2761 = vmatpush.xpose.msra.mxu0 0.0
        %2762 = vmatpush.xpose.msra.mxu0 0.0
        %2763 = vmatpush.xpose.msra.mxu0 0.0
        %2764 = vmatpush.xpose.msra.mxu0 0.0
        %2765 = vmatpush.xpose.msra.mxu0 0.0
        %2766 = vmatpush.xpose.msra.mxu0 0.0
        %2767 = vmatpush.xpose.msra.mxu0 0.0
        %2768 = vmatpush.xpose.msra.mxu0 %v2752
        %2769 = vmatpush.xpose.msra.mxu0 %v2749
        %2770 = vmatmul.f32.gmra.mxu0 %v2743
        %v2771 = vpop.f32.mrf.mxu0
        %v2772 = vadd.f32 %v2670, %v2771
        %2773 = vmatmul.f32.gmra.mxu0 %v2746
        %v2774 = vpop.f32.mrf.mxu0
        %v2775 = vadd.f32 %v2671, %v2774
        %2776 = vdwg.mxu0
        %v2778 = vsel %vm2109, %v963, 0
        %v2781 = vsel %vm2109, %v1075, 0
        %v2784 = vsel %vm2109, %v1411, 0
        %v2787 = vsel %vm2109, %v1523, 0
        %2789 = vmatpush.xpose.msra.mxu0 0.0
        %2790 = vmatpush.xpose.msra.mxu0 0.0
        %2791 = vmatpush.xpose.msra.mxu0 0.0
        %2792 = vmatpush.xpose.msra.mxu0 0.0
        %2793 = vmatpush.xpose.msra.mxu0 0.0
        %2794 = vmatpush.xpose.msra.mxu0 0.0
        %2795 = vmatpush.xpose.msra.mxu0 0.0
        %2796 = vmatpush.xpose.msra.mxu0 0.0
        %2797 = vmatpush.xpose.msra.mxu0 0.0
        %2798 = vmatpush.xpose.msra.mxu0 0.0
        %2799 = vmatpush.xpose.msra.mxu0 0.0
        %2800 = vmatpush.xpose.msra.mxu0 0.0
        %2801 = vmatpush.xpose.msra.mxu0 0.0
        %2802 = vmatpush.xpose.msra.mxu0 0.0
        %2803 = vmatpush.xpose.msra.mxu0 %v2787
        %2804 = vmatpush.xpose.msra.mxu0 %v2784
        %2805 = vmatmul.f32.gmra.mxu0 %v2778
        %v2806 = vpop.f32.mrf.mxu0
        %v2807 = vadd.f32 %v2670, %v2806
        %2808 = vmatmul.f32.gmra.mxu0 %v2781
        %v2809 = vpop.f32.mrf.mxu0
        %v2810 = vadd.f32 %v2671, %v2809
        %2811 = vdwg.mxu0
        %v2813 = vsel %vm2109, %v965, 0
        %v2816 = vsel %vm2109, %v1077, 0
        %v2819 = vsel %vm2109, %v1413, 0
        %v2822 = vsel %vm2109, %v1525, 0
        %2824 = vmatpush.xpose.msra.mxu0 0.0
        %2825 = vmatpush.xpose.msra.mxu0 0.0
        %2826 = vmatpush.xpose.msra.mxu0 0.0
        %2827 = vmatpush.xpose.msra.mxu0 0.0
        %2828 = vmatpush.xpose.msra.mxu0 0.0
        %2829 = vmatpush.xpose.msra.mxu0 0.0
        %2830 = vmatpush.xpose.msra.mxu0 0.0
        %2831 = vmatpush.xpose.msra.mxu0 0.0
        %2832 = vmatpush.xpose.msra.mxu0 0.0
        %2833 = vmatpush.xpose.msra.mxu0 0.0
        %2834 = vmatpush.xpose.msra.mxu0 0.0
        %2835 = vmatpush.xpose.msra.mxu0 0.0
        %2836 = vmatpush.xpose.msra.mxu0 0.0
        %2837 = vmatpush.xpose.msra.mxu0 0.0
        %2838 = vmatpush.xpose.msra.mxu0 %v2822
        %2839 = vmatpush.xpose.msra.mxu0 %v2819
        %2840 = vmatmul.f32.gmra.mxu0 %v2813
        %v2841 = vpop.f32.mrf.mxu0
        %v2842 = vadd.f32 %v2670, %v2841
        %2843 = vmatmul.f32.gmra.mxu0 %v2816
        %v2844 = vpop.f32.mrf.mxu0
        %v2845 = vadd.f32 %v2671, %v2844
        %2846 = vdwg.mxu0
        %v2848 = vsel %vm2109, %v967, 0
        %v2851 = vsel %vm2109, %v1079, 0
        %v2854 = vsel %vm2109, %v1415, 0
        %v2857 = vsel %vm2109, %v1527, 0
        %2859 = vmatpush.xpose.msra.mxu0 0.0
        %2860 = vmatpush.xpose.msra.mxu0 0.0
        %2861 = vmatpush.xpose.msra.mxu0 0.0
        %2862 = vmatpush.xpose.msra.mxu0 0.0
        %2863 = vmatpush.xpose.msra.mxu0 0.0
        %2864 = vmatpush.xpose.msra.mxu0 0.0
        %2865 = vmatpush.xpose.msra.mxu0 0.0
        %2866 = vmatpush.xpose.msra.mxu0 0.0
        %2867 = vmatpush.xpose.msra.mxu0 0.0
        %2868 = vmatpush.xpose.msra.mxu0 0.0
        %2869 = vmatpush.xpose.msra.mxu0 0.0
        %2870 = vmatpush.xpose.msra.mxu0 0.0
        %2871 = vmatpush.xpose.msra.mxu0 0.0
        %2872 = vmatpush.xpose.msra.mxu0 0.0
        %2873 = vmatpush.xpose.msra.mxu0 %v2857
        %2874 = vmatpush.xpose.msra.mxu0 %v2854
        %2875 = vmatmul.f32.gmra.mxu0 %v2848
        %v2876 = vpop.f32.mrf.mxu0
        %v2877 = vadd.f32 %v2670, %v2876
        %2878 = vmatmul.f32.gmra.mxu0 %v2851
        %v2879 = vpop.f32.mrf.mxu0
        %v2880 = vadd.f32 %v2671, %v2879
        %2881 = vdwg.mxu0
        %v2883 = vsel %vm2109, %v969, 0
        %v2886 = vsel %vm2109, %v1081, 0
        %v2889 = vsel %vm2109, %v1417, 0
        %v2892 = vsel %vm2109, %v1529, 0
        %2894 = vmatpush.xpose.msra.mxu0 0.0
        %2895 = vmatpush.xpose.msra.mxu0 0.0
        %2896 = vmatpush.xpose.msra.mxu0 0.0
        %2897 = vmatpush.xpose.msra.mxu0 0.0
        %2898 = vmatpush.xpose.msra.mxu0 0.0
        %2899 = vmatpush.xpose.msra.mxu0 0.0
        %2900 = vmatpush.xpose.msra.mxu0 0.0
        %2901 = vmatpush.xpose.msra.mxu0 0.0
        %2902 = vmatpush.xpose.msra.mxu0 0.0
        %2903 = vmatpush.xpose.msra.mxu0 0.0
        %2904 = vmatpush.xpose.msra.mxu0 0.0
        %2905 = vmatpush.xpose.msra.mxu0 0.0
        %2906 = vmatpush.xpose.msra.mxu0 0.0
        %2907 = vmatpush.xpose.msra.mxu0 0.0
        %2908 = vmatpush.xpose.msra.mxu0 %v2892
        %2909 = vmatpush.xpose.msra.mxu0 %v2889
        %2910 = vmatmul.f32.gmra.mxu0 %v2883
        %v2911 = vpop.f32.mrf.mxu0
        %v2912 = vadd.f32 %v2670, %v2911
        %2913 = vmatmul.f32.gmra.mxu0 %v2886
        %v2914 = vpop.f32.mrf.mxu0
        %v2915 = vadd.f32 %v2671, %v2914
        %2916 = vdwg.mxu0
        %v2918 = vsel %vm2109, %v971, 0
        %v2921 = vsel %vm2109, %v1083, 0
        %v2924 = vsel %vm2109, %v1419, 0
        %v2927 = vsel %vm2109, %v1531, 0
        %2929 = vmatpush.xpose.msra.mxu0 0.0
        %2930 = vmatpush.xpose.msra.mxu0 0.0
        %2931 = vmatpush.xpose.msra.mxu0 0.0
        %2932 = vmatpush.xpose.msra.mxu0 0.0
        %2933 = vmatpush.xpose.msra.mxu0 0.0
        %2934 = vmatpush.xpose.msra.mxu0 0.0
        %2935 = vmatpush.xpose.msra.mxu0 0.0
        %2936 = vmatpush.xpose.msra.mxu0 0.0
        %2937 = vmatpush.xpose.msra.mxu0 0.0
        %2938 = vmatpush.xpose.msra.mxu0 0.0
        %2939 = vmatpush.xpose.msra.mxu0 0.0
        %2940 = vmatpush.xpose.msra.mxu0 0.0
        %2941 = vmatpush.xpose.msra.mxu0 0.0
        %2942 = vmatpush.xpose.msra.mxu0 0.0
        %2943 = vmatpush.xpose.msra.mxu0 %v2927
        %2944 = vmatpush.xpose.msra.mxu0 %v2924
        %2945 = vmatmul.f32.gmra.mxu0 %v2918
        %v2946 = vpop.f32.mrf.mxu0
        %v2947 = vadd.f32 %v2670, %v2946
        %2948 = vmatmul.f32.gmra.mxu0 %v2921
        %v2949 = vpop.f32.mrf.mxu0
        %v2950 = vadd.f32 %v2671, %v2949
        %2951 = vdwg.mxu0
        %v2953 = vsel %vm2109, %v1181, 0
        %v2956 = vsel %vm2109, %v1293, 0
        %v2959 = vsel %vm2109, %v1629, 0
        %v2962 = vsel %vm2109, %v1741, 0
        %2964 = vmatpush.xpose.msra.mxu0 0.0
        %2965 = vmatpush.xpose.msra.mxu0 0.0
        %2966 = vmatpush.xpose.msra.mxu0 0.0
        %2967 = vmatpush.xpose.msra.mxu0 0.0
        %2968 = vmatpush.xpose.msra.mxu0 0.0
        %2969 = vmatpush.xpose.msra.mxu0 0.0
        %2970 = vmatpush.xpose.msra.mxu0 0.0
        %2971 = vmatpush.xpose.msra.mxu0 0.0
        %2972 = vmatpush.xpose.msra.mxu0 0.0
        %2973 = vmatpush.xpose.msra.mxu0 0.0
        %2974 = vmatpush.xpose.msra.mxu0 0.0
        %2975 = vmatpush.xpose.msra.mxu0 0.0
        %2976 = vmatpush.xpose.msra.mxu0 0.0
        %2977 = vmatpush.xpose.msra.mxu0 0.0
        %2978 = vmatpush.xpose.msra.mxu0 %v2962
        %2979 = vmatpush.xpose.msra.mxu0 %v2959
        %2980 = vmatmul.f32.gmra.mxu0 %v2953
        %v2981 = vpop.f32.mrf.mxu0
        %v2982 = vadd.f32 %v2670, %v2981
        %2983 = vmatmul.f32.gmra.mxu0 %v2956
        %v2984 = vpop.f32.mrf.mxu0
        %v2985 = vadd.f32 %v2671, %v2984
        %2986 = vdwg.mxu0
        %v2988 = vsel %vm2109, %v1183, 0
        %v2991 = vsel %vm2109, %v1295, 0
        %v2994 = vsel %vm2109, %v1631, 0
        %v2997 = vsel %vm2109, %v1743, 0
        %2999 = vmatpush.xpose.msra.mxu0 0.0
        %3000 = vmatpush.xpose.msra.mxu0 0.0
        %3001 = vmatpush.xpose.msra.mxu0 0.0
        %3002 = vmatpush.xpose.msra.mxu0 0.0
        %3003 = vmatpush.xpose.msra.mxu0 0.0
        %3004 = vmatpush.xpose.msra.mxu0 0.0
        %3005 = vmatpush.xpose.msra.mxu0 0.0
        %3006 = vmatpush.xpose.msra.mxu0 0.0
        %3007 = vmatpush.xpose.msra.mxu0 0.0
        %3008 = vmatpush.xpose.msra.mxu0 0.0
        %3009 = vmatpush.xpose.msra.mxu0 0.0
        %3010 = vmatpush.xpose.msra.mxu0 0.0
        %3011 = vmatpush.xpose.msra.mxu0 0.0
        %3012 = vmatpush.xpose.msra.mxu0 0.0
        %3013 = vmatpush.xpose.msra.mxu0 %v2997
        %3014 = vmatpush.xpose.msra.mxu0 %v2994
        %3015 = vmatmul.f32.gmra.mxu0 %v2988
        %v3016 = vpop.f32.mrf.mxu0
        %v3017 = vadd.f32 %v2670, %v3016
        %3018 = vmatmul.f32.gmra.mxu0 %v2991
        %v3019 = vpop.f32.mrf.mxu0
        %v3020 = vadd.f32 %v2671, %v3019
        %3021 = vdwg.mxu0
        %v3023 = vsel %vm2109, %v1185, 0
        %v3026 = vsel %vm2109, %v1297, 0
        %v3029 = vsel %vm2109, %v1633, 0
        %v3032 = vsel %vm2109, %v1745, 0
        %3034 = vmatpush.xpose.msra.mxu0 0.0
        %3035 = vmatpush.xpose.msra.mxu0 0.0
        %3036 = vmatpush.xpose.msra.mxu0 0.0
        %3037 = vmatpush.xpose.msra.mxu0 0.0
        %3038 = vmatpush.xpose.msra.mxu0 0.0
        %3039 = vmatpush.xpose.msra.mxu0 0.0
        %3040 = vmatpush.xpose.msra.mxu0 0.0
        %3041 = vmatpush.xpose.msra.mxu0 0.0
        %3042 = vmatpush.xpose.msra.mxu0 0.0
        %3043 = vmatpush.xpose.msra.mxu0 0.0
        %3044 = vmatpush.xpose.msra.mxu0 0.0
        %3045 = vmatpush.xpose.msra.mxu0 0.0
        %3046 = vmatpush.xpose.msra.mxu0 0.0
        %3047 = vmatpush.xpose.msra.mxu0 0.0
        %3048 = vmatpush.xpose.msra.mxu0 %v3032
        %3049 = vmatpush.xpose.msra.mxu0 %v3029
        %3050 = vmatmul.f32.gmra.mxu0 %v3023
        %v3051 = vpop.f32.mrf.mxu0
        %v3052 = vadd.f32 %v2670, %v3051
        %3053 = vmatmul.f32.gmra.mxu0 %v3026
        %v3054 = vpop.f32.mrf.mxu0
        %v3055 = vadd.f32 %v2671, %v3054
        %3056 = vdwg.mxu0
        %v3058 = vsel %vm2109, %v1187, 0
        %v3061 = vsel %vm2109, %v1299, 0
        %v3064 = vsel %vm2109, %v1635, 0
        %v3067 = vsel %vm2109, %v1747, 0
        %3069 = vmatpush.xpose.msra.mxu0 0.0
        %3070 = vmatpush.xpose.msra.mxu0 0.0
        %3071 = vmatpush.xpose.msra.mxu0 0.0
        %3072 = vmatpush.xpose.msra.mxu0 0.0
        %3073 = vmatpush.xpose.msra.mxu0 0.0
        %3074 = vmatpush.xpose.msra.mxu0 0.0
        %3075 = vmatpush.xpose.msra.mxu0 0.0
        %3076 = vmatpush.xpose.msra.mxu0 0.0
        %3077 = vmatpush.xpose.msra.mxu0 0.0
        %3078 = vmatpush.xpose.msra.mxu0 0.0
        %3079 = vmatpush.xpose.msra.mxu0 0.0
        %3080 = vmatpush.xpose.msra.mxu0 0.0
        %3081 = vmatpush.xpose.msra.mxu0 0.0
        %3082 = vmatpush.xpose.msra.mxu0 0.0
        %3083 = vmatpush.xpose.msra.mxu0 %v3067
        %3084 = vmatpush.xpose.msra.mxu0 %v3064
        %3085 = vmatmul.f32.gmra.mxu0 %v3058
        %v3086 = vpop.f32.mrf.mxu0
        %v3087 = vadd.f32 %v2670, %v3086
        %3088 = vmatmul.f32.gmra.mxu0 %v3061
        %v3089 = vpop.f32.mrf.mxu0
        %v3090 = vadd.f32 %v2671, %v3089
        %3091 = vdwg.mxu0
        %v3093 = vsel %vm2109, %v1189, 0
        %v3096 = vsel %vm2109, %v1301, 0
        %v3099 = vsel %vm2109, %v1637, 0
        %v3102 = vsel %vm2109, %v1749, 0
        %3104 = vmatpush.xpose.msra.mxu0 0.0
        %3105 = vmatpush.xpose.msra.mxu0 0.0
        %3106 = vmatpush.xpose.msra.mxu0 0.0
        %3107 = vmatpush.xpose.msra.mxu0 0.0
        %3108 = vmatpush.xpose.msra.mxu0 0.0
        %3109 = vmatpush.xpose.msra.mxu0 0.0
        %3110 = vmatpush.xpose.msra.mxu0 0.0
        %3111 = vmatpush.xpose.msra.mxu0 0.0
        %3112 = vmatpush.xpose.msra.mxu0 0.0
        %3113 = vmatpush.xpose.msra.mxu0 0.0
        %3114 = vmatpush.xpose.msra.mxu0 0.0
        %3115 = vmatpush.xpose.msra.mxu0 0.0
        %3116 = vmatpush.xpose.msra.mxu0 0.0
        %3117 = vmatpush.xpose.msra.mxu0 0.0
        %3118 = vmatpush.xpose.msra.mxu0 %v3102
        %3119 = vmatpush.xpose.msra.mxu0 %v3099
        %3120 = vmatmul.f32.gmra.mxu0 %v3093
        %v3121 = vpop.f32.mrf.mxu0
        %v3122 = vadd.f32 %v2670, %v3121
        %3123 = vmatmul.f32.gmra.mxu0 %v3096
        %v3124 = vpop.f32.mrf.mxu0
        %v3125 = vadd.f32 %v2671, %v3124
        %3126 = vdwg.mxu0
        %v3128 = vsel %vm2109, %v1191, 0
        %v3131 = vsel %vm2109, %v1303, 0
        %v3134 = vsel %vm2109, %v1639, 0
        %v3137 = vsel %vm2109, %v1751, 0
        %3139 = vmatpush.xpose.msra.mxu0 0.0
        %3140 = vmatpush.xpose.msra.mxu0 0.0
        %3141 = vmatpush.xpose.msra.mxu0 0.0
        %3142 = vmatpush.xpose.msra.mxu0 0.0
        %3143 = vmatpush.xpose.msra.mxu0 0.0
        %3144 = vmatpush.xpose.msra.mxu0 0.0
        %3145 = vmatpush.xpose.msra.mxu0 0.0
        %3146 = vmatpush.xpose.msra.mxu0 0.0
        %3147 = vmatpush.xpose.msra.mxu0 0.0
        %3148 = vmatpush.xpose.msra.mxu0 0.0
        %3149 = vmatpush.xpose.msra.mxu0 0.0
        %3150 = vmatpush.xpose.msra.mxu0 0.0
        %3151 = vmatpush.xpose.msra.mxu0 0.0
        %3152 = vmatpush.xpose.msra.mxu0 0.0
        %3153 = vmatpush.xpose.msra.mxu0 %v3137
        %3154 = vmatpush.xpose.msra.mxu0 %v3134
        %3155 = vmatmul.f32.gmra.mxu0 %v3128
        %v3156 = vpop.f32.mrf.mxu0
        %v3157 = vadd.f32 %v2670, %v3156
        %3158 = vmatmul.f32.gmra.mxu0 %v3131
        %v3159 = vpop.f32.mrf.mxu0
        %v3160 = vadd.f32 %v2671, %v3159
        %3161 = vdwg.mxu0
        %v3163 = vsel %vm2109, %v1193, 0
        %v3166 = vsel %vm2109, %v1305, 0
        %v3169 = vsel %vm2109, %v1641, 0
        %v3172 = vsel %vm2109, %v1753, 0
        %3174 = vmatpush.xpose.msra.mxu0 0.0
        %3175 = vmatpush.xpose.msra.mxu0 0.0
        %3176 = vmatpush.xpose.msra.mxu0 0.0
        %3177 = vmatpush.xpose.msra.mxu0 0.0
        %3178 = vmatpush.xpose.msra.mxu0 0.0
        %3179 = vmatpush.xpose.msra.mxu0 0.0
        %3180 = vmatpush.xpose.msra.mxu0 0.0
        %3181 = vmatpush.xpose.msra.mxu0 0.0
        %3182 = vmatpush.xpose.msra.mxu0 0.0
        %3183 = vmatpush.xpose.msra.mxu0 0.0
        %3184 = vmatpush.xpose.msra.mxu0 0.0
        %3185 = vmatpush.xpose.msra.mxu0 0.0
        %3186 = vmatpush.xpose.msra.mxu0 0.0
        %3187 = vmatpush.xpose.msra.mxu0 0.0
        %3188 = vmatpush.xpose.msra.mxu0 %v3172
        %3189 = vmatpush.xpose.msra.mxu0 %v3169
        %3190 = vmatmul.f32.gmra.mxu0 %v3163
        %v3191 = vpop.f32.mrf.mxu0
        %v3192 = vadd.f32 %v2670, %v3191
        %3193 = vmatmul.f32.gmra.mxu0 %v3166
        %v3194 = vpop.f32.mrf.mxu0
        %v3195 = vadd.f32 %v2671, %v3194
        %3196 = vdwg.mxu0
        %v3198 = vsel %vm2109, %v1195, 0
        %v3201 = vsel %vm2109, %v1307, 0
        %v3204 = vsel %vm2109, %v1643, 0
        %v3207 = vsel %vm2109, %v1755, 0
        %3209 = vmatpush.xpose.msra.mxu0 0.0
        %3210 = vmatpush.xpose.msra.mxu0 0.0
        %3211 = vmatpush.xpose.msra.mxu0 0.0
        %3212 = vmatpush.xpose.msra.mxu0 0.0
        %3213 = vmatpush.xpose.msra.mxu0 0.0
        %3214 = vmatpush.xpose.msra.mxu0 0.0
        %3215 = vmatpush.xpose.msra.mxu0 0.0
        %3216 = vmatpush.xpose.msra.mxu0 0.0
        %3217 = vmatpush.xpose.msra.mxu0 0.0
        %3218 = vmatpush.xpose.msra.mxu0 0.0
        %3219 = vmatpush.xpose.msra.mxu0 0.0
        %3220 = vmatpush.xpose.msra.mxu0 0.0
        %3221 = vmatpush.xpose.msra.mxu0 0.0
        %3222 = vmatpush.xpose.msra.mxu0 0.0
        %3223 = vmatpush.xpose.msra.mxu0 %v3207
        %3224 = vmatpush.xpose.msra.mxu0 %v3204
        %3225 = vmatmul.f32.gmra.mxu0 %v3198
        %v3226 = vpop.f32.mrf.mxu0
        %v3227 = vadd.f32 %v2670, %v3226
        %3228 = vmatmul.f32.gmra.mxu0 %v3201
        %v3229 = vpop.f32.mrf.mxu0
        %v3230 = vadd.f32 %v2671, %v3229
        %3231 = vdwg.mxu0
        %vm3232 = vcmask 130048
        %v3233 = vsel %vm3232, %v2140, -inf
        %3234 = vmax.xlane.f32.xlu0 %v3233
        %v3235 = vpop.xlane.xlu0 %3234
        %v3236 = vsel %vm3232, %v2143, -inf
        %3237 = vmax.xlane.f32.xlu0 %v3236
        %v3238 = vpop.xlane.xlu0 %3237
        %v3239 = vsel %vm3232, %v2175, -inf
        %3240 = vmax.xlane.f32.xlu0 %v3239
        %v3241 = vpop.xlane.xlu0 %3240
        %v3242 = vsel %vm3232, %v2178, -inf
        %3243 = vmax.xlane.f32.xlu0 %v3242
        %v3244 = vpop.xlane.xlu0 %3243
        %v3245 = vsel %vm3232, %v2210, -inf
        %3246 = vmax.xlane.f32.xlu0 %v3245
        %v3247 = vpop.xlane.xlu0 %3246
        %v3248 = vsel %vm3232, %v2213, -inf
        %3249 = vmax.xlane.f32.xlu0 %v3248
        %v3250 = vpop.xlane.xlu0 %3249
        %v3251 = vsel %vm3232, %v2245, -inf
        %3252 = vmax.xlane.f32.xlu0 %v3251
        %v3253 = vpop.xlane.xlu0 %3252
        %v3254 = vsel %vm3232, %v2248, -inf
        %3255 = vmax.xlane.f32.xlu0 %v3254
        %v3256 = vpop.xlane.xlu0 %3255
        %v3257 = vsel %vm3232, %v2280, -inf
        %3258 = vmax.xlane.f32.xlu0 %v3257
        %v3259 = vpop.xlane.xlu0 %3258
        %v3260 = vsel %vm3232, %v2283, -inf
        %3261 = vmax.xlane.f32.xlu0 %v3260
        %v3262 = vpop.xlane.xlu0 %3261
        %v3263 = vsel %vm3232, %v2315, -inf
        %3264 = vmax.xlane.f32.xlu0 %v3263
        %v3265 = vpop.xlane.xlu0 %3264
        %v3266 = vsel %vm3232, %v2318, -inf
        %3267 = vmax.xlane.f32.xlu0 %v3266
        %v3268 = vpop.xlane.xlu0 %3267
        %v3269 = vsel %vm3232, %v2350, -inf
        %3270 = vmax.xlane.f32.xlu0 %v3269
        %v3271 = vpop.xlane.xlu0 %3270
        %v3272 = vsel %vm3232, %v2353, -inf
        %3273 = vmax.xlane.f32.xlu0 %v3272
        %v3274 = vpop.xlane.xlu0 %3273
        %v3275 = vsel %vm3232, %v2385, -inf
        %3276 = vmax.xlane.f32.xlu0 %v3275
        %v3277 = vpop.xlane.xlu0 %3276
        %v3278 = vsel %vm3232, %v2388, -inf
        %3279 = vmax.xlane.f32.xlu0 %v3278
        %v3280 = vpop.xlane.xlu0 %3279
        %v3281 = vsel %vm3232, %v2420, -inf
        %3282 = vmax.xlane.f32.xlu0 %v3281
        %v3283 = vpop.xlane.xlu0 %3282
        %v3284 = vsel %vm3232, %v2423, -inf
        %3285 = vmax.xlane.f32.xlu0 %v3284
        %v3286 = vpop.xlane.xlu0 %3285
        %v3287 = vsel %vm3232, %v2455, -inf
        %3288 = vmax.xlane.f32.xlu0 %v3287
        %v3289 = vpop.xlane.xlu0 %3288
        %v3290 = vsel %vm3232, %v2458, -inf
        %3291 = vmax.xlane.f32.xlu0 %v3290
        %v3292 = vpop.xlane.xlu0 %3291
        %v3293 = vsel %vm3232, %v2490, -inf
        %3294 = vmax.xlane.f32.xlu0 %v3293
        %v3295 = vpop.xlane.xlu0 %3294
        %v3296 = vsel %vm3232, %v2493, -inf
        %3297 = vmax.xlane.f32.xlu0 %v3296
        %v3298 = vpop.xlane.xlu0 %3297
        %v3299 = vsel %vm3232, %v2525, -inf
        %3300 = vmax.xlane.f32.xlu0 %v3299
        %v3301 = vpop.xlane.xlu0 %3300
        %v3302 = vsel %vm3232, %v2528, -inf
        %3303 = vmax.xlane.f32.xlu0 %v3302
        %v3304 = vpop.xlane.xlu0 %3303
        %v3305 = vsel %vm3232, %v2560, -inf
        %3306 = vmax.xlane.f32.xlu0 %v3305
        %v3307 = vpop.xlane.xlu0 %3306
        %v3308 = vsel %vm3232, %v2563, -inf
        %3309 = vmax.xlane.f32.xlu0 %v3308
        %v3310 = vpop.xlane.xlu0 %3309
        %v3311 = vsel %vm3232, %v2595, -inf
        %3312 = vmax.xlane.f32.xlu0 %v3311
        %v3313 = vpop.xlane.xlu0 %3312
        %v3314 = vsel %vm3232, %v2598, -inf
        %3315 = vmax.xlane.f32.xlu0 %v3314
        %v3316 = vpop.xlane.xlu0 %3315
        %v3317 = vsel %vm3232, %v2630, -inf
        %3318 = vmax.xlane.f32.xlu0 %v3317
        %v3319 = vpop.xlane.xlu0 %3318
        %v3320 = vsel %vm3232, %v2633, -inf
        %3321 = vmax.xlane.f32.xlu0 %v3320
        %v3322 = vpop.xlane.xlu0 %3321
        %v3323 = vsel %vm3232, %v2665, -inf
        %3324 = vmax.xlane.f32.xlu0 %v3323
        %v3325 = vpop.xlane.xlu0 %3324
        %v3326 = vsel %vm3232, %v2668, -inf
        %3327 = vmax.xlane.f32.xlu0 %v3326
        %v3328 = vpop.xlane.xlu0 %3327
        %v3329 = vsel %vm3232, %v2702, -inf
        %3330 = vmax.xlane.f32.xlu0 %v3329
        %v3331 = vpop.xlane.xlu0 %3330
        %v3332 = vsel %vm3232, %v2705, -inf
        %3333 = vmax.xlane.f32.xlu0 %v3332
        %v3334 = vpop.xlane.xlu0 %3333
        %v3335 = vsel %vm3232, %v2737, -inf
        %3336 = vmax.xlane.f32.xlu0 %v3335
        %v3337 = vpop.xlane.xlu0 %3336
        %v3338 = vsel %vm3232, %v2740, -inf
        %3339 = vmax.xlane.f32.xlu0 %v3338
        %v3340 = vpop.xlane.xlu0 %3339
        %v3341 = vsel %vm3232, %v2772, -inf
        %3342 = vmax.xlane.f32.xlu0 %v3341
        %v3343 = vpop.xlane.xlu0 %3342
        %v3344 = vsel %vm3232, %v2775, -inf
        %3345 = vmax.xlane.f32.xlu0 %v3344
        %v3346 = vpop.xlane.xlu0 %3345
        %v3347 = vsel %vm3232, %v2807, -inf
        %3348 = vmax.xlane.f32.xlu0 %v3347
        %v3349 = vpop.xlane.xlu0 %3348
        %v3350 = vsel %vm3232, %v2810, -inf
        %3351 = vmax.xlane.f32.xlu0 %v3350
        %v3352 = vpop.xlane.xlu0 %3351
        %v3353 = vsel %vm3232, %v2842, -inf
        %3354 = vmax.xlane.f32.xlu0 %v3353
        %v3355 = vpop.xlane.xlu0 %3354
        %v3356 = vsel %vm3232, %v2845, -inf
        %3357 = vmax.xlane.f32.xlu0 %v3356
        %v3358 = vpop.xlane.xlu0 %3357
        %v3359 = vsel %vm3232, %v2877, -inf
        %3360 = vmax.xlane.f32.xlu0 %v3359
        %v3361 = vpop.xlane.xlu0 %3360
        %v3362 = vsel %vm3232, %v2880, -inf
        %3363 = vmax.xlane.f32.xlu0 %v3362
        %v3364 = vpop.xlane.xlu0 %3363
        %v3365 = vsel %vm3232, %v2912, -inf
        %3366 = vmax.xlane.f32.xlu0 %v3365
        %v3367 = vpop.xlane.xlu0 %3366
        %v3368 = vsel %vm3232, %v2915, -inf
        %3369 = vmax.xlane.f32.xlu0 %v3368
        %v3370 = vpop.xlane.xlu0 %3369
        %v3371 = vsel %vm3232, %v2947, -inf
        %3372 = vmax.xlane.f32.xlu0 %v3371
        %v3373 = vpop.xlane.xlu0 %3372
        %v3374 = vsel %vm3232, %v2950, -inf
        %3375 = vmax.xlane.f32.xlu0 %v3374
        %v3376 = vpop.xlane.xlu0 %3375
        %v3377 = vsel %vm3232, %v2982, -inf
        %3378 = vmax.xlane.f32.xlu0 %v3377
        %v3379 = vpop.xlane.xlu0 %3378
        %v3380 = vsel %vm3232, %v2985, -inf
        %3381 = vmax.xlane.f32.xlu0 %v3380
        %v3382 = vpop.xlane.xlu0 %3381
        %v3383 = vsel %vm3232, %v3017, -inf
        %3384 = vmax.xlane.f32.xlu0 %v3383
        %v3385 = vpop.xlane.xlu0 %3384
        %v3386 = vsel %vm3232, %v3020, -inf
        %3387 = vmax.xlane.f32.xlu0 %v3386
        %v3388 = vpop.xlane.xlu0 %3387
        %v3389 = vsel %vm3232, %v3052, -inf
        %3390 = vmax.xlane.f32.xlu0 %v3389
        %v3391 = vpop.xlane.xlu0 %3390
        %v3392 = vsel %vm3232, %v3055, -inf
        %3393 = vmax.xlane.f32.xlu0 %v3392
        %v3394 = vpop.xlane.xlu0 %3393
        %v3395 = vsel %vm3232, %v3087, -inf
        %3396 = vmax.xlane.f32.xlu0 %v3395
        %v3397 = vpop.xlane.xlu0 %3396
        %v3398 = vsel %vm3232, %v3090, -inf
        %3399 = vmax.xlane.f32.xlu0 %v3398
        %v3400 = vpop.xlane.xlu0 %3399
        %v3401 = vsel %vm3232, %v3122, -inf
        %3402 = vmax.xlane.f32.xlu0 %v3401
        %v3403 = vpop.xlane.xlu0 %3402
        %v3404 = vsel %vm3232, %v3125, -inf
        %3405 = vmax.xlane.f32.xlu0 %v3404
        %v3406 = vpop.xlane.xlu0 %3405
        %v3407 = vsel %vm3232, %v3157, -inf
        %3408 = vmax.xlane.f32.xlu0 %v3407
        %v3409 = vpop.xlane.xlu0 %3408
        %v3410 = vsel %vm3232, %v3160, -inf
        %3411 = vmax.xlane.f32.xlu0 %v3410
        %v3412 = vpop.xlane.xlu0 %3411
        %v3413 = vsel %vm3232, %v3192, -inf
        %3414 = vmax.xlane.f32.xlu0 %v3413
        %v3415 = vpop.xlane.xlu0 %3414
        %v3416 = vsel %vm3232, %v3195, -inf
        %3417 = vmax.xlane.f32.xlu0 %v3416
        %v3418 = vpop.xlane.xlu0 %3417
        %v3419 = vsel %vm3232, %v3227, -inf
        %3420 = vmax.xlane.f32.xlu0 %v3419
        %v3421 = vpop.xlane.xlu0 %3420
        %v3422 = vsel %vm3232, %v3230, -inf
        %3423 = vmax.xlane.f32.xlu0 %v3422
        %v3424 = vpop.xlane.xlu0 %3423
        %v3457 = vlaneseq
        %v3458 = vand.u32 %v3457, 127
        %v3459 = vperm.slane %v3331, %v3458
        %v3460 = vadd.s32 %v3458, 4294967288
        %v3461 = vperm.slane %v3334, %v3460
        %vm3462 = vcmask 130112
        %v3463 = vsel %vm3462, %v3461, %v3459
        %v3464 = vperm.slane %v3337, %v3458
        %v3465 = vperm.slane %v3340, %v3460
        %v3466 = vsel %vm3462, %v3465, %v3464
        %v3467 = vperm.slane %v3343, %v3458
        %v3468 = vperm.slane %v3346, %v3460
        %v3469 = vsel %vm3462, %v3468, %v3467
        %v3470 = vperm.slane %v3349, %v3458
        %v3471 = vperm.slane %v3352, %v3460
        %v3472 = vsel %vm3462, %v3471, %v3470
        %v3473 = vperm.slane %v3355, %v3458
        %v3474 = vperm.slane %v3358, %v3460
        %v3475 = vsel %vm3462, %v3474, %v3473
        %v3476 = vperm.slane %v3361, %v3458
        %v3477 = vperm.slane %v3364, %v3460
        %v3478 = vsel %vm3462, %v3477, %v3476
        %v3479 = vperm.slane %v3367, %v3458
        %v3480 = vperm.slane %v3370, %v3460
        %v3481 = vsel %vm3462, %v3480, %v3479
        %v3482 = vperm.slane %v3373, %v3458
        %v3483 = vperm.slane %v3376, %v3460
        %v3484 = vsel %vm3462, %v3483, %v3482
        %v3485 = vperm.slane %v3379, %v3458
        %v3486 = vperm.slane %v3382, %v3460
        %v3487 = vsel %vm3462, %v3486, %v3485
        %v3488 = vperm.slane %v3385, %v3458
        %v3489 = vperm.slane %v3388, %v3460
        %v3490 = vsel %vm3462, %v3489, %v3488
        %v3491 = vperm.slane %v3391, %v3458
        %v3492 = vperm.slane %v3394, %v3460
        %v3493 = vsel %vm3462, %v3492, %v3491
        %v3494 = vperm.slane %v3397, %v3458
        %v3495 = vperm.slane %v3400, %v3460
        %v3496 = vsel %vm3462, %v3495, %v3494
        %v3497 = vperm.slane %v3403, %v3458
        %v3498 = vperm.slane %v3406, %v3460
        %v3499 = vsel %vm3462, %v3498, %v3497
        %v3500 = vperm.slane %v3409, %v3458
        %v3501 = vperm.slane %v3412, %v3460
        %v3502 = vsel %vm3462, %v3501, %v3500
        %v3503 = vperm.slane %v3415, %v3458
        %v3504 = vperm.slane %v3418, %v3460
        %v3505 = vsel %vm3462, %v3504, %v3503
        %v3506 = vperm.slane %v3421, %v3458
        %v3507 = vperm.slane %v3424, %v3460
        %v3508 = vsel %vm3462, %v3507, %v3506
        %vm3509 = vcmask 1041409
        %v3510 = vsel %vm3509, %v3466, %v3463
        %vm3511 = vcmask 1042434
        %v3512 = vsel %vm3511, %v3469, %v3510
        %vm3513 = vcmask 1043459
        %v3514 = vsel %vm3513, %v3472, %v3512
        %vm3515 = vcmask 1044484
        %v3516 = vsel %vm3515, %v3475, %v3514
        %vm3517 = vcmask 1045509
        %v3518 = vsel %vm3517, %v3478, %v3516
        %vm3519 = vcmask 1046534
        %v3520 = vsel %vm3519, %v3481, %v3518
        %vm3521 = vcmask 1047559
        %v3522 = vsel %vm3521, %v3484, %v3520
        %v3523 = vsel %vm3509, %v3490, %v3487
        %v3524 = vsel %vm3511, %v3493, %v3523
        %v3525 = vsel %vm3513, %v3496, %v3524
        %v3526 = vsel %vm3515, %v3499, %v3525
        %v3527 = vsel %vm3517, %v3502, %v3526
        %v3528 = vsel %vm3519, %v3505, %v3527
        %v3529 = vsel %vm3521, %v3508, %v3528
        %3532 = vxpose.xlu0.b32.start [1/16] %v3522, 128
        %3533 = vxpose.xlu0.b32.cont [2/16] %v3529, 128
        %3534 = vxpose.xlu0.b32.cont [3/16] 0.0, 128
        %3535 = vxpose.xlu0.b32.cont [4/16] 0.0, 128
        %3536 = vxpose.xlu0.b32.cont [5/16] 0.0, 128
        %3537 = vxpose.xlu0.b32.cont [6/16] 0.0, 128
        %3538 = vxpose.xlu0.b32.cont [7/16] 0.0, 128
        %3539 = vxpose.xlu0.b32.cont [8/16] 0.0, 128
        %3540 = vxpose.xlu0.b32.cont [9/16] 0.0, 128
        %3541 = vxpose.xlu0.b32.cont [10/16] 0.0, 128
        %3542 = vxpose.xlu0.b32.cont [11/16] 0.0, 128
        %3543 = vxpose.xlu0.b32.cont [12/16] 0.0, 128
        %3544 = vxpose.xlu0.b32.cont [13/16] 0.0, 128
        %3545 = vxpose.xlu0.b32.cont [14/16] 0.0, 128
        %3546 = vxpose.xlu0.b32.cont [15/16] 0.0, 128
        %3547 = vxpose.xlu0.b32.end [16/16] 0.0, 128
        %v3548 = vpop.trf.xlu0
        %v3549 = vpop.trf.xlu0
        %v3550 = vpop.trf.xlu0
        %v3551 = vpop.trf.xlu0
        %v3552 = vpop.trf.xlu0
        %v3553 = vpop.trf.xlu0
        %v3554 = vpop.trf.xlu0
        %v3555 = vpop.trf.xlu0
        %v3556 = vpop.trf.xlu0
        %v3557 = vpop.trf.xlu0
        %v3558 = vpop.trf.xlu0
        %v3559 = vpop.trf.xlu0
        %v3560 = vpop.trf.xlu0
        %v3561 = vpop.trf.xlu0
        %v3562 = vpop.trf.xlu0
        %v3563 = vpop.trf.xlu0
        %v3566 = vperm.slane %v3548, 0
        %v3567 = vlaneseq
        %v3568 = vshrl.u32 %v3567, 7
        %3570 = vset.pattern.permute.xlu0 %v3568
        %3571 = vperm.xlu0 %3570, %v3566
        %v3572 = vpop.permute.xlu0 %3571
        %v3573 = vlaneseq
        %v3574 = vshrl.u32 %v3573, 7
        %v3575 = vadd.s32 %v3574, 8
        %3576 = vset.pattern.permute.xlu0 %v3575
        %3577 = vperm.xlu0 %3576, %v3566
        %v3578 = vpop.permute.xlu0 %3577
        %v3579 = vperm.slane %v3548, 1
        %v3580 = vlaneseq
        %v3581 = vshrl.u32 %v3580, 7
        %3583 = vset.pattern.permute.xlu0 %v3581
        %3584 = vperm.xlu0 %3583, %v3579
        %v3585 = vpop.permute.xlu0 %3584
        %v3586 = vlaneseq
        %v3587 = vshrl.u32 %v3586, 7
        %v3588 = vadd.s32 %v3587, 8
        %3589 = vset.pattern.permute.xlu0 %v3588
        %3590 = vperm.xlu0 %3589, %v3579
        %v3591 = vpop.permute.xlu0 %3590
        %v3592 = vperm.slane %v3548, 2
        %v3593 = vlaneseq
        %v3594 = vshrl.u32 %v3593, 7
        %3596 = vset.pattern.permute.xlu0 %v3594
        %3597 = vperm.xlu0 %3596, %v3592
        %v3598 = vpop.permute.xlu0 %3597
        %v3599 = vlaneseq
        %v3600 = vshrl.u32 %v3599, 7
        %v3601 = vadd.s32 %v3600, 8
        %3602 = vset.pattern.permute.xlu0 %v3601
        %3603 = vperm.xlu0 %3602, %v3592
        %v3604 = vpop.permute.xlu0 %3603
        %v3605 = vperm.slane %v3548, 3
        %v3606 = vlaneseq
        %v3607 = vshrl.u32 %v3606, 7
        %3609 = vset.pattern.permute.xlu0 %v3607
        %3610 = vperm.xlu0 %3609, %v3605
        %v3611 = vpop.permute.xlu0 %3610
        %v3612 = vlaneseq
        %v3613 = vshrl.u32 %v3612, 7
        %v3614 = vadd.s32 %v3613, 8
        %3615 = vset.pattern.permute.xlu0 %v3614
        %3616 = vperm.xlu0 %3615, %v3605
        %v3617 = vpop.permute.xlu0 %3616
        %v3618 = vperm.slane %v3548, 4
        %v3619 = vlaneseq
        %v3620 = vshrl.u32 %v3619, 7
        %3622 = vset.pattern.permute.xlu0 %v3620
        %3623 = vperm.xlu0 %3622, %v3618
        %v3624 = vpop.permute.xlu0 %3623
        %v3625 = vlaneseq
        %v3626 = vshrl.u32 %v3625, 7
        %v3627 = vadd.s32 %v3626, 8
        %3628 = vset.pattern.permute.xlu0 %v3627
        %3629 = vperm.xlu0 %3628, %v3618
        %v3630 = vpop.permute.xlu0 %3629
        %v3631 = vperm.slane %v3548, 5
        %v3632 = vlaneseq
        %v3633 = vshrl.u32 %v3632, 7
        %3635 = vset.pattern.permute.xlu0 %v3633
        %3636 = vperm.xlu0 %3635, %v3631
        %v3637 = vpop.permute.xlu0 %3636
        %v3638 = vlaneseq
        %v3639 = vshrl.u32 %v3638, 7
        %v3640 = vadd.s32 %v3639, 8
        %3641 = vset.pattern.permute.xlu0 %v3640
        %3642 = vperm.xlu0 %3641, %v3631
        %v3643 = vpop.permute.xlu0 %3642
        %v3644 = vperm.slane %v3548, 6
        %v3645 = vlaneseq
        %v3646 = vshrl.u32 %v3645, 7
        %3648 = vset.pattern.permute.xlu0 %v3646
        %3649 = vperm.xlu0 %3648, %v3644
        %v3650 = vpop.permute.xlu0 %3649
        %v3651 = vlaneseq
        %v3652 = vshrl.u32 %v3651, 7
        %v3653 = vadd.s32 %v3652, 8
        %3654 = vset.pattern.permute.xlu0 %v3653
        %3655 = vperm.xlu0 %3654, %v3644
        %v3656 = vpop.permute.xlu0 %3655
        %v3657 = vperm.slane %v3548, 7
        %v3658 = vlaneseq
        %v3659 = vshrl.u32 %v3658, 7
        %3661 = vset.pattern.permute.xlu0 %v3659
        %3662 = vperm.xlu0 %3661, %v3657
        %v3663 = vpop.permute.xlu0 %3662
        %v3664 = vlaneseq
        %v3665 = vshrl.u32 %v3664, 7
        %v3666 = vadd.s32 %v3665, 8
        %3667 = vset.pattern.permute.xlu0 %v3666
        %3668 = vperm.xlu0 %3667, %v3657
        %v3669 = vpop.permute.xlu0 %3668
        %v3670 = vperm.slane %v3549, 0
        %v3671 = vlaneseq
        %v3672 = vshrl.u32 %v3671, 7
        %3674 = vset.pattern.permute.xlu0 %v3672
        %3675 = vperm.xlu0 %3674, %v3670
        %v3676 = vpop.permute.xlu0 %3675
        %v3677 = vlaneseq
        %v3678 = vshrl.u32 %v3677, 7
        %v3679 = vadd.s32 %v3678, 8
        %3680 = vset.pattern.permute.xlu0 %v3679
        %3681 = vperm.xlu0 %3680, %v3670
        %v3682 = vpop.permute.xlu0 %3681
        %v3683 = vperm.slane %v3549, 1
        %v3684 = vlaneseq
        %v3685 = vshrl.u32 %v3684, 7
        %3687 = vset.pattern.permute.xlu0 %v3685
        %3688 = vperm.xlu0 %3687, %v3683
        %v3689 = vpop.permute.xlu0 %3688
        %v3690 = vlaneseq
        %v3691 = vshrl.u32 %v3690, 7
        %v3692 = vadd.s32 %v3691, 8
        %3693 = vset.pattern.permute.xlu0 %v3692
        %3694 = vperm.xlu0 %3693, %v3683
        %v3695 = vpop.permute.xlu0 %3694
        %v3696 = vperm.slane %v3549, 2
        %v3697 = vlaneseq
        %v3698 = vshrl.u32 %v3697, 7
        %3700 = vset.pattern.permute.xlu0 %v3698
        %3701 = vperm.xlu0 %3700, %v3696
        %v3702 = vpop.permute.xlu0 %3701
        %v3703 = vlaneseq
        %v3704 = vshrl.u32 %v3703, 7
        %v3705 = vadd.s32 %v3704, 8
        %3706 = vset.pattern.permute.xlu0 %v3705
        %3707 = vperm.xlu0 %3706, %v3696
        %v3708 = vpop.permute.xlu0 %3707
        %v3709 = vperm.slane %v3549, 3
        %v3710 = vlaneseq
        %v3711 = vshrl.u32 %v3710, 7
        %3713 = vset.pattern.permute.xlu0 %v3711
        %3714 = vperm.xlu0 %3713, %v3709
        %v3715 = vpop.permute.xlu0 %3714
        %v3716 = vlaneseq
        %v3717 = vshrl.u32 %v3716, 7
        %v3718 = vadd.s32 %v3717, 8
        %3719 = vset.pattern.permute.xlu0 %v3718
        %3720 = vperm.xlu0 %3719, %v3709
        %v3721 = vpop.permute.xlu0 %3720
        %v3722 = vperm.slane %v3549, 4
        %v3723 = vlaneseq
        %v3724 = vshrl.u32 %v3723, 7
        %3726 = vset.pattern.permute.xlu0 %v3724
        %3727 = vperm.xlu0 %3726, %v3722
        %v3728 = vpop.permute.xlu0 %3727
        %v3729 = vlaneseq
        %v3730 = vshrl.u32 %v3729, 7
        %v3731 = vadd.s32 %v3730, 8
        %3732 = vset.pattern.permute.xlu0 %v3731
        %3733 = vperm.xlu0 %3732, %v3722
        %v3734 = vpop.permute.xlu0 %3733
        %v3735 = vperm.slane %v3549, 5
        %v3736 = vlaneseq
        %v3737 = vshrl.u32 %v3736, 7
        %3739 = vset.pattern.permute.xlu0 %v3737
        %3740 = vperm.xlu0 %3739, %v3735
        %v3741 = vpop.permute.xlu0 %3740
        %v3742 = vlaneseq
        %v3743 = vshrl.u32 %v3742, 7
        %v3744 = vadd.s32 %v3743, 8
        %3745 = vset.pattern.permute.xlu0 %v3744
        %3746 = vperm.xlu0 %3745, %v3735
        %v3747 = vpop.permute.xlu0 %3746
        %v3748 = vperm.slane %v3549, 6
        %v3749 = vlaneseq
        %v3750 = vshrl.u32 %v3749, 7
        %3752 = vset.pattern.permute.xlu0 %v3750
        %3753 = vperm.xlu0 %3752, %v3748
        %v3754 = vpop.permute.xlu0 %3753
        %v3755 = vlaneseq
        %v3756 = vshrl.u32 %v3755, 7
        %v3757 = vadd.s32 %v3756, 8
        %3758 = vset.pattern.permute.xlu0 %v3757
        %3759 = vperm.xlu0 %3758, %v3748
        %v3760 = vpop.permute.xlu0 %3759
        %v3761 = vperm.slane %v3549, 7
        %v3762 = vlaneseq
        %v3763 = vshrl.u32 %v3762, 7
        %3765 = vset.pattern.permute.xlu0 %v3763
        %3766 = vperm.xlu0 %3765, %v3761
        %v3767 = vpop.permute.xlu0 %3766
        %v3768 = vlaneseq
        %v3769 = vshrl.u32 %v3768, 7
        %v3770 = vadd.s32 %v3769, 8
        %3771 = vset.pattern.permute.xlu0 %v3770
        %3772 = vperm.xlu0 %3771, %v3761
        %v3773 = vpop.permute.xlu0 %3772
        %v3806 = vmax.f32 %v3235, %v3572
        %v3807 = vmax.f32 %v3238, %v3578
        %v3808 = vmax.f32 %v3241, %v3585
        %v3809 = vmax.f32 %v3244, %v3591
        %v3810 = vmax.f32 %v3247, %v3598
        %v3811 = vmax.f32 %v3250, %v3604
        %v3812 = vmax.f32 %v3253, %v3611
        %v3813 = vmax.f32 %v3256, %v3617
        %v3814 = vmax.f32 %v3259, %v3624
        %v3815 = vmax.f32 %v3262, %v3630
        %v3816 = vmax.f32 %v3265, %v3637
        %v3817 = vmax.f32 %v3268, %v3643
        %v3818 = vmax.f32 %v3271, %v3650
        %v3819 = vmax.f32 %v3274, %v3656
        %v3820 = vmax.f32 %v3277, %v3663
        %v3821 = vmax.f32 %v3280, %v3669
        %v3822 = vmax.f32 %v3283, %v3676
        %v3823 = vmax.f32 %v3286, %v3682
        %v3824 = vmax.f32 %v3289, %v3689
        %v3825 = vmax.f32 %v3292, %v3695
        %v3826 = vmax.f32 %v3295, %v3702
        %v3827 = vmax.f32 %v3298, %v3708
        %v3828 = vmax.f32 %v3301, %v3715
        %v3829 = vmax.f32 %v3304, %v3721
        %v3830 = vmax.f32 %v3307, %v3728
        %v3831 = vmax.f32 %v3310, %v3734
        %v3832 = vmax.f32 %v3313, %v3741
        %v3833 = vmax.f32 %v3316, %v3747
        %v3834 = vmax.f32 %v3319, %v3754
        %v3835 = vmax.f32 %v3322, %v3760
        %v3836 = vmax.f32 %v3325, %v3767
        %v3837 = vmax.f32 %v3328, %v3773
        %3839 = vset.pattern.permute.xlu0 0
        %3840 = vperm.xlu0 %3839, %v3806
        %v3841 = vpop.permute.xlu0 %3840
        %3844 = vset.pattern.permute.xlu0 0
        %3845 = vperm.xlu0 %3844, %v3807
        %v3846 = vpop.permute.xlu0 %3845
        %3849 = vset.pattern.permute.xlu0 0
        %3850 = vperm.xlu0 %3849, %v3808
        %v3851 = vpop.permute.xlu0 %3850
        %3854 = vset.pattern.permute.xlu0 0
        %3855 = vperm.xlu0 %3854, %v3809
        %v3856 = vpop.permute.xlu0 %3855
        %3859 = vset.pattern.permute.xlu0 0
        %3860 = vperm.xlu0 %3859, %v3810
        %v3861 = vpop.permute.xlu0 %3860
        %3864 = vset.pattern.permute.xlu0 0
        %3865 = vperm.xlu0 %3864, %v3811
        %v3866 = vpop.permute.xlu0 %3865
        %3869 = vset.pattern.permute.xlu0 0
        %3870 = vperm.xlu0 %3869, %v3812
        %v3871 = vpop.permute.xlu0 %3870
        %3874 = vset.pattern.permute.xlu0 0
        %3875 = vperm.xlu0 %3874, %v3813
        %v3876 = vpop.permute.xlu0 %3875
        %3879 = vset.pattern.permute.xlu0 0
        %3880 = vperm.xlu0 %3879, %v3814
        %v3881 = vpop.permute.xlu0 %3880
        %3884 = vset.pattern.permute.xlu0 0
        %3885 = vperm.xlu0 %3884, %v3815
        %v3886 = vpop.permute.xlu0 %3885
        %3889 = vset.pattern.permute.xlu0 0
        %3890 = vperm.xlu0 %3889, %v3816
        %v3891 = vpop.permute.xlu0 %3890
        %3894 = vset.pattern.permute.xlu0 0
        %3895 = vperm.xlu0 %3894, %v3817
        %v3896 = vpop.permute.xlu0 %3895
        %3899 = vset.pattern.permute.xlu0 0
        %3900 = vperm.xlu0 %3899, %v3818
        %v3901 = vpop.permute.xlu0 %3900
        %3904 = vset.pattern.permute.xlu0 0
        %3905 = vperm.xlu0 %3904, %v3819
        %v3906 = vpop.permute.xlu0 %3905
        %3909 = vset.pattern.permute.xlu0 0
        %3910 = vperm.xlu0 %3909, %v3820
        %v3911 = vpop.permute.xlu0 %3910
        %3914 = vset.pattern.permute.xlu0 0
        %3915 = vperm.xlu0 %3914, %v3821
        %v3916 = vpop.permute.xlu0 %3915
        %3919 = vset.pattern.permute.xlu0 0
        %3920 = vperm.xlu0 %3919, %v3822
        %v3921 = vpop.permute.xlu0 %3920
        %3924 = vset.pattern.permute.xlu0 0
        %3925 = vperm.xlu0 %3924, %v3823
        %v3926 = vpop.permute.xlu0 %3925
        %3929 = vset.pattern.permute.xlu0 0
        %3930 = vperm.xlu0 %3929, %v3824
        %v3931 = vpop.permute.xlu0 %3930
        %3934 = vset.pattern.permute.xlu0 0
        %3935 = vperm.xlu0 %3934, %v3825
        %v3936 = vpop.permute.xlu0 %3935
        %3939 = vset.pattern.permute.xlu0 0
        %3940 = vperm.xlu0 %3939, %v3826
        %v3941 = vpop.permute.xlu0 %3940
        %3944 = vset.pattern.permute.xlu0 0
        %3945 = vperm.xlu0 %3944, %v3827
        %v3946 = vpop.permute.xlu0 %3945
        %3949 = vset.pattern.permute.xlu0 0
        %3950 = vperm.xlu0 %3949, %v3828
        %v3951 = vpop.permute.xlu0 %3950
        %3954 = vset.pattern.permute.xlu0 0
        %3955 = vperm.xlu0 %3954, %v3829
        %v3956 = vpop.permute.xlu0 %3955
        %3959 = vset.pattern.permute.xlu0 0
        %3960 = vperm.xlu0 %3959, %v3830
        %v3961 = vpop.permute.xlu0 %3960
        %3964 = vset.pattern.permute.xlu0 0
        %3965 = vperm.xlu0 %3964, %v3831
        %v3966 = vpop.permute.xlu0 %3965
        %3969 = vset.pattern.permute.xlu0 0
        %3970 = vperm.xlu0 %3969, %v3832
        %v3971 = vpop.permute.xlu0 %3970
        %3974 = vset.pattern.permute.xlu0 0
        %3975 = vperm.xlu0 %3974, %v3833
        %v3976 = vpop.permute.xlu0 %3975
        %3979 = vset.pattern.permute.xlu0 0
        %3980 = vperm.xlu0 %3979, %v3834
        %v3981 = vpop.permute.xlu0 %3980
        %3984 = vset.pattern.permute.xlu0 0
        %3985 = vperm.xlu0 %3984, %v3835
        %v3986 = vpop.permute.xlu0 %3985
        %3989 = vset.pattern.permute.xlu0 0
        %3990 = vperm.xlu0 %3989, %v3836
        %v3991 = vpop.permute.xlu0 %3990
        %3994 = vset.pattern.permute.xlu0 0
        %3995 = vperm.xlu0 %3994, %v3837
        %v3996 = vpop.permute.xlu0 %3995
        %v3998 = vsub.f32 %v2140, %v3841
        %v3999 = vsub.f32 %v2143, %v3846
        %v4000 = vsub.f32 %v2175, %v3851
        %v4001 = vsub.f32 %v2178, %v3856
        %v4002 = vsub.f32 %v2210, %v3861
        %v4003 = vsub.f32 %v2213, %v3866
        %v4004 = vsub.f32 %v2245, %v3871
        %v4005 = vsub.f32 %v2248, %v3876
        %v4006 = vsub.f32 %v2280, %v3881
        %v4007 = vsub.f32 %v2283, %v3886
        %v4008 = vsub.f32 %v2315, %v3891
        %v4009 = vsub.f32 %v2318, %v3896
        %v4010 = vsub.f32 %v2350, %v3901
        %v4011 = vsub.f32 %v2353, %v3906
        %v4012 = vsub.f32 %v2385, %v3911
        %v4013 = vsub.f32 %v2388, %v3916
        %v4014 = vsub.f32 %v2420, %v3921
        %v4015 = vsub.f32 %v2423, %v3926
        %v4016 = vsub.f32 %v2455, %v3931
        %v4017 = vsub.f32 %v2458, %v3936
        %v4018 = vsub.f32 %v2490, %v3941
        %v4019 = vsub.f32 %v2493, %v3946
        %v4020 = vsub.f32 %v2525, %v3951
        %v4021 = vsub.f32 %v2528, %v3956
        %v4022 = vsub.f32 %v2560, %v3961
        %v4023 = vsub.f32 %v2563, %v3966
        %v4024 = vsub.f32 %v2595, %v3971
        %v4025 = vsub.f32 %v2598, %v3976
        %v4026 = vsub.f32 %v2630, %v3981
        %v4027 = vsub.f32 %v2633, %v3986
        %v4028 = vsub.f32 %v2665, %v3991
        %v4029 = vsub.f32 %v2668, %v3996
        %v4030 = vmul.f32 %v3998, 1.442695
        %v4031 = vpow.pop %v4030
        %v4032 = vmul.f32 %v3999, 1.442695
        %v4033 = vpow.pop %v4032
        %v4034 = vmul.f32 %v4000, 1.442695
        %v4035 = vpow.pop %v4034
        %v4036 = vmul.f32 %v4001, 1.442695
        %v4037 = vpow.pop %v4036
        %v4038 = vmul.f32 %v4002, 1.442695
        %v4039 = vpow.pop %v4038
        %v4040 = vmul.f32 %v4003, 1.442695
        %v4041 = vpow.pop %v4040
        %v4042 = vmul.f32 %v4004, 1.442695
        %v4043 = vpow.pop %v4042
        %v4044 = vmul.f32 %v4005, 1.442695
        %v4045 = vpow.pop %v4044
        %v4046 = vmul.f32 %v4006, 1.442695
        %v4047 = vpow.pop %v4046
        %v4048 = vmul.f32 %v4007, 1.442695
        %v4049 = vpow.pop %v4048
        %v4050 = vmul.f32 %v4008, 1.442695
        %v4051 = vpow.pop %v4050
        %v4052 = vmul.f32 %v4009, 1.442695
        %v4053 = vpow.pop %v4052
        %v4054 = vmul.f32 %v4010, 1.442695
        %v4055 = vpow.pop %v4054
        %v4056 = vmul.f32 %v4011, 1.442695
        %v4057 = vpow.pop %v4056
        %v4058 = vmul.f32 %v4012, 1.442695
        %v4059 = vpow.pop %v4058
        %v4060 = vmul.f32 %v4013, 1.442695
        %v4061 = vpow.pop %v4060
        %v4062 = vmul.f32 %v4014, 1.442695
        %v4063 = vpow.pop %v4062
        %v4064 = vmul.f32 %v4015, 1.442695
        %v4065 = vpow.pop %v4064
        %v4066 = vmul.f32 %v4016, 1.442695
        %v4067 = vpow.pop %v4066
        %v4068 = vmul.f32 %v4017, 1.442695
        %v4069 = vpow.pop %v4068
        %v4070 = vmul.f32 %v4018, 1.442695
        %v4071 = vpow.pop %v4070
        %v4072 = vmul.f32 %v4019, 1.442695
        %v4073 = vpow.pop %v4072
        %v4074 = vmul.f32 %v4020, 1.442695
        %v4075 = vpow.pop %v4074
        %v4076 = vmul.f32 %v4021, 1.442695
        %v4077 = vpow.pop %v4076
        %v4078 = vmul.f32 %v4022, 1.442695
        %v4079 = vpow.pop %v4078
        %v4080 = vmul.f32 %v4023, 1.442695
        %v4081 = vpow.pop %v4080
        %v4082 = vmul.f32 %v4024, 1.442695
        %v4083 = vpow.pop %v4082
        %v4084 = vmul.f32 %v4025, 1.442695
        %v4085 = vpow.pop %v4084
        %v4086 = vmul.f32 %v4026, 1.442695
        %v4087 = vpow.pop %v4086
        %v4088 = vmul.f32 %v4027, 1.442695
        %v4089 = vpow.pop %v4088
        %v4090 = vmul.f32 %v4028, 1.442695
        %v4091 = vpow.pop %v4090
        %v4092 = vmul.f32 %v4029, 1.442695
        %v4093 = vpow.pop %v4092
        %v4094 = vperm.slane %v3841, %v3458
        %v4095 = vperm.slane %v3846, %v3460
        %v4096 = vsel %vm3462, %v4095, %v4094
        %v4097 = vperm.slane %v3851, %v3458
        %v4098 = vperm.slane %v3856, %v3460
        %v4099 = vsel %vm3462, %v4098, %v4097
        %v4100 = vperm.slane %v3861, %v3458
        %v4101 = vperm.slane %v3866, %v3460
        %v4102 = vsel %vm3462, %v4101, %v4100
        %v4103 = vperm.slane %v3871, %v3458
        %v4104 = vperm.slane %v3876, %v3460
        %v4105 = vsel %vm3462, %v4104, %v4103
        %v4106 = vperm.slane %v3881, %v3458
        %v4107 = vperm.slane %v3886, %v3460
        %v4108 = vsel %vm3462, %v4107, %v4106
        %v4109 = vperm.slane %v3891, %v3458
        %v4110 = vperm.slane %v3896, %v3460
        %v4111 = vsel %vm3462, %v4110, %v4109
        %v4112 = vperm.slane %v3901, %v3458
        %v4113 = vperm.slane %v3906, %v3460
        %v4114 = vsel %vm3462, %v4113, %v4112
        %v4115 = vperm.slane %v3911, %v3458
        %v4116 = vperm.slane %v3916, %v3460
        %v4117 = vsel %vm3462, %v4116, %v4115
        %v4118 = vperm.slane %v3921, %v3458
        %v4119 = vperm.slane %v3926, %v3460
        %v4120 = vsel %vm3462, %v4119, %v4118
        %v4121 = vperm.slane %v3931, %v3458
        %v4122 = vperm.slane %v3936, %v3460
        %v4123 = vsel %vm3462, %v4122, %v4121
        %v4124 = vperm.slane %v3941, %v3458
        %v4125 = vperm.slane %v3946, %v3460
        %v4126 = vsel %vm3462, %v4125, %v4124
        %v4127 = vperm.slane %v3951, %v3458
        %v4128 = vperm.slane %v3956, %v3460
        %v4129 = vsel %vm3462, %v4128, %v4127
        %v4130 = vperm.slane %v3961, %v3458
        %v4131 = vperm.slane %v3966, %v3460
        %v4132 = vsel %vm3462, %v4131, %v4130
        %v4133 = vperm.slane %v3971, %v3458
        %v4134 = vperm.slane %v3976, %v3460
        %v4135 = vsel %vm3462, %v4134, %v4133
        %v4136 = vperm.slane %v3981, %v3458
        %v4137 = vperm.slane %v3986, %v3460
        %v4138 = vsel %vm3462, %v4137, %v4136
        %v4139 = vperm.slane %v3991, %v3458
        %v4140 = vperm.slane %v3996, %v3460
        %v4141 = vsel %vm3462, %v4140, %v4139
        %v4142 = vsel %vm3509, %v4099, %v4096
        %v4143 = vsel %vm3511, %v4102, %v4142
        %v4144 = vsel %vm3513, %v4105, %v4143
        %v4145 = vsel %vm3515, %v4108, %v4144
        %v4146 = vsel %vm3517, %v4111, %v4145
        %v4147 = vsel %vm3519, %v4114, %v4146
        %v4148 = vsel %vm3521, %v4117, %v4147
        %v4149 = vsel %vm3509, %v4123, %v4120
        %v4150 = vsel %vm3511, %v4126, %v4149
        %v4151 = vsel %vm3513, %v4129, %v4150
        %v4152 = vsel %vm3515, %v4132, %v4151
        %v4153 = vsel %vm3517, %v4135, %v4152
        %v4154 = vsel %vm3519, %v4138, %v4153
        %v4155 = vsel %vm3521, %v4141, %v4154
        %4158 = vxpose.xlu0.b32.start [1/16] %v4148, 128
        %4159 = vxpose.xlu0.b32.cont [2/16] %v4155, 128
        %4160 = vxpose.xlu0.b32.cont [3/16] 0.0, 128
        %4161 = vxpose.xlu0.b32.cont [4/16] 0.0, 128
        %4162 = vxpose.xlu0.b32.cont [5/16] 0.0, 128
        %4163 = vxpose.xlu0.b32.cont [6/16] 0.0, 128
        %4164 = vxpose.xlu0.b32.cont [7/16] 0.0, 128
        %4165 = vxpose.xlu0.b32.cont [8/16] 0.0, 128
        %4166 = vxpose.xlu0.b32.cont [9/16] 0.0, 128
        %4167 = vxpose.xlu0.b32.cont [10/16] 0.0, 128
        %4168 = vxpose.xlu0.b32.cont [11/16] 0.0, 128
        %4169 = vxpose.xlu0.b32.cont [12/16] 0.0, 128
        %4170 = vxpose.xlu0.b32.cont [13/16] 0.0, 128
        %4171 = vxpose.xlu0.b32.cont [14/16] 0.0, 128
        %4172 = vxpose.xlu0.b32.cont [15/16] 0.0, 128
        %4173 = vxpose.xlu0.b32.end [16/16] 0.0, 128
        %v4174 = vpop.trf.xlu0
        %v4175 = vpop.trf.xlu0
        %v4176 = vpop.trf.xlu0
        %v4177 = vpop.trf.xlu0
        %v4178 = vpop.trf.xlu0
        %v4179 = vpop.trf.xlu0
        %v4180 = vpop.trf.xlu0
        %v4181 = vpop.trf.xlu0
        %v4182 = vpop.trf.xlu0
        %v4183 = vpop.trf.xlu0
        %v4184 = vpop.trf.xlu0
        %v4185 = vpop.trf.xlu0
        %v4186 = vpop.trf.xlu0
        %v4187 = vpop.trf.xlu0
        %v4188 = vpop.trf.xlu0
        %v4189 = vpop.trf.xlu0
        %v4190 = vperm.slane %v4174, 0
        %v4191 = vlaneseq
        %v4192 = vshrl.u32 %v4191, 7
        %4194 = vset.pattern.permute.xlu0 %v4192
        %4195 = vperm.xlu0 %4194, %v4190
        %v4196 = vpop.permute.xlu0 %4195
        %v4197 = vlaneseq
        %v4198 = vshrl.u32 %v4197, 7
        %v4199 = vadd.s32 %v4198, 8
        %4200 = vset.pattern.permute.xlu0 %v4199
        %4201 = vperm.xlu0 %4200, %v4190
        %v4202 = vpop.permute.xlu0 %4201
        %v4203 = vperm.slane %v4174, 1
        %v4204 = vlaneseq
        %v4205 = vshrl.u32 %v4204, 7
        %4207 = vset.pattern.permute.xlu0 %v4205
        %4208 = vperm.xlu0 %4207, %v4203
        %v4209 = vpop.permute.xlu0 %4208
        %v4210 = vlaneseq
        %v4211 = vshrl.u32 %v4210, 7
        %v4212 = vadd.s32 %v4211, 8
        %4213 = vset.pattern.permute.xlu0 %v4212
        %4214 = vperm.xlu0 %4213, %v4203
        %v4215 = vpop.permute.xlu0 %4214
        %v4216 = vperm.slane %v4174, 2
        %v4217 = vlaneseq
        %v4218 = vshrl.u32 %v4217, 7
        %4220 = vset.pattern.permute.xlu0 %v4218
        %4221 = vperm.xlu0 %4220, %v4216
        %v4222 = vpop.permute.xlu0 %4221
        %v4223 = vlaneseq
        %v4224 = vshrl.u32 %v4223, 7
        %v4225 = vadd.s32 %v4224, 8
        %4226 = vset.pattern.permute.xlu0 %v4225
        %4227 = vperm.xlu0 %4226, %v4216
        %v4228 = vpop.permute.xlu0 %4227
        %v4229 = vperm.slane %v4174, 3
        %v4230 = vlaneseq
        %v4231 = vshrl.u32 %v4230, 7
        %4233 = vset.pattern.permute.xlu0 %v4231
        %4234 = vperm.xlu0 %4233, %v4229
        %v4235 = vpop.permute.xlu0 %4234
        %v4236 = vlaneseq
        %v4237 = vshrl.u32 %v4236, 7
        %v4238 = vadd.s32 %v4237, 8
        %4239 = vset.pattern.permute.xlu0 %v4238
        %4240 = vperm.xlu0 %4239, %v4229
        %v4241 = vpop.permute.xlu0 %4240
        %v4242 = vperm.slane %v4174, 4
        %v4243 = vlaneseq
        %v4244 = vshrl.u32 %v4243, 7
        %4246 = vset.pattern.permute.xlu0 %v4244
        %4247 = vperm.xlu0 %4246, %v4242
        %v4248 = vpop.permute.xlu0 %4247
        %v4249 = vlaneseq
        %v4250 = vshrl.u32 %v4249, 7
        %v4251 = vadd.s32 %v4250, 8
        %4252 = vset.pattern.permute.xlu0 %v4251
        %4253 = vperm.xlu0 %4252, %v4242
        %v4254 = vpop.permute.xlu0 %4253
        %v4255 = vperm.slane %v4174, 5
        %v4256 = vlaneseq
        %v4257 = vshrl.u32 %v4256, 7
        %4259 = vset.pattern.permute.xlu0 %v4257
        %4260 = vperm.xlu0 %4259, %v4255
        %v4261 = vpop.permute.xlu0 %4260
        %v4262 = vlaneseq
        %v4263 = vshrl.u32 %v4262, 7
        %v4264 = vadd.s32 %v4263, 8
        %4265 = vset.pattern.permute.xlu0 %v4264
        %4266 = vperm.xlu0 %4265, %v4255
        %v4267 = vpop.permute.xlu0 %4266
        %v4268 = vperm.slane %v4174, 6
        %v4269 = vlaneseq
        %v4270 = vshrl.u32 %v4269, 7
        %4272 = vset.pattern.permute.xlu0 %v4270
        %4273 = vperm.xlu0 %4272, %v4268
        %v4274 = vpop.permute.xlu0 %4273
        %v4275 = vlaneseq
        %v4276 = vshrl.u32 %v4275, 7
        %v4277 = vadd.s32 %v4276, 8
        %4278 = vset.pattern.permute.xlu0 %v4277
        %4279 = vperm.xlu0 %4278, %v4268
        %v4280 = vpop.permute.xlu0 %4279
        %v4281 = vperm.slane %v4174, 7
        %v4282 = vlaneseq
        %v4283 = vshrl.u32 %v4282, 7
        %4285 = vset.pattern.permute.xlu0 %v4283
        %4286 = vperm.xlu0 %4285, %v4281
        %v4287 = vpop.permute.xlu0 %4286
        %v4288 = vlaneseq
        %v4289 = vshrl.u32 %v4288, 7
        %v4290 = vadd.s32 %v4289, 8
        %4291 = vset.pattern.permute.xlu0 %v4290
        %4292 = vperm.xlu0 %4291, %v4281
        %v4293 = vpop.permute.xlu0 %4292
        %v4294 = vperm.slane %v4175, 0
        %v4295 = vlaneseq
        %v4296 = vshrl.u32 %v4295, 7
        %4298 = vset.pattern.permute.xlu0 %v4296
        %4299 = vperm.xlu0 %4298, %v4294
        %v4300 = vpop.permute.xlu0 %4299
        %v4301 = vlaneseq
        %v4302 = vshrl.u32 %v4301, 7
        %v4303 = vadd.s32 %v4302, 8
        %4304 = vset.pattern.permute.xlu0 %v4303
        %4305 = vperm.xlu0 %4304, %v4294
        %v4306 = vpop.permute.xlu0 %4305
        %v4307 = vperm.slane %v4175, 1
        %v4308 = vlaneseq
        %v4309 = vshrl.u32 %v4308, 7
        %4311 = vset.pattern.permute.xlu0 %v4309
        %4312 = vperm.xlu0 %4311, %v4307
        %v4313 = vpop.permute.xlu0 %4312
        %v4314 = vlaneseq
        %v4315 = vshrl.u32 %v4314, 7
        %v4316 = vadd.s32 %v4315, 8
        %4317 = vset.pattern.permute.xlu0 %v4316
        %4318 = vperm.xlu0 %4317, %v4307
        %v4319 = vpop.permute.xlu0 %4318
        %v4320 = vperm.slane %v4175, 2
        %v4321 = vlaneseq
        %v4322 = vshrl.u32 %v4321, 7
        %4324 = vset.pattern.permute.xlu0 %v4322
        %4325 = vperm.xlu0 %4324, %v4320
        %v4326 = vpop.permute.xlu0 %4325
        %v4327 = vlaneseq
        %v4328 = vshrl.u32 %v4327, 7
        %v4329 = vadd.s32 %v4328, 8
        %4330 = vset.pattern.permute.xlu0 %v4329
        %4331 = vperm.xlu0 %4330, %v4320
        %v4332 = vpop.permute.xlu0 %4331
        %v4333 = vperm.slane %v4175, 3
        %v4334 = vlaneseq
        %v4335 = vshrl.u32 %v4334, 7
        %4337 = vset.pattern.permute.xlu0 %v4335
        %4338 = vperm.xlu0 %4337, %v4333
        %v4339 = vpop.permute.xlu0 %4338
        %v4340 = vlaneseq
        %v4341 = vshrl.u32 %v4340, 7
        %v4342 = vadd.s32 %v4341, 8
        %4343 = vset.pattern.permute.xlu0 %v4342
        %4344 = vperm.xlu0 %4343, %v4333
        %v4345 = vpop.permute.xlu0 %4344
        %v4346 = vperm.slane %v4175, 4
        %v4347 = vlaneseq
        %v4348 = vshrl.u32 %v4347, 7
        %4350 = vset.pattern.permute.xlu0 %v4348
        %4351 = vperm.xlu0 %4350, %v4346
        %v4352 = vpop.permute.xlu0 %4351
        %v4353 = vlaneseq
        %v4354 = vshrl.u32 %v4353, 7
        %v4355 = vadd.s32 %v4354, 8
        %4356 = vset.pattern.permute.xlu0 %v4355
        %4357 = vperm.xlu0 %4356, %v4346
        %v4358 = vpop.permute.xlu0 %4357
        %v4359 = vperm.slane %v4175, 5
        %v4360 = vlaneseq
        %v4361 = vshrl.u32 %v4360, 7
        %4363 = vset.pattern.permute.xlu0 %v4361
        %4364 = vperm.xlu0 %4363, %v4359
        %v4365 = vpop.permute.xlu0 %4364
        %v4366 = vlaneseq
        %v4367 = vshrl.u32 %v4366, 7
        %v4368 = vadd.s32 %v4367, 8
        %4369 = vset.pattern.permute.xlu0 %v4368
        %4370 = vperm.xlu0 %4369, %v4359
        %v4371 = vpop.permute.xlu0 %4370
        %v4372 = vperm.slane %v4175, 6
        %v4373 = vlaneseq
        %v4374 = vshrl.u32 %v4373, 7
        %4376 = vset.pattern.permute.xlu0 %v4374
        %4377 = vperm.xlu0 %4376, %v4372
        %v4378 = vpop.permute.xlu0 %4377
        %v4379 = vlaneseq
        %v4380 = vshrl.u32 %v4379, 7
        %v4381 = vadd.s32 %v4380, 8
        %4382 = vset.pattern.permute.xlu0 %v4381
        %4383 = vperm.xlu0 %4382, %v4372
        %v4384 = vpop.permute.xlu0 %4383
        %v4385 = vperm.slane %v4175, 7
        %v4386 = vlaneseq
        %v4387 = vshrl.u32 %v4386, 7
        %4389 = vset.pattern.permute.xlu0 %v4387
        %4390 = vperm.xlu0 %4389, %v4385
        %v4391 = vpop.permute.xlu0 %4390
        %v4392 = vlaneseq
        %v4393 = vshrl.u32 %v4392, 7
        %v4394 = vadd.s32 %v4393, 8
        %4395 = vset.pattern.permute.xlu0 %v4394
        %4396 = vperm.xlu0 %4395, %v4385
        %v4397 = vpop.permute.xlu0 %4396
        %v4398 = vsub.f32 %v2702, %v4196
        %v4399 = vsub.f32 %v2705, %v4202
        %v4400 = vsub.f32 %v2737, %v4209
        %v4401 = vsub.f32 %v2740, %v4215
        %v4402 = vsub.f32 %v2772, %v4222
        %v4403 = vsub.f32 %v2775, %v4228
        %v4404 = vsub.f32 %v2807, %v4235
        %v4405 = vsub.f32 %v2810, %v4241
        %v4406 = vsub.f32 %v2842, %v4248
        %v4407 = vsub.f32 %v2845, %v4254
        %v4408 = vsub.f32 %v2877, %v4261
        %v4409 = vsub.f32 %v2880, %v4267
        %v4410 = vsub.f32 %v2912, %v4274
        %v4411 = vsub.f32 %v2915, %v4280
        %v4412 = vsub.f32 %v2947, %v4287
        %v4413 = vsub.f32 %v2950, %v4293
        %v4414 = vsub.f32 %v2982, %v4300
        %v4415 = vsub.f32 %v2985, %v4306
        %v4416 = vsub.f32 %v3017, %v4313
        %v4417 = vsub.f32 %v3020, %v4319
        %v4418 = vsub.f32 %v3052, %v4326
        %v4419 = vsub.f32 %v3055, %v4332
        %v4420 = vsub.f32 %v3087, %v4339
        %v4421 = vsub.f32 %v3090, %v4345
        %v4422 = vsub.f32 %v3122, %v4352
        %v4423 = vsub.f32 %v3125, %v4358
        %v4424 = vsub.f32 %v3157, %v4365
        %v4425 = vsub.f32 %v3160, %v4371
        %v4426 = vsub.f32 %v3192, %v4378
        %v4427 = vsub.f32 %v3195, %v4384
        %v4428 = vsub.f32 %v3227, %v4391
        %v4429 = vsub.f32 %v3230, %v4397
        %v4430 = vmul.f32 %v4398, 1.442695
        %v4431 = vpow.pop %v4430
        %v4432 = vmul.f32 %v4399, 1.442695
        %v4433 = vpow.pop %v4432
        %v4434 = vmul.f32 %v4400, 1.442695
        %v4435 = vpow.pop %v4434
        %v4436 = vmul.f32 %v4401, 1.442695
        %v4437 = vpow.pop %v4436
        %v4438 = vmul.f32 %v4402, 1.442695
        %v4439 = vpow.pop %v4438
        %v4440 = vmul.f32 %v4403, 1.442695
        %v4441 = vpow.pop %v4440
        %v4442 = vmul.f32 %v4404, 1.442695
        %v4443 = vpow.pop %v4442
        %v4444 = vmul.f32 %v4405, 1.442695
        %v4445 = vpow.pop %v4444
        %v4446 = vmul.f32 %v4406, 1.442695
        %v4447 = vpow.pop %v4446
        %v4448 = vmul.f32 %v4407, 1.442695
        %v4449 = vpow.pop %v4448
        %v4450 = vmul.f32 %v4408, 1.442695
        %v4451 = vpow.pop %v4450
        %v4452 = vmul.f32 %v4409, 1.442695
        %v4453 = vpow.pop %v4452
        %v4454 = vmul.f32 %v4410, 1.442695
        %v4455 = vpow.pop %v4454
        %v4456 = vmul.f32 %v4411, 1.442695
        %v4457 = vpow.pop %v4456
        %v4458 = vmul.f32 %v4412, 1.442695
        %v4459 = vpow.pop %v4458
        %v4460 = vmul.f32 %v4413, 1.442695
        %v4461 = vpow.pop %v4460
        %v4462 = vmul.f32 %v4414, 1.442695
        %v4463 = vpow.pop %v4462
        %v4464 = vmul.f32 %v4415, 1.442695
        %v4465 = vpow.pop %v4464
        %v4466 = vmul.f32 %v4416, 1.442695
        %v4467 = vpow.pop %v4466
        %v4468 = vmul.f32 %v4417, 1.442695
        %v4469 = vpow.pop %v4468
        %v4470 = vmul.f32 %v4418, 1.442695
        %v4471 = vpow.pop %v4470
        %v4472 = vmul.f32 %v4419, 1.442695
        %v4473 = vpow.pop %v4472
        %v4474 = vmul.f32 %v4420, 1.442695
        %v4475 = vpow.pop %v4474
        %v4476 = vmul.f32 %v4421, 1.442695
        %v4477 = vpow.pop %v4476
        %v4478 = vmul.f32 %v4422, 1.442695
        %v4479 = vpow.pop %v4478
        %v4480 = vmul.f32 %v4423, 1.442695
        %v4481 = vpow.pop %v4480
        %v4482 = vmul.f32 %v4424, 1.442695
        %v4483 = vpow.pop %v4482
        %v4484 = vmul.f32 %v4425, 1.442695
        %v4485 = vpow.pop %v4484
        %v4486 = vmul.f32 %v4426, 1.442695
        %v4487 = vpow.pop %v4486
        %v4488 = vmul.f32 %v4427, 1.442695
        %v4489 = vpow.pop %v4488
        %v4490 = vmul.f32 %v4428, 1.442695
        %v4491 = vpow.pop %v4490
        %v4492 = vmul.f32 %v4429, 1.442695
        %v4493 = vpow.pop %v4492
        %v4494 = vsel %vm3232, %v4031, 0.0
        %4495 = vadd.xlane.f32.xlu0 %v4494
        %v4496 = vpop.xlane.xlu0 %4495
        %v4497 = vsel %vm3232, %v4033, 0.0
        %4498 = vadd.xlane.f32.xlu0 %v4497
        %v4499 = vpop.xlane.xlu0 %4498
        %v4500 = vsel %vm3232, %v4035, 0.0
        %4501 = vadd.xlane.f32.xlu0 %v4500
        %v4502 = vpop.xlane.xlu0 %4501
        %v4503 = vsel %vm3232, %v4037, 0.0
        %4504 = vadd.xlane.f32.xlu0 %v4503
        %v4505 = vpop.xlane.xlu0 %4504
        %v4506 = vsel %vm3232, %v4039, 0.0
        %4507 = vadd.xlane.f32.xlu0 %v4506
        %v4508 = vpop.xlane.xlu0 %4507
        %v4509 = vsel %vm3232, %v4041, 0.0
        %4510 = vadd.xlane.f32.xlu0 %v4509
        %v4511 = vpop.xlane.xlu0 %4510
        %v4512 = vsel %vm3232, %v4043, 0.0
        %4513 = vadd.xlane.f32.xlu0 %v4512
        %v4514 = vpop.xlane.xlu0 %4513
        %v4515 = vsel %vm3232, %v4045, 0.0
        %4516 = vadd.xlane.f32.xlu0 %v4515
        %v4517 = vpop.xlane.xlu0 %4516
        %v4518 = vsel %vm3232, %v4047, 0.0
        %4519 = vadd.xlane.f32.xlu0 %v4518
        %v4520 = vpop.xlane.xlu0 %4519
        %v4521 = vsel %vm3232, %v4049, 0.0
        %4522 = vadd.xlane.f32.xlu0 %v4521
        %v4523 = vpop.xlane.xlu0 %4522
        %v4524 = vsel %vm3232, %v4051, 0.0
        %4525 = vadd.xlane.f32.xlu0 %v4524
        %v4526 = vpop.xlane.xlu0 %4525
        %v4527 = vsel %vm3232, %v4053, 0.0
        %4528 = vadd.xlane.f32.xlu0 %v4527
        %v4529 = vpop.xlane.xlu0 %4528
        %v4530 = vsel %vm3232, %v4055, 0.0
        %4531 = vadd.xlane.f32.xlu0 %v4530
        %v4532 = vpop.xlane.xlu0 %4531
        %v4533 = vsel %vm3232, %v4057, 0.0
        %4534 = vadd.xlane.f32.xlu0 %v4533
        %v4535 = vpop.xlane.xlu0 %4534
        %v4536 = vsel %vm3232, %v4059, 0.0
        %4537 = vadd.xlane.f32.xlu0 %v4536
        %v4538 = vpop.xlane.xlu0 %4537
        %v4539 = vsel %vm3232, %v4061, 0.0
        %4540 = vadd.xlane.f32.xlu0 %v4539
        %v4541 = vpop.xlane.xlu0 %4540
        %v4542 = vsel %vm3232, %v4063, 0.0
        %4543 = vadd.xlane.f32.xlu0 %v4542
        %v4544 = vpop.xlane.xlu0 %4543
        %v4545 = vsel %vm3232, %v4065, 0.0
        %4546 = vadd.xlane.f32.xlu0 %v4545
        %v4547 = vpop.xlane.xlu0 %4546
        %v4548 = vsel %vm3232, %v4067, 0.0
        %4549 = vadd.xlane.f32.xlu0 %v4548
        %v4550 = vpop.xlane.xlu0 %4549
        %v4551 = vsel %vm3232, %v4069, 0.0
        %4552 = vadd.xlane.f32.xlu0 %v4551
        %v4553 = vpop.xlane.xlu0 %4552
        %v4554 = vsel %vm3232, %v4071, 0.0
        %4555 = vadd.xlane.f32.xlu0 %v4554
        %v4556 = vpop.xlane.xlu0 %4555
        %v4557 = vsel %vm3232, %v4073, 0.0
        %4558 = vadd.xlane.f32.xlu0 %v4557
        %v4559 = vpop.xlane.xlu0 %4558
        %v4560 = vsel %vm3232, %v4075, 0.0
        %4561 = vadd.xlane.f32.xlu0 %v4560
        %v4562 = vpop.xlane.xlu0 %4561
        %v4563 = vsel %vm3232, %v4077, 0.0
        %4564 = vadd.xlane.f32.xlu0 %v4563
        %v4565 = vpop.xlane.xlu0 %4564
        %v4566 = vsel %vm3232, %v4079, 0.0
        %4567 = vadd.xlane.f32.xlu0 %v4566
        %v4568 = vpop.xlane.xlu0 %4567
        %v4569 = vsel %vm3232, %v4081, 0.0
        %4570 = vadd.xlane.f32.xlu0 %v4569
        %v4571 = vpop.xlane.xlu0 %4570
        %v4572 = vsel %vm3232, %v4083, 0.0
        %4573 = vadd.xlane.f32.xlu0 %v4572
        %v4574 = vpop.xlane.xlu0 %4573
        %v4575 = vsel %vm3232, %v4085, 0.0
        %4576 = vadd.xlane.f32.xlu0 %v4575
        %v4577 = vpop.xlane.xlu0 %4576
        %v4578 = vsel %vm3232, %v4087, 0.0
        %4579 = vadd.xlane.f32.xlu0 %v4578
        %v4580 = vpop.xlane.xlu0 %4579
        %v4581 = vsel %vm3232, %v4089, 0.0
        %4582 = vadd.xlane.f32.xlu0 %v4581
        %v4583 = vpop.xlane.xlu0 %4582
        %v4584 = vsel %vm3232, %v4091, 0.0
        %4585 = vadd.xlane.f32.xlu0 %v4584
        %v4586 = vpop.xlane.xlu0 %4585
        %v4587 = vsel %vm3232, %v4093, 0.0
        %4588 = vadd.xlane.f32.xlu0 %v4587
        %v4589 = vpop.xlane.xlu0 %4588
        %v4590 = vsel %vm3232, %v4431, 0.0
        %4591 = vadd.xlane.f32.xlu0 %v4590
        %v4592 = vpop.xlane.xlu0 %4591
        %v4593 = vsel %vm3232, %v4433, 0.0
        %4594 = vadd.xlane.f32.xlu0 %v4593
        %v4595 = vpop.xlane.xlu0 %4594
        %v4596 = vsel %vm3232, %v4435, 0.0
        %4597 = vadd.xlane.f32.xlu0 %v4596
        %v4598 = vpop.xlane.xlu0 %4597
        %v4599 = vsel %vm3232, %v4437, 0.0
        %4600 = vadd.xlane.f32.xlu0 %v4599
        %v4601 = vpop.xlane.xlu0 %4600
        %v4602 = vsel %vm3232, %v4439, 0.0
        %4603 = vadd.xlane.f32.xlu0 %v4602
        %v4604 = vpop.xlane.xlu0 %4603
        %v4605 = vsel %vm3232, %v4441, 0.0
        %4606 = vadd.xlane.f32.xlu0 %v4605
        %v4607 = vpop.xlane.xlu0 %4606
        %v4608 = vsel %vm3232, %v4443, 0.0
        %4609 = vadd.xlane.f32.xlu0 %v4608
        %v4610 = vpop.xlane.xlu0 %4609
        %v4611 = vsel %vm3232, %v4445, 0.0
        %4612 = vadd.xlane.f32.xlu0 %v4611
        %v4613 = vpop.xlane.xlu0 %4612
        %v4614 = vsel %vm3232, %v4447, 0.0
        %4615 = vadd.xlane.f32.xlu0 %v4614
        %v4616 = vpop.xlane.xlu0 %4615
        %v4617 = vsel %vm3232, %v4449, 0.0
        %4618 = vadd.xlane.f32.xlu0 %v4617
        %v4619 = vpop.xlane.xlu0 %4618
        %v4620 = vsel %vm3232, %v4451, 0.0
        %4621 = vadd.xlane.f32.xlu0 %v4620
        %v4622 = vpop.xlane.xlu0 %4621
        %v4623 = vsel %vm3232, %v4453, 0.0
        %4624 = vadd.xlane.f32.xlu0 %v4623
        %v4625 = vpop.xlane.xlu0 %4624
        %v4626 = vsel %vm3232, %v4455, 0.0
        %4627 = vadd.xlane.f32.xlu0 %v4626
        %v4628 = vpop.xlane.xlu0 %4627
        %v4629 = vsel %vm3232, %v4457, 0.0
        %4630 = vadd.xlane.f32.xlu0 %v4629
        %v4631 = vpop.xlane.xlu0 %4630
        %v4632 = vsel %vm3232, %v4459, 0.0
        %4633 = vadd.xlane.f32.xlu0 %v4632
        %v4634 = vpop.xlane.xlu0 %4633
        %v4635 = vsel %vm3232, %v4461, 0.0
        %4636 = vadd.xlane.f32.xlu0 %v4635
        %v4637 = vpop.xlane.xlu0 %4636
        %v4638 = vsel %vm3232, %v4463, 0.0
        %4639 = vadd.xlane.f32.xlu0 %v4638
        %v4640 = vpop.xlane.xlu0 %4639
        %v4641 = vsel %vm3232, %v4465, 0.0
        %4642 = vadd.xlane.f32.xlu0 %v4641
        %v4643 = vpop.xlane.xlu0 %4642
        %v4644 = vsel %vm3232, %v4467, 0.0
        %4645 = vadd.xlane.f32.xlu0 %v4644
        %v4646 = vpop.xlane.xlu0 %4645
        %v4647 = vsel %vm3232, %v4469, 0.0
        %4648 = vadd.xlane.f32.xlu0 %v4647
        %v4649 = vpop.xlane.xlu0 %4648
        %v4650 = vsel %vm3232, %v4471, 0.0
        %4651 = vadd.xlane.f32.xlu0 %v4650
        %v4652 = vpop.xlane.xlu0 %4651
        %v4653 = vsel %vm3232, %v4473, 0.0
        %4654 = vadd.xlane.f32.xlu0 %v4653
        %v4655 = vpop.xlane.xlu0 %4654
        %v4656 = vsel %vm3232, %v4475, 0.0
        %4657 = vadd.xlane.f32.xlu0 %v4656
        %v4658 = vpop.xlane.xlu0 %4657
        %v4659 = vsel %vm3232, %v4477, 0.0
        %4660 = vadd.xlane.f32.xlu0 %v4659
        %v4661 = vpop.xlane.xlu0 %4660
        %v4662 = vsel %vm3232, %v4479, 0.0
        %4663 = vadd.xlane.f32.xlu0 %v4662
        %v4664 = vpop.xlane.xlu0 %4663
        %v4665 = vsel %vm3232, %v4481, 0.0
        %4666 = vadd.xlane.f32.xlu0 %v4665
        %v4667 = vpop.xlane.xlu0 %4666
        %v4668 = vsel %vm3232, %v4483, 0.0
        %4669 = vadd.xlane.f32.xlu0 %v4668
        %v4670 = vpop.xlane.xlu0 %4669
        %v4671 = vsel %vm3232, %v4485, 0.0
        %4672 = vadd.xlane.f32.xlu0 %v4671
        %v4673 = vpop.xlane.xlu0 %4672
        %v4674 = vsel %vm3232, %v4487, 0.0
        %4675 = vadd.xlane.f32.xlu0 %v4674
        %v4676 = vpop.xlane.xlu0 %4675
        %v4677 = vsel %vm3232, %v4489, 0.0
        %4678 = vadd.xlane.f32.xlu0 %v4677
        %v4679 = vpop.xlane.xlu0 %4678
        %v4680 = vsel %vm3232, %v4491, 0.0
        %4681 = vadd.xlane.f32.xlu0 %v4680
        %v4682 = vpop.xlane.xlu0 %4681
        %v4683 = vsel %vm3232, %v4493, 0.0
        %4684 = vadd.xlane.f32.xlu0 %v4683
        %v4685 = vpop.xlane.xlu0 %4684
        %v4718 = vperm.slane %v4592, %v3458
        %v4719 = vperm.slane %v4595, %v3460
        %v4720 = vsel %vm3462, %v4719, %v4718
        %v4721 = vperm.slane %v4598, %v3458
        %v4722 = vperm.slane %v4601, %v3460
        %v4723 = vsel %vm3462, %v4722, %v4721
        %v4724 = vperm.slane %v4604, %v3458
        %v4725 = vperm.slane %v4607, %v3460
        %v4726 = vsel %vm3462, %v4725, %v4724
        %v4727 = vperm.slane %v4610, %v3458
        %v4728 = vperm.slane %v4613, %v3460
        %v4729 = vsel %vm3462, %v4728, %v4727
        %v4730 = vperm.slane %v4616, %v3458
        %v4731 = vperm.slane %v4619, %v3460
        %v4732 = vsel %vm3462, %v4731, %v4730
        %v4733 = vperm.slane %v4622, %v3458
        %v4734 = vperm.slane %v4625, %v3460
        %v4735 = vsel %vm3462, %v4734, %v4733
        %v4736 = vperm.slane %v4628, %v3458
        %v4737 = vperm.slane %v4631, %v3460
        %v4738 = vsel %vm3462, %v4737, %v4736
        %v4739 = vperm.slane %v4634, %v3458
        %v4740 = vperm.slane %v4637, %v3460
        %v4741 = vsel %vm3462, %v4740, %v4739
        %v4742 = vperm.slane %v4640, %v3458
        %v4743 = vperm.slane %v4643, %v3460
        %v4744 = vsel %vm3462, %v4743, %v4742
        %v4745 = vperm.slane %v4646, %v3458
        %v4746 = vperm.slane %v4649, %v3460
        %v4747 = vsel %vm3462, %v4746, %v4745
        %v4748 = vperm.slane %v4652, %v3458
        %v4749 = vperm.slane %v4655, %v3460
        %v4750 = vsel %vm3462, %v4749, %v4748
        %v4751 = vperm.slane %v4658, %v3458
        %v4752 = vperm.slane %v4661, %v3460
        %v4753 = vsel %vm3462, %v4752, %v4751
        %v4754 = vperm.slane %v4664, %v3458
        %v4755 = vperm.slane %v4667, %v3460
        %v4756 = vsel %vm3462, %v4755, %v4754
        %v4757 = vperm.slane %v4670, %v3458
        %v4758 = vperm.slane %v4673, %v3460
        %v4759 = vsel %vm3462, %v4758, %v4757
        %v4760 = vperm.slane %v4676, %v3458
        %v4761 = vperm.slane %v4679, %v3460
        %v4762 = vsel %vm3462, %v4761, %v4760
        %v4763 = vperm.slane %v4682, %v3458
        %v4764 = vperm.slane %v4685, %v3460
        %v4765 = vsel %vm3462, %v4764, %v4763
        %v4766 = vsel %vm3509, %v4723, %v4720
        %v4767 = vsel %vm3511, %v4726, %v4766
        %v4768 = vsel %vm3513, %v4729, %v4767
        %v4769 = vsel %vm3515, %v4732, %v4768
        %v4770 = vsel %vm3517, %v4735, %v4769
        %v4771 = vsel %vm3519, %v4738, %v4770
        %v4772 = vsel %vm3521, %v4741, %v4771
        %v4773 = vsel %vm3509, %v4747, %v4744
        %v4774 = vsel %vm3511, %v4750, %v4773
        %v4775 = vsel %vm3513, %v4753, %v4774
        %v4776 = vsel %vm3515, %v4756, %v4775
        %v4777 = vsel %vm3517, %v4759, %v4776
        %v4778 = vsel %vm3519, %v4762, %v4777
        %v4779 = vsel %vm3521, %v4765, %v4778
        %4782 = vxpose.xlu0.b32.start [1/16] %v4772, 128
        %4783 = vxpose.xlu0.b32.cont [2/16] %v4779, 128
        %4784 = vxpose.xlu0.b32.cont [3/16] 0.0, 128
        %4785 = vxpose.xlu0.b32.cont [4/16] 0.0, 128
        %4786 = vxpose.xlu0.b32.cont [5/16] 0.0, 128
        %4787 = vxpose.xlu0.b32.cont [6/16] 0.0, 128
        %4788 = vxpose.xlu0.b32.cont [7/16] 0.0, 128
        %4789 = vxpose.xlu0.b32.cont [8/16] 0.0, 128
        %4790 = vxpose.xlu0.b32.cont [9/16] 0.0, 128
        %4791 = vxpose.xlu0.b32.cont [10/16] 0.0, 128
        %4792 = vxpose.xlu0.b32.cont [11/16] 0.0, 128
        %4793 = vxpose.xlu0.b32.cont [12/16] 0.0, 128
        %4794 = vxpose.xlu0.b32.cont [13/16] 0.0, 128
        %4795 = vxpose.xlu0.b32.cont [14/16] 0.0, 128
        %4796 = vxpose.xlu0.b32.cont [15/16] 0.0, 128
        %4797 = vxpose.xlu0.b32.end [16/16] 0.0, 128
        %v4798 = vpop.trf.xlu0
        %v4799 = vpop.trf.xlu0
        %v4800 = vpop.trf.xlu0
        %v4801 = vpop.trf.xlu0
        %v4802 = vpop.trf.xlu0
        %v4803 = vpop.trf.xlu0
        %v4804 = vpop.trf.xlu0
        %v4805 = vpop.trf.xlu0
        %v4806 = vpop.trf.xlu0
        %v4807 = vpop.trf.xlu0
        %v4808 = vpop.trf.xlu0
        %v4809 = vpop.trf.xlu0
        %v4810 = vpop.trf.xlu0
        %v4811 = vpop.trf.xlu0
        %v4812 = vpop.trf.xlu0
        %v4813 = vpop.trf.xlu0
        %v4816 = vperm.slane %v4798, 0
        %v4817 = vlaneseq
        %v4818 = vshrl.u32 %v4817, 7
        %4820 = vset.pattern.permute.xlu0 %v4818
        %4821 = vperm.xlu0 %4820, %v4816
        %v4822 = vpop.permute.xlu0 %4821
        %v4823 = vlaneseq
        %v4824 = vshrl.u32 %v4823, 7
        %v4825 = vadd.s32 %v4824, 8
        %4826 = vset.pattern.permute.xlu0 %v4825
        %4827 = vperm.xlu0 %4826, %v4816
        %v4828 = vpop.permute.xlu0 %4827
        %v4829 = vperm.slane %v4798, 1
        %v4830 = vlaneseq
        %v4831 = vshrl.u32 %v4830, 7
        %4833 = vset.pattern.permute.xlu0 %v4831
        %4834 = vperm.xlu0 %4833, %v4829
        %v4835 = vpop.permute.xlu0 %4834
        %v4836 = vlaneseq
        %v4837 = vshrl.u32 %v4836, 7
        %v4838 = vadd.s32 %v4837, 8
        %4839 = vset.pattern.permute.xlu0 %v4838
        %4840 = vperm.xlu0 %4839, %v4829
        %v4841 = vpop.permute.xlu0 %4840
        %v4842 = vperm.slane %v4798, 2
        %v4843 = vlaneseq
        %v4844 = vshrl.u32 %v4843, 7
        %4846 = vset.pattern.permute.xlu0 %v4844
        %4847 = vperm.xlu0 %4846, %v4842
        %v4848 = vpop.permute.xlu0 %4847
        %v4849 = vlaneseq
        %v4850 = vshrl.u32 %v4849, 7
        %v4851 = vadd.s32 %v4850, 8
        %4852 = vset.pattern.permute.xlu0 %v4851
        %4853 = vperm.xlu0 %4852, %v4842
        %v4854 = vpop.permute.xlu0 %4853
        %v4855 = vperm.slane %v4798, 3
        %v4856 = vlaneseq
        %v4857 = vshrl.u32 %v4856, 7
        %4859 = vset.pattern.permute.xlu0 %v4857
        %4860 = vperm.xlu0 %4859, %v4855
        %v4861 = vpop.permute.xlu0 %4860
        %v4862 = vlaneseq
        %v4863 = vshrl.u32 %v4862, 7
        %v4864 = vadd.s32 %v4863, 8
        %4865 = vset.pattern.permute.xlu0 %v4864
        %4866 = vperm.xlu0 %4865, %v4855
        %v4867 = vpop.permute.xlu0 %4866
        %v4868 = vperm.slane %v4798, 4
        %v4869 = vlaneseq
        %v4870 = vshrl.u32 %v4869, 7
        %4872 = vset.pattern.permute.xlu0 %v4870
        %4873 = vperm.xlu0 %4872, %v4868
        %v4874 = vpop.permute.xlu0 %4873
        %v4875 = vlaneseq
        %v4876 = vshrl.u32 %v4875, 7
        %v4877 = vadd.s32 %v4876, 8
        %4878 = vset.pattern.permute.xlu0 %v4877
        %4879 = vperm.xlu0 %4878, %v4868
        %v4880 = vpop.permute.xlu0 %4879
        %v4881 = vperm.slane %v4798, 5
        %v4882 = vlaneseq
        %v4883 = vshrl.u32 %v4882, 7
        %4885 = vset.pattern.permute.xlu0 %v4883
        %4886 = vperm.xlu0 %4885, %v4881
        %v4887 = vpop.permute.xlu0 %4886
        %v4888 = vlaneseq
        %v4889 = vshrl.u32 %v4888, 7
        %v4890 = vadd.s32 %v4889, 8
        %4891 = vset.pattern.permute.xlu0 %v4890
        %4892 = vperm.xlu0 %4891, %v4881
        %v4893 = vpop.permute.xlu0 %4892
        %v4894 = vperm.slane %v4798, 6
        %v4895 = vlaneseq
        %v4896 = vshrl.u32 %v4895, 7
        %4898 = vset.pattern.permute.xlu0 %v4896
        %4899 = vperm.xlu0 %4898, %v4894
        %v4900 = vpop.permute.xlu0 %4899
        %v4901 = vlaneseq
        %v4902 = vshrl.u32 %v4901, 7
        %v4903 = vadd.s32 %v4902, 8
        %4904 = vset.pattern.permute.xlu0 %v4903
        %4905 = vperm.xlu0 %4904, %v4894
        %v4906 = vpop.permute.xlu0 %4905
        %v4907 = vperm.slane %v4798, 7
        %v4908 = vlaneseq
        %v4909 = vshrl.u32 %v4908, 7
        %4911 = vset.pattern.permute.xlu0 %v4909
        %4912 = vperm.xlu0 %4911, %v4907
        %v4913 = vpop.permute.xlu0 %4912
        %v4914 = vlaneseq
        %v4915 = vshrl.u32 %v4914, 7
        %v4916 = vadd.s32 %v4915, 8
        %4917 = vset.pattern.permute.xlu0 %v4916
        %4918 = vperm.xlu0 %4917, %v4907
        %v4919 = vpop.permute.xlu0 %4918
        %v4920 = vperm.slane %v4799, 0
        %v4921 = vlaneseq
        %v4922 = vshrl.u32 %v4921, 7
        %4924 = vset.pattern.permute.xlu0 %v4922
        %4925 = vperm.xlu0 %4924, %v4920
        %v4926 = vpop.permute.xlu0 %4925
        %v4927 = vlaneseq
        %v4928 = vshrl.u32 %v4927, 7
        %v4929 = vadd.s32 %v4928, 8
        %4930 = vset.pattern.permute.xlu0 %v4929
        %4931 = vperm.xlu0 %4930, %v4920
        %v4932 = vpop.permute.xlu0 %4931
        %v4933 = vperm.slane %v4799, 1
        %v4934 = vlaneseq
        %v4935 = vshrl.u32 %v4934, 7
        %4937 = vset.pattern.permute.xlu0 %v4935
        %4938 = vperm.xlu0 %4937, %v4933
        %v4939 = vpop.permute.xlu0 %4938
        %v4940 = vlaneseq
        %v4941 = vshrl.u32 %v4940, 7
        %v4942 = vadd.s32 %v4941, 8
        %4943 = vset.pattern.permute.xlu0 %v4942
        %4944 = vperm.xlu0 %4943, %v4933
        %v4945 = vpop.permute.xlu0 %4944
        %v4946 = vperm.slane %v4799, 2
        %v4947 = vlaneseq
        %v4948 = vshrl.u32 %v4947, 7
        %4950 = vset.pattern.permute.xlu0 %v4948
        %4951 = vperm.xlu0 %4950, %v4946
        %v4952 = vpop.permute.xlu0 %4951
        %v4953 = vlaneseq
        %v4954 = vshrl.u32 %v4953, 7
        %v4955 = vadd.s32 %v4954, 8
        %4956 = vset.pattern.permute.xlu0 %v4955
        %4957 = vperm.xlu0 %4956, %v4946
        %v4958 = vpop.permute.xlu0 %4957
        %v4959 = vperm.slane %v4799, 3
        %v4960 = vlaneseq
        %v4961 = vshrl.u32 %v4960, 7
        %4963 = vset.pattern.permute.xlu0 %v4961
        %4964 = vperm.xlu0 %4963, %v4959
        %v4965 = vpop.permute.xlu0 %4964
        %v4966 = vlaneseq
        %v4967 = vshrl.u32 %v4966, 7
        %v4968 = vadd.s32 %v4967, 8
        %4969 = vset.pattern.permute.xlu0 %v4968
        %4970 = vperm.xlu0 %4969, %v4959
        %v4971 = vpop.permute.xlu0 %4970
        %v4972 = vperm.slane %v4799, 4
        %v4973 = vlaneseq
        %v4974 = vshrl.u32 %v4973, 7
        %4976 = vset.pattern.permute.xlu0 %v4974
        %4977 = vperm.xlu0 %4976, %v4972
        %v4978 = vpop.permute.xlu0 %4977
        %v4979 = vlaneseq
        %v4980 = vshrl.u32 %v4979, 7
        %v4981 = vadd.s32 %v4980, 8
        %4982 = vset.pattern.permute.xlu0 %v4981
        %4983 = vperm.xlu0 %4982, %v4972
        %v4984 = vpop.permute.xlu0 %4983
        %v4985 = vperm.slane %v4799, 5
        %v4986 = vlaneseq
        %v4987 = vshrl.u32 %v4986, 7
        %4989 = vset.pattern.permute.xlu0 %v4987
        %4990 = vperm.xlu0 %4989, %v4985
        %v4991 = vpop.permute.xlu0 %4990
        %v4992 = vlaneseq
        %v4993 = vshrl.u32 %v4992, 7
        %v4994 = vadd.s32 %v4993, 8
        %4995 = vset.pattern.permute.xlu0 %v4994
        %4996 = vperm.xlu0 %4995, %v4985
        %v4997 = vpop.permute.xlu0 %4996
        %v4998 = vperm.slane %v4799, 6
        %v4999 = vlaneseq
        %v5000 = vshrl.u32 %v4999, 7
        %5002 = vset.pattern.permute.xlu0 %v5000
        %5003 = vperm.xlu0 %5002, %v4998
        %v5004 = vpop.permute.xlu0 %5003
        %v5005 = vlaneseq
        %v5006 = vshrl.u32 %v5005, 7
        %v5007 = vadd.s32 %v5006, 8
        %5008 = vset.pattern.permute.xlu0 %v5007
        %5009 = vperm.xlu0 %5008, %v4998
        %v5010 = vpop.permute.xlu0 %5009
        %v5011 = vperm.slane %v4799, 7
        %v5012 = vlaneseq
        %v5013 = vshrl.u32 %v5012, 7
        %5015 = vset.pattern.permute.xlu0 %v5013
        %5016 = vperm.xlu0 %5015, %v5011
        %v5017 = vpop.permute.xlu0 %5016
        %v5018 = vlaneseq
        %v5019 = vshrl.u32 %v5018, 7
        %v5020 = vadd.s32 %v5019, 8
        %5021 = vset.pattern.permute.xlu0 %v5020
        %5022 = vperm.xlu0 %5021, %v5011
        %v5023 = vpop.permute.xlu0 %5022
        %v5056 = vadd.f32 %v4496, %v4822
        %v5057 = vadd.f32 %v4499, %v4828
        %v5058 = vadd.f32 %v4502, %v4835
        %v5059 = vadd.f32 %v4505, %v4841
        %v5060 = vadd.f32 %v4508, %v4848
        %v5061 = vadd.f32 %v4511, %v4854
        %v5062 = vadd.f32 %v4514, %v4861
        %v5063 = vadd.f32 %v4517, %v4867
        %v5064 = vadd.f32 %v4520, %v4874
        %v5065 = vadd.f32 %v4523, %v4880
        %v5066 = vadd.f32 %v4526, %v4887
        %v5067 = vadd.f32 %v4529, %v4893
        %v5068 = vadd.f32 %v4532, %v4900
        %v5069 = vadd.f32 %v4535, %v4906
        %v5070 = vadd.f32 %v4538, %v4913
        %v5071 = vadd.f32 %v4541, %v4919
        %v5072 = vadd.f32 %v4544, %v4926
        %v5073 = vadd.f32 %v4547, %v4932
        %v5074 = vadd.f32 %v4550, %v4939
        %v5075 = vadd.f32 %v4553, %v4945
        %v5076 = vadd.f32 %v4556, %v4952
        %v5077 = vadd.f32 %v4559, %v4958
        %v5078 = vadd.f32 %v4562, %v4965
        %v5079 = vadd.f32 %v4565, %v4971
        %v5080 = vadd.f32 %v4568, %v4978
        %v5081 = vadd.f32 %v4571, %v4984
        %v5082 = vadd.f32 %v4574, %v4991
        %v5083 = vadd.f32 %v4577, %v4997
        %v5084 = vadd.f32 %v4580, %v5004
        %v5085 = vadd.f32 %v4583, %v5010
        %v5086 = vadd.f32 %v4586, %v5017
        %v5087 = vadd.f32 %v4589, %v5023
        %s5088 = sld [smem:[#allocation2]]
        %v5089 = vrcp.pop %v5056
        %v5090 = vrcp.pop %v5057
        %v5091 = vrcp.pop %v5058
        %v5092 = vrcp.pop %v5059
        %v5093 = vrcp.pop %v5060
        %v5094 = vrcp.pop %v5061
        %v5095 = vrcp.pop %v5062
        %v5096 = vrcp.pop %v5063
        %v5097 = vrcp.pop %v5064
        %v5098 = vrcp.pop %v5065
        %v5099 = vrcp.pop %v5066
        %v5100 = vrcp.pop %v5067
        %v5101 = vrcp.pop %v5068
        %v5102 = vrcp.pop %v5069
        %v5103 = vrcp.pop %v5070
        %v5104 = vrcp.pop %v5071
        %v5105 = vrcp.pop %v5072
        %v5106 = vrcp.pop %v5073
        %v5107 = vrcp.pop %v5074
        %v5108 = vrcp.pop %v5075
        %v5109 = vrcp.pop %v5076
        %v5110 = vrcp.pop %v5077
        %v5111 = vrcp.pop %v5078
        %v5112 = vrcp.pop %v5079
        %v5113 = vrcp.pop %v5080
        %v5114 = vrcp.pop %v5081
        %v5115 = vrcp.pop %v5082
        %v5116 = vrcp.pop %v5083
        %v5117 = vrcp.pop %v5084
        %v5118 = vrcp.pop %v5085
        %v5119 = vrcp.pop %v5086
        %v5120 = vrcp.pop %v5087
        %v5121 = vstv %s5088
        %v5122 = vmul.f32 %v5121, %v5089
        %v5123 = vmul.f32 %v5121, %v5090
        %v5124 = vmul.f32 %v5121, %v5091
        %v5125 = vmul.f32 %v5121, %v5092
        %v5126 = vmul.f32 %v5121, %v5093
        %v5127 = vmul.f32 %v5121, %v5094
        %v5128 = vmul.f32 %v5121, %v5095
        %v5129 = vmul.f32 %v5121, %v5096
        %v5130 = vmul.f32 %v5121, %v5097
        %v5131 = vmul.f32 %v5121, %v5098
        %v5132 = vmul.f32 %v5121, %v5099
        %v5133 = vmul.f32 %v5121, %v5100
        %v5134 = vmul.f32 %v5121, %v5101
        %v5135 = vmul.f32 %v5121, %v5102
        %v5136 = vmul.f32 %v5121, %v5103
        %v5137 = vmul.f32 %v5121, %v5104
        %v5138 = vmul.f32 %v5121, %v5105
        %v5139 = vmul.f32 %v5121, %v5106
        %v5140 = vmul.f32 %v5121, %v5107
        %v5141 = vmul.f32 %v5121, %v5108
        %v5142 = vmul.f32 %v5121, %v5109
        %v5143 = vmul.f32 %v5121, %v5110
        %v5144 = vmul.f32 %v5121, %v5111
        %v5145 = vmul.f32 %v5121, %v5112
        %v5146 = vmul.f32 %v5121, %v5113
        %v5147 = vmul.f32 %v5121, %v5114
        %v5148 = vmul.f32 %v5121, %v5115
        %v5149 = vmul.f32 %v5121, %v5116
        %v5150 = vmul.f32 %v5121, %v5117
        %v5151 = vmul.f32 %v5121, %v5118
        %v5152 = vmul.f32 %v5121, %v5119
        %v5153 = vmul.f32 %v5121, %v5120
        %v5154 = vpack.c.bf16 %v4031, %v4031
        %v5155 = vpack.c.bf16 %v4033, %v4033
        %v5156 = vpack.c.bf16 %v4035, %v4035
        %v5157 = vpack.c.bf16 %v4037, %v4037
        %v5158 = vpack.c.bf16 %v4039, %v4039
        %v5159 = vpack.c.bf16 %v4041, %v4041
        %v5160 = vpack.c.bf16 %v4043, %v4043
        %v5161 = vpack.c.bf16 %v4045, %v4045
        %v5162 = vpack.c.bf16 %v4047, %v4047
        %v5163 = vpack.c.bf16 %v4049, %v4049
        %v5164 = vpack.c.bf16 %v4051, %v4051
        %v5165 = vpack.c.bf16 %v4053, %v4053
        %v5166 = vpack.c.bf16 %v4055, %v4055
        %v5167 = vpack.c.bf16 %v4057, %v4057
        %v5168 = vpack.c.bf16 %v4059, %v4059
        %v5169 = vpack.c.bf16 %v4061, %v4061
        %v5170 = vpack.c.bf16 %v4063, %v4063
        %v5171 = vpack.c.bf16 %v4065, %v4065
        %v5172 = vpack.c.bf16 %v4067, %v4067
        %v5173 = vpack.c.bf16 %v4069, %v4069
        %v5174 = vpack.c.bf16 %v4071, %v4071
        %v5175 = vpack.c.bf16 %v4073, %v4073
        %v5176 = vpack.c.bf16 %v4075, %v4075
        %v5177 = vpack.c.bf16 %v4077, %v4077
        %v5178 = vpack.c.bf16 %v4079, %v4079
        %v5179 = vpack.c.bf16 %v4081, %v4081
        %v5180 = vpack.c.bf16 %v4083, %v4083
        %v5181 = vpack.c.bf16 %v4085, %v4085
        %v5182 = vpack.c.bf16 %v4087, %v4087
        %v5183 = vpack.c.bf16 %v4089, %v4089
        %v5184 = vpack.c.bf16 %v4091, %v4091
        %v5185 = vpack.c.bf16 %v4093, %v4093
        %v5186 = vpack.c.bf16 %v4431, %v4431
        %v5187 = vpack.c.bf16 %v4433, %v4433
        %v5188 = vpack.c.bf16 %v4435, %v4435
        %v5189 = vpack.c.bf16 %v4437, %v4437
        %v5190 = vpack.c.bf16 %v4439, %v4439
        %v5191 = vpack.c.bf16 %v4441, %v4441
        %v5192 = vpack.c.bf16 %v4443, %v4443
        %v5193 = vpack.c.bf16 %v4445, %v4445
        %v5194 = vpack.c.bf16 %v4447, %v4447
        %v5195 = vpack.c.bf16 %v4449, %v4449
        %v5196 = vpack.c.bf16 %v4451, %v4451
        %v5197 = vpack.c.bf16 %v4453, %v4453
        %v5198 = vpack.c.bf16 %v4455, %v4455
        %v5199 = vpack.c.bf16 %v4457, %v4457
        %v5200 = vpack.c.bf16 %v4459, %v4459
        %v5201 = vpack.c.bf16 %v4461, %v4461
        %v5202 = vpack.c.bf16 %v4463, %v4463
        %v5203 = vpack.c.bf16 %v4465, %v4465
        %v5204 = vpack.c.bf16 %v4467, %v4467
        %v5205 = vpack.c.bf16 %v4469, %v4469
        %v5206 = vpack.c.bf16 %v4471, %v4471
        %v5207 = vpack.c.bf16 %v4473, %v4473
        %v5208 = vpack.c.bf16 %v4475, %v4475
        %v5209 = vpack.c.bf16 %v4477, %v4477
        %v5210 = vpack.c.bf16 %v4479, %v4479
        %v5211 = vpack.c.bf16 %v4481, %v4481
        %v5212 = vpack.c.bf16 %v4483, %v4483
        %v5213 = vpack.c.bf16 %v4485, %v4485
        %v5214 = vpack.c.bf16 %v4487, %v4487
        %v5215 = vpack.c.bf16 %v4489, %v4489
        %v5216 = vpack.c.bf16 %v4491, %v4491
        %v5217 = vpack.c.bf16 %v4493, %v4493
        %v5220 = vunpack.c.l.b16 %v5186
        %v5221 = vunpack.c.l.b16 %v5187
        %v5222 = vpack.c.b16 %v5221, %v5220
        %v5223 = vunpack.c.l.b16 %v2015
        %v5224 = vunpack.c.l.b16 %v2063
        %v5225 = vpack.c.b16 %v5224, %v5223
        %v5228 = vsel %vm3232, %v5222, 0
        %5230 = vmatpush.bf16.msra.mxu0 0
        %5231 = vmatpush.bf16.msra.mxu0 0
        %5232 = vmatpush.bf16.msra.mxu0 0
        %5233 = vmatpush.bf16.msra.mxu0 0
        %5234 = vmatpush.bf16.msra.mxu0 0
        %5235 = vmatpush.bf16.msra.mxu0 0
        %5236 = vmatpush.bf16.msra.mxu0 0
        %5237 = vmatpush.bf16.msra.mxu0 %v5225
        %5238 = vmatmul.bf16.gmra.mxu0 %v5228
        %v5239 = vpop.f32.mrf.mxu0
        %v5240 = vadd.f32 0.0, %v5239
        %v5241 = vpop.f32.mrf.mxu0
        %v5242 = vadd.f32 0.0, %v5241
        %5243 = vdwg.mxu0
        %v5246 = vunpack.c.l.b16 %v5188
        %v5247 = vunpack.c.l.b16 %v5189
        %v5248 = vpack.c.b16 %v5247, %v5246
        %v5249 = vunpack.c.l.b16 %v2018
        %v5250 = vunpack.c.l.b16 %v2066
        %v5251 = vpack.c.b16 %v5250, %v5249
        %v5254 = vsel %vm3232, %v5248, 0
        %5256 = vmatpush.bf16.msra.mxu0 0
        %5257 = vmatpush.bf16.msra.mxu0 0
        %5258 = vmatpush.bf16.msra.mxu0 0
        %5259 = vmatpush.bf16.msra.mxu0 0
        %5260 = vmatpush.bf16.msra.mxu0 0
        %5261 = vmatpush.bf16.msra.mxu0 0
        %5262 = vmatpush.bf16.msra.mxu0 0
        %5263 = vmatpush.bf16.msra.mxu0 %v5251
        %5264 = vmatmul.bf16.gmra.mxu0 %v5254
        %v5265 = vpop.f32.mrf.mxu0
        %v5266 = vadd.f32 0.0, %v5265
        %v5267 = vpop.f32.mrf.mxu0
        %v5268 = vadd.f32 0.0, %v5267
        %5269 = vdwg.mxu0
        %v5272 = vunpack.c.l.b16 %v5190
        %v5273 = vunpack.c.l.b16 %v5191
        %v5274 = vpack.c.b16 %v5273, %v5272
        %v5275 = vunpack.c.l.b16 %v2021
        %v5276 = vunpack.c.l.b16 %v2069
        %v5277 = vpack.c.b16 %v5276, %v5275
        %v5280 = vsel %vm3232, %v5274, 0
        %5282 = vmatpush.bf16.msra.mxu0 0
        %5283 = vmatpush.bf16.msra.mxu0 0
        %5284 = vmatpush.bf16.msra.mxu0 0
        %5285 = vmatpush.bf16.msra.mxu0 0
        %5286 = vmatpush.bf16.msra.mxu0 0
        %5287 = vmatpush.bf16.msra.mxu0 0
        %5288 = vmatpush.bf16.msra.mxu0 0
        %5289 = vmatpush.bf16.msra.mxu0 %v5277
        %5290 = vmatmul.bf16.gmra.mxu0 %v5280
        %v5291 = vpop.f32.mrf.mxu0
        %v5292 = vadd.f32 0.0, %v5291
        %v5293 = vpop.f32.mrf.mxu0
        %v5294 = vadd.f32 0.0, %v5293
        %5295 = vdwg.mxu0
        %v5298 = vunpack.c.l.b16 %v5192
        %v5299 = vunpack.c.l.b16 %v5193
        %v5300 = vpack.c.b16 %v5299, %v5298
        %v5301 = vunpack.c.l.b16 %v2024
        %v5302 = vunpack.c.l.b16 %v2072
        %v5303 = vpack.c.b16 %v5302, %v5301
        %v5306 = vsel %vm3232, %v5300, 0
        %5308 = vmatpush.bf16.msra.mxu0 0
        %5309 = vmatpush.bf16.msra.mxu0 0
        %5310 = vmatpush.bf16.msra.mxu0 0
        %5311 = vmatpush.bf16.msra.mxu0 0
        %5312 = vmatpush.bf16.msra.mxu0 0
        %5313 = vmatpush.bf16.msra.mxu0 0
        %5314 = vmatpush.bf16.msra.mxu0 0
        %5315 = vmatpush.bf16.msra.mxu0 %v5303
        %5316 = vmatmul.bf16.gmra.mxu0 %v5306
        %v5317 = vpop.f32.mrf.mxu0
        %v5318 = vadd.f32 0.0, %v5317
        %v5319 = vpop.f32.mrf.mxu0
        %v5320 = vadd.f32 0.0, %v5319
        %5321 = vdwg.mxu0
        %v5324 = vunpack.c.l.b16 %v5194
        %v5325 = vunpack.c.l.b16 %v5195
        %v5326 = vpack.c.b16 %v5325, %v5324
        %v5327 = vunpack.c.l.b16 %v2027
        %v5328 = vunpack.c.l.b16 %v2075
        %v5329 = vpack.c.b16 %v5328, %v5327
        %v5332 = vsel %vm3232, %v5326, 0
        %5334 = vmatpush.bf16.msra.mxu0 0
        %5335 = vmatpush.bf16.msra.mxu0 0
        %5336 = vmatpush.bf16.msra.mxu0 0
        %5337 = vmatpush.bf16.msra.mxu0 0
        %5338 = vmatpush.bf16.msra.mxu0 0
        %5339 = vmatpush.bf16.msra.mxu0 0
        %5340 = vmatpush.bf16.msra.mxu0 0
        %5341 = vmatpush.bf16.msra.mxu0 %v5329
        %5342 = vmatmul.bf16.gmra.mxu0 %v5332
        %v5343 = vpop.f32.mrf.mxu0
        %v5344 = vadd.f32 0.0, %v5343
        %v5345 = vpop.f32.mrf.mxu0
        %v5346 = vadd.f32 0.0, %v5345
        %5347 = vdwg.mxu0
        %v5350 = vunpack.c.l.b16 %v5196
        %v5351 = vunpack.c.l.b16 %v5197
        %v5352 = vpack.c.b16 %v5351, %v5350
        %v5353 = vunpack.c.l.b16 %v2030
        %v5354 = vunpack.c.l.b16 %v2078
        %v5355 = vpack.c.b16 %v5354, %v5353
        %v5358 = vsel %vm3232, %v5352, 0
        %5360 = vmatpush.bf16.msra.mxu0 0
        %5361 = vmatpush.bf16.msra.mxu0 0
        %5362 = vmatpush.bf16.msra.mxu0 0
        %5363 = vmatpush.bf16.msra.mxu0 0
        %5364 = vmatpush.bf16.msra.mxu0 0
        %5365 = vmatpush.bf16.msra.mxu0 0
        %5366 = vmatpush.bf16.msra.mxu0 0
        %5367 = vmatpush.bf16.msra.mxu0 %v5355
        %5368 = vmatmul.bf16.gmra.mxu0 %v5358
        %v5369 = vpop.f32.mrf.mxu0
        %v5370 = vadd.f32 0.0, %v5369
        %v5371 = vpop.f32.mrf.mxu0
        %v5372 = vadd.f32 0.0, %v5371
        %5373 = vdwg.mxu0
        %v5376 = vunpack.c.l.b16 %v5198
        %v5377 = vunpack.c.l.b16 %v5199
        %v5378 = vpack.c.b16 %v5377, %v5376
        %v5379 = vunpack.c.l.b16 %v2033
        %v5380 = vunpack.c.l.b16 %v2081
        %v5381 = vpack.c.b16 %v5380, %v5379
        %v5384 = vsel %vm3232, %v5378, 0
        %5386 = vmatpush.bf16.msra.mxu0 0
        %5387 = vmatpush.bf16.msra.mxu0 0
        %5388 = vmatpush.bf16.msra.mxu0 0
        %5389 = vmatpush.bf16.msra.mxu0 0
        %5390 = vmatpush.bf16.msra.mxu0 0
        %5391 = vmatpush.bf16.msra.mxu0 0
        %5392 = vmatpush.bf16.msra.mxu0 0
        %5393 = vmatpush.bf16.msra.mxu0 %v5381
        %5394 = vmatmul.bf16.gmra.mxu0 %v5384
        %v5395 = vpop.f32.mrf.mxu0
        %v5396 = vadd.f32 0.0, %v5395
        %v5397 = vpop.f32.mrf.mxu0
        %v5398 = vadd.f32 0.0, %v5397
        %5399 = vdwg.mxu0
        %v5402 = vunpack.c.l.b16 %v5200
        %v5403 = vunpack.c.l.b16 %v5201
        %v5404 = vpack.c.b16 %v5403, %v5402
        %v5405 = vunpack.c.l.b16 %v2036
        %v5406 = vunpack.c.l.b16 %v2084
        %v5407 = vpack.c.b16 %v5406, %v5405
        %v5410 = vsel %vm3232, %v5404, 0
        %5412 = vmatpush.bf16.msra.mxu0 0
        %5413 = vmatpush.bf16.msra.mxu0 0
        %5414 = vmatpush.bf16.msra.mxu0 0
        %5415 = vmatpush.bf16.msra.mxu0 0
        %5416 = vmatpush.bf16.msra.mxu0 0
        %5417 = vmatpush.bf16.msra.mxu0 0
        %5418 = vmatpush.bf16.msra.mxu0 0
        %5419 = vmatpush.bf16.msra.mxu0 %v5407
        %5420 = vmatmul.bf16.gmra.mxu0 %v5410
        %v5421 = vpop.f32.mrf.mxu0
        %v5422 = vadd.f32 0.0, %v5421
        %v5423 = vpop.f32.mrf.mxu0
        %v5424 = vadd.f32 0.0, %v5423
        %5425 = vdwg.mxu0
        %v5428 = vunpack.c.l.b16 %v5202
        %v5429 = vunpack.c.l.b16 %v5203
        %v5430 = vpack.c.b16 %v5429, %v5428
        %v5431 = vunpack.c.l.b16 %v2039
        %v5432 = vunpack.c.l.b16 %v2087
        %v5433 = vpack.c.b16 %v5432, %v5431
        %v5436 = vsel %vm3232, %v5430, 0
        %5438 = vmatpush.bf16.msra.mxu0 0
        %5439 = vmatpush.bf16.msra.mxu0 0
        %5440 = vmatpush.bf16.msra.mxu0 0
        %5441 = vmatpush.bf16.msra.mxu0 0
        %5442 = vmatpush.bf16.msra.mxu0 0
        %5443 = vmatpush.bf16.msra.mxu0 0
        %5444 = vmatpush.bf16.msra.mxu0 0
        %5445 = vmatpush.bf16.msra.mxu0 %v5433
        %5446 = vmatmul.bf16.gmra.mxu0 %v5436
        %v5447 = vpop.f32.mrf.mxu0
        %v5448 = vadd.f32 0.0, %v5447
        %v5449 = vpop.f32.mrf.mxu0
        %v5450 = vadd.f32 0.0, %v5449
        %5451 = vdwg.mxu0
        %v5454 = vunpack.c.l.b16 %v5204
        %v5455 = vunpack.c.l.b16 %v5205
        %v5456 = vpack.c.b16 %v5455, %v5454
        %v5457 = vunpack.c.l.b16 %v2042
        %v5458 = vunpack.c.l.b16 %v2090
        %v5459 = vpack.c.b16 %v5458, %v5457
        %v5462 = vsel %vm3232, %v5456, 0
        %5464 = vmatpush.bf16.msra.mxu0 0
        %5465 = vmatpush.bf16.msra.mxu0 0
        %5466 = vmatpush.bf16.msra.mxu0 0
        %5467 = vmatpush.bf16.msra.mxu0 0
        %5468 = vmatpush.bf16.msra.mxu0 0
        %5469 = vmatpush.bf16.msra.mxu0 0
        %5470 = vmatpush.bf16.msra.mxu0 0
        %5471 = vmatpush.bf16.msra.mxu0 %v5459
        %5472 = vmatmul.bf16.gmra.mxu0 %v5462
        %v5473 = vpop.f32.mrf.mxu0
        %v5474 = vadd.f32 0.0, %v5473
        %v5475 = vpop.f32.mrf.mxu0
        %v5476 = vadd.f32 0.0, %v5475
        %5477 = vdwg.mxu0
        %v5480 = vunpack.c.l.b16 %v5206
        %v5481 = vunpack.c.l.b16 %v5207
        %v5482 = vpack.c.b16 %v5481, %v5480
        %v5483 = vunpack.c.l.b16 %v2045
        %v5484 = vunpack.c.l.b16 %v2093
        %v5485 = vpack.c.b16 %v5484, %v5483
        %v5488 = vsel %vm3232, %v5482, 0
        %5490 = vmatpush.bf16.msra.mxu0 0
        %5491 = vmatpush.bf16.msra.mxu0 0
        %5492 = vmatpush.bf16.msra.mxu0 0
        %5493 = vmatpush.bf16.msra.mxu0 0
        %5494 = vmatpush.bf16.msra.mxu0 0
        %5495 = vmatpush.bf16.msra.mxu0 0
        %5496 = vmatpush.bf16.msra.mxu0 0
        %5497 = vmatpush.bf16.msra.mxu0 %v5485
        %5498 = vmatmul.bf16.gmra.mxu0 %v5488
        %v5499 = vpop.f32.mrf.mxu0
        %v5500 = vadd.f32 0.0, %v5499
        %v5501 = vpop.f32.mrf.mxu0
        %v5502 = vadd.f32 0.0, %v5501
        %5503 = vdwg.mxu0
        %v5506 = vunpack.c.l.b16 %v5208
        %v5507 = vunpack.c.l.b16 %v5209
        %v5508 = vpack.c.b16 %v5507, %v5506
        %v5509 = vunpack.c.l.b16 %v2048
        %v5510 = vunpack.c.l.b16 %v2096
        %v5511 = vpack.c.b16 %v5510, %v5509
        %v5514 = vsel %vm3232, %v5508, 0
        %5516 = vmatpush.bf16.msra.mxu0 0
        %5517 = vmatpush.bf16.msra.mxu0 0
        %5518 = vmatpush.bf16.msra.mxu0 0
        %5519 = vmatpush.bf16.msra.mxu0 0
        %5520 = vmatpush.bf16.msra.mxu0 0
        %5521 = vmatpush.bf16.msra.mxu0 0
        %5522 = vmatpush.bf16.msra.mxu0 0
        %5523 = vmatpush.bf16.msra.mxu0 %v5511
        %5524 = vmatmul.bf16.gmra.mxu0 %v5514
        %v5525 = vpop.f32.mrf.mxu0
        %v5526 = vadd.f32 0.0, %v5525
        %v5527 = vpop.f32.mrf.mxu0
        %v5528 = vadd.f32 0.0, %v5527
        %5529 = vdwg.mxu0
        %v5532 = vunpack.c.l.b16 %v5210
        %v5533 = vunpack.c.l.b16 %v5211
        %v5534 = vpack.c.b16 %v5533, %v5532
        %v5535 = vunpack.c.l.b16 %v2051
        %v5536 = vunpack.c.l.b16 %v2099
        %v5537 = vpack.c.b16 %v5536, %v5535
        %v5540 = vsel %vm3232, %v5534, 0
        %5542 = vmatpush.bf16.msra.mxu0 0
        %5543 = vmatpush.bf16.msra.mxu0 0
        %5544 = vmatpush.bf16.msra.mxu0 0
        %5545 = vmatpush.bf16.msra.mxu0 0
        %5546 = vmatpush.bf16.msra.mxu0 0
        %5547 = vmatpush.bf16.msra.mxu0 0
        %5548 = vmatpush.bf16.msra.mxu0 0
        %5549 = vmatpush.bf16.msra.mxu0 %v5537
        %5550 = vmatmul.bf16.gmra.mxu0 %v5540
        %v5551 = vpop.f32.mrf.mxu0
        %v5552 = vadd.f32 0.0, %v5551
        %v5553 = vpop.f32.mrf.mxu0
        %v5554 = vadd.f32 0.0, %v5553
        %5555 = vdwg.mxu0
        %v5558 = vunpack.c.l.b16 %v5212
        %v5559 = vunpack.c.l.b16 %v5213
        %v5560 = vpack.c.b16 %v5559, %v5558
        %v5561 = vunpack.c.l.b16 %v2054
        %v5562 = vunpack.c.l.b16 %v2102
        %v5563 = vpack.c.b16 %v5562, %v5561
        %v5566 = vsel %vm3232, %v5560, 0
        %5568 = vmatpush.bf16.msra.mxu0 0
        %5569 = vmatpush.bf16.msra.mxu0 0
        %5570 = vmatpush.bf16.msra.mxu0 0
        %5571 = vmatpush.bf16.msra.mxu0 0
        %5572 = vmatpush.bf16.msra.mxu0 0
        %5573 = vmatpush.bf16.msra.mxu0 0
        %5574 = vmatpush.bf16.msra.mxu0 0
        %5575 = vmatpush.bf16.msra.mxu0 %v5563
        %5576 = vmatmul.bf16.gmra.mxu0 %v5566
        %v5577 = vpop.f32.mrf.mxu0
        %v5578 = vadd.f32 0.0, %v5577
        %v5579 = vpop.f32.mrf.mxu0
        %v5580 = vadd.f32 0.0, %v5579
        %5581 = vdwg.mxu0
        %v5584 = vunpack.c.l.b16 %v5214
        %v5585 = vunpack.c.l.b16 %v5215
        %v5586 = vpack.c.b16 %v5585, %v5584
        %v5587 = vunpack.c.l.b16 %v2057
        %v5588 = vunpack.c.l.b16 %v2105
        %v5589 = vpack.c.b16 %v5588, %v5587
        %v5592 = vsel %vm3232, %v5586, 0
        %5594 = vmatpush.bf16.msra.mxu0 0
        %5595 = vmatpush.bf16.msra.mxu0 0
        %5596 = vmatpush.bf16.msra.mxu0 0
        %5597 = vmatpush.bf16.msra.mxu0 0
        %5598 = vmatpush.bf16.msra.mxu0 0
        %5599 = vmatpush.bf16.msra.mxu0 0
        %5600 = vmatpush.bf16.msra.mxu0 0
        %5601 = vmatpush.bf16.msra.mxu0 %v5589
        %5602 = vmatmul.bf16.gmra.mxu0 %v5592
        %v5603 = vpop.f32.mrf.mxu0
        %v5604 = vadd.f32 0.0, %v5603
        %v5605 = vpop.f32.mrf.mxu0
        %v5606 = vadd.f32 0.0, %v5605
        %5607 = vdwg.mxu0
        %v5610 = vunpack.c.l.b16 %v5216
        %v5611 = vunpack.c.l.b16 %v5217
        %v5612 = vpack.c.b16 %v5611, %v5610
        %v5613 = vunpack.c.l.b16 %v2060
        %v5614 = vunpack.c.l.b16 %v2108
        %v5615 = vpack.c.b16 %v5614, %v5613
        %v5618 = vsel %vm3232, %v5612, 0
        %5620 = vmatpush.bf16.msra.mxu0 0
        %5621 = vmatpush.bf16.msra.mxu0 0
        %5622 = vmatpush.bf16.msra.mxu0 0
        %5623 = vmatpush.bf16.msra.mxu0 0
        %5624 = vmatpush.bf16.msra.mxu0 0
        %5625 = vmatpush.bf16.msra.mxu0 0
        %5626 = vmatpush.bf16.msra.mxu0 0
        %5627 = vmatpush.bf16.msra.mxu0 %v5615
        %5628 = vmatmul.bf16.gmra.mxu0 %v5618
        %v5629 = vpop.f32.mrf.mxu0
        %v5630 = vadd.f32 0.0, %v5629
        %v5631 = vpop.f32.mrf.mxu0
        %v5632 = vadd.f32 0.0, %v5631
        %5633 = vdwg.mxu0
        %v5634 = vrot.slane %v5292, 4
        %v5635 = vsel %vm860, %v5634, %v5240
        %v5636 = vrot.slane %v5240, 4
        %v5637 = vsel %vm860, %v5292, %v5636
        %v5639 = vunpack.c.l.s4 1983009808
        %v5640 = vunpack.c.0.s8 %v5639
        %v5641 = vperm.slane %v5635, %v5640
        %v5643 = vunpack.c.l.s4 1983009808
        %v5644 = vunpack.c.0.s8 %v5643
        %v5645 = vperm.slane %v5637, %v5644
        %v5646 = vrot.slane %v5318, 4
        %v5647 = vsel %vm860, %v5646, %v5266
        %v5648 = vrot.slane %v5266, 4
        %v5649 = vsel %vm860, %v5318, %v5648
        %v5651 = vunpack.c.l.s4 1983009808
        %v5652 = vunpack.c.0.s8 %v5651
        %v5653 = vperm.slane %v5647, %v5652
        %v5655 = vunpack.c.l.s4 1983009808
        %v5656 = vunpack.c.0.s8 %v5655
        %v5657 = vperm.slane %v5649, %v5656
        %v5658 = vrot.slane %v5396, 4
        %v5659 = vsel %vm860, %v5658, %v5344
        %v5660 = vrot.slane %v5344, 4
        %v5661 = vsel %vm860, %v5396, %v5660
        %v5663 = vunpack.c.l.s4 1983009808
        %v5664 = vunpack.c.0.s8 %v5663
        %v5665 = vperm.slane %v5659, %v5664
        %v5667 = vunpack.c.l.s4 1983009808
        %v5668 = vunpack.c.0.s8 %v5667
        %v5669 = vperm.slane %v5661, %v5668
        %v5670 = vrot.slane %v5422, 4
        %v5671 = vsel %vm860, %v5670, %v5370
        %v5672 = vrot.slane %v5370, 4
        %v5673 = vsel %vm860, %v5422, %v5672
        %v5675 = vunpack.c.l.s4 1983009808
        %v5676 = vunpack.c.0.s8 %v5675
        %v5677 = vperm.slane %v5671, %v5676
        %v5679 = vunpack.c.l.s4 1983009808
        %v5680 = vunpack.c.0.s8 %v5679
        %v5681 = vperm.slane %v5673, %v5680
        %v5682 = vrot.slane %v5653, 4
        %v5683 = vsel %vm860, %v5682, %v5641
        %v5684 = vrot.slane %v5641, 4
        %v5685 = vsel %vm860, %v5653, %v5684
        %v5687 = vunpack.c.l.s4 1934713408
        %v5688 = vunpack.c.0.s8 %v5687
        %v5689 = vperm.slane %v5683, %v5688
        %v5691 = vunpack.c.l.s4 1934713408
        %v5692 = vunpack.c.0.s8 %v5691
        %v5693 = vperm.slane %v5685, %v5692
        %v5694 = vrot.slane %v5657, 4
        %v5695 = vsel %vm860, %v5694, %v5645
        %v5696 = vrot.slane %v5645, 4
        %v5697 = vsel %vm860, %v5657, %v5696
        %v5699 = vunpack.c.l.s4 1934713408
        %v5700 = vunpack.c.0.s8 %v5699
        %v5701 = vperm.slane %v5695, %v5700
        %v5703 = vunpack.c.l.s4 1934713408
        %v5704 = vunpack.c.0.s8 %v5703
        %v5705 = vperm.slane %v5697, %v5704
        %v5706 = vrot.slane %v5677, 4
        %v5707 = vsel %vm860, %v5706, %v5665
        %v5708 = vrot.slane %v5665, 4
        %v5709 = vsel %vm860, %v5677, %v5708
        %v5711 = vunpack.c.l.s4 1934713408
        %v5712 = vunpack.c.0.s8 %v5711
        %v5713 = vperm.slane %v5707, %v5712
        %v5715 = vunpack.c.l.s4 1934713408
        %v5716 = vunpack.c.0.s8 %v5715
        %v5717 = vperm.slane %v5709, %v5716
        %v5718 = vrot.slane %v5681, 4
        %v5719 = vsel %vm860, %v5718, %v5669
        %v5720 = vrot.slane %v5669, 4
        %v5721 = vsel %vm860, %v5681, %v5720
        %v5723 = vunpack.c.l.s4 1934713408
        %v5724 = vunpack.c.0.s8 %v5723
        %v5725 = vperm.slane %v5719, %v5724
        %v5727 = vunpack.c.l.s4 1934713408
        %v5728 = vunpack.c.0.s8 %v5727
        %v5729 = vperm.slane %v5721, %v5728
        %v5730 = vrot.slane %v5713, 4
        %v5731 = vsel %vm860, %v5730, %v5689
        %v5732 = vrot.slane %v5689, 4
        %v5733 = vsel %vm860, %v5713, %v5732
        %v5734 = vrot.slane %v5717, 4
        %v5735 = vsel %vm860, %v5734, %v5693
        %v5736 = vrot.slane %v5693, 4
        %v5737 = vsel %vm860, %v5717, %v5736
        %v5738 = vrot.slane %v5725, 4
        %v5739 = vsel %vm860, %v5738, %v5701
        %v5740 = vrot.slane %v5701, 4
        %v5741 = vsel %vm860, %v5725, %v5740
        %v5742 = vrot.slane %v5729, 4
        %v5743 = vsel %vm860, %v5742, %v5705
        %v5744 = vrot.slane %v5705, 4
        %v5745 = vsel %vm860, %v5729, %v5744
        %v5746 = vrot.slane %v5500, 4
        %v5747 = vsel %vm860, %v5746, %v5448
        %v5748 = vrot.slane %v5448, 4
        %v5749 = vsel %vm860, %v5500, %v5748
        %v5751 = vunpack.c.l.s4 1983009808
        %v5752 = vunpack.c.0.s8 %v5751
        %v5753 = vperm.slane %v5747, %v5752
        %v5755 = vunpack.c.l.s4 1983009808
        %v5756 = vunpack.c.0.s8 %v5755
        %v5757 = vperm.slane %v5749, %v5756
        %v5758 = vrot.slane %v5526, 4
        %v5759 = vsel %vm860, %v5758, %v5474
        %v5760 = vrot.slane %v5474, 4
        %v5761 = vsel %vm860, %v5526, %v5760
        %v5763 = vunpack.c.l.s4 1983009808
        %v5764 = vunpack.c.0.s8 %v5763
        %v5765 = vperm.slane %v5759, %v5764
        %v5767 = vunpack.c.l.s4 1983009808
        %v5768 = vunpack.c.0.s8 %v5767
        %v5769 = vperm.slane %v5761, %v5768
        %v5770 = vrot.slane %v5604, 4
        %v5771 = vsel %vm860, %v5770, %v5552
        %v5772 = vrot.slane %v5552, 4
        %v5773 = vsel %vm860, %v5604, %v5772
        %v5775 = vunpack.c.l.s4 1983009808
        %v5776 = vunpack.c.0.s8 %v5775
        %v5777 = vperm.slane %v5771, %v5776
        %v5779 = vunpack.c.l.s4 1983009808
        %v5780 = vunpack.c.0.s8 %v5779
        %v5781 = vperm.slane %v5773, %v5780
        %v5782 = vrot.slane %v5630, 4
        %v5783 = vsel %vm860, %v5782, %v5578
        %v5784 = vrot.slane %v5578, 4
        %v5785 = vsel %vm860, %v5630, %v5784
        %v5787 = vunpack.c.l.s4 1983009808
        %v5788 = vunpack.c.0.s8 %v5787
        %v5789 = vperm.slane %v5783, %v5788
        %v5791 = vunpack.c.l.s4 1983009808
        %v5792 = vunpack.c.0.s8 %v5791
        %v5793 = vperm.slane %v5785, %v5792
        %v5794 = vrot.slane %v5765, 4
        %v5795 = vsel %vm860, %v5794, %v5753
        %v5796 = vrot.slane %v5753, 4
        %v5797 = vsel %vm860, %v5765, %v5796
        %v5799 = vunpack.c.l.s4 1934713408
        %v5800 = vunpack.c.0.s8 %v5799
        %v5801 = vperm.slane %v5795, %v5800
        %v5803 = vunpack.c.l.s4 1934713408
        %v5804 = vunpack.c.0.s8 %v5803
        %v5805 = vperm.slane %v5797, %v5804
        %v5806 = vrot.slane %v5769, 4
        %v5807 = vsel %vm860, %v5806, %v5757
        %v5808 = vrot.slane %v5757, 4
        %v5809 = vsel %vm860, %v5769, %v5808
        %v5811 = vunpack.c.l.s4 1934713408
        %v5812 = vunpack.c.0.s8 %v5811
        %v5813 = vperm.slane %v5807, %v5812
        %v5815 = vunpack.c.l.s4 1934713408
        %v5816 = vunpack.c.0.s8 %v5815
        %v5817 = vperm.slane %v5809, %v5816
        %v5818 = vrot.slane %v5789, 4
        %v5819 = vsel %vm860, %v5818, %v5777
        %v5820 = vrot.slane %v5777, 4
        %v5821 = vsel %vm860, %v5789, %v5820
        %v5823 = vunpack.c.l.s4 1934713408
        %v5824 = vunpack.c.0.s8 %v5823
        %v5825 = vperm.slane %v5819, %v5824
        %v5827 = vunpack.c.l.s4 1934713408
        %v5828 = vunpack.c.0.s8 %v5827
        %v5829 = vperm.slane %v5821, %v5828
        %v5830 = vrot.slane %v5793, 4
        %v5831 = vsel %vm860, %v5830, %v5781
        %v5832 = vrot.slane %v5781, 4
        %v5833 = vsel %vm860, %v5793, %v5832
        %v5835 = vunpack.c.l.s4 1934713408
        %v5836 = vunpack.c.0.s8 %v5835
        %v5837 = vperm.slane %v5831, %v5836
        %v5839 = vunpack.c.l.s4 1934713408
        %v5840 = vunpack.c.0.s8 %v5839
        %v5841 = vperm.slane %v5833, %v5840
        %v5842 = vrot.slane %v5825, 4
        %v5843 = vsel %vm860, %v5842, %v5801
        %v5844 = vrot.slane %v5801, 4
        %v5845 = vsel %vm860, %v5825, %v5844
        %v5846 = vrot.slane %v5829, 4
        %v5847 = vsel %vm860, %v5846, %v5805
        %v5848 = vrot.slane %v5805, 4
        %v5849 = vsel %vm860, %v5829, %v5848
        %v5850 = vrot.slane %v5837, 4
        %v5851 = vsel %vm860, %v5850, %v5813
        %v5852 = vrot.slane %v5813, 4
        %v5853 = vsel %vm860, %v5837, %v5852
        %v5854 = vrot.slane %v5841, 4
        %v5855 = vsel %vm860, %v5854, %v5817
        %v5856 = vrot.slane %v5817, 4
        %v5857 = vsel %vm860, %v5841, %v5856
        %v5858 = vrot.slane %v5294, 4
        %v5859 = vsel %vm860, %v5858, %v5242
        %v5860 = vrot.slane %v5242, 4
        %v5861 = vsel %vm860, %v5294, %v5860
        %v5863 = vunpack.c.l.s4 1983009808
        %v5864 = vunpack.c.0.s8 %v5863
        %v5865 = vperm.slane %v5859, %v5864
        %v5867 = vunpack.c.l.s4 1983009808
        %v5868 = vunpack.c.0.s8 %v5867
        %v5869 = vperm.slane %v5861, %v5868
        %v5870 = vrot.slane %v5320, 4
        %v5871 = vsel %vm860, %v5870, %v5268
        %v5872 = vrot.slane %v5268, 4
        %v5873 = vsel %vm860, %v5320, %v5872
        %v5875 = vunpack.c.l.s4 1983009808
        %v5876 = vunpack.c.0.s8 %v5875
        %v5877 = vperm.slane %v5871, %v5876
        %v5879 = vunpack.c.l.s4 1983009808
        %v5880 = vunpack.c.0.s8 %v5879
        %v5881 = vperm.slane %v5873, %v5880
        %v5882 = vrot.slane %v5398, 4
        %v5883 = vsel %vm860, %v5882, %v5346
        %v5884 = vrot.slane %v5346, 4
        %v5885 = vsel %vm860, %v5398, %v5884
        %v5887 = vunpack.c.l.s4 1983009808
        %v5888 = vunpack.c.0.s8 %v5887
        %v5889 = vperm.slane %v5883, %v5888
        %v5891 = vunpack.c.l.s4 1983009808
        %v5892 = vunpack.c.0.s8 %v5891
        %v5893 = vperm.slane %v5885, %v5892
        %v5894 = vrot.slane %v5424, 4
        %v5895 = vsel %vm860, %v5894, %v5372
        %v5896 = vrot.slane %v5372, 4
        %v5897 = vsel %vm860, %v5424, %v5896
        %v5899 = vunpack.c.l.s4 1983009808
        %v5900 = vunpack.c.0.s8 %v5899
        %v5901 = vperm.slane %v5895, %v5900
        %v5903 = vunpack.c.l.s4 1983009808
        %v5904 = vunpack.c.0.s8 %v5903
        %v5905 = vperm.slane %v5897, %v5904
        %v5906 = vrot.slane %v5877, 4
        %v5907 = vsel %vm860, %v5906, %v5865
        %v5908 = vrot.slane %v5865, 4
        %v5909 = vsel %vm860, %v5877, %v5908
        %v5911 = vunpack.c.l.s4 1934713408
        %v5912 = vunpack.c.0.s8 %v5911
        %v5913 = vperm.slane %v5907, %v5912
        %v5915 = vunpack.c.l.s4 1934713408
        %v5916 = vunpack.c.0.s8 %v5915
        %v5917 = vperm.slane %v5909, %v5916
        %v5918 = vrot.slane %v5881, 4
        %v5919 = vsel %vm860, %v5918, %v5869
        %v5920 = vrot.slane %v5869, 4
        %v5921 = vsel %vm860, %v5881, %v5920
        %v5923 = vunpack.c.l.s4 1934713408
        %v5924 = vunpack.c.0.s8 %v5923
        %v5925 = vperm.slane %v5919, %v5924
        %v5927 = vunpack.c.l.s4 1934713408
        %v5928 = vunpack.c.0.s8 %v5927
        %v5929 = vperm.slane %v5921, %v5928
        %v5930 = vrot.slane %v5901, 4
        %v5931 = vsel %vm860, %v5930, %v5889
        %v5932 = vrot.slane %v5889, 4
        %v5933 = vsel %vm860, %v5901, %v5932
        %v5935 = vunpack.c.l.s4 1934713408
        %v5936 = vunpack.c.0.s8 %v5935
        %v5937 = vperm.slane %v5931, %v5936
        %v5939 = vunpack.c.l.s4 1934713408
        %v5940 = vunpack.c.0.s8 %v5939
        %v5941 = vperm.slane %v5933, %v5940
        %v5942 = vrot.slane %v5905, 4
        %v5943 = vsel %vm860, %v5942, %v5893
        %v5944 = vrot.slane %v5893, 4
        %v5945 = vsel %vm860, %v5905, %v5944
        %v5947 = vunpack.c.l.s4 1934713408
        %v5948 = vunpack.c.0.s8 %v5947
        %v5949 = vperm.slane %v5943, %v5948
        %v5951 = vunpack.c.l.s4 1934713408
        %v5952 = vunpack.c.0.s8 %v5951
        %v5953 = vperm.slane %v5945, %v5952
        %v5954 = vrot.slane %v5937, 4
        %v5955 = vsel %vm860, %v5954, %v5913
        %v5956 = vrot.slane %v5913, 4
        %v5957 = vsel %vm860, %v5937, %v5956
        %v5958 = vrot.slane %v5941, 4
        %v5959 = vsel %vm860, %v5958, %v5917
        %v5960 = vrot.slane %v5917, 4
        %v5961 = vsel %vm860, %v5941, %v5960
        %v5962 = vrot.slane %v5949, 4
        %v5963 = vsel %vm860, %v5962, %v5925
        %v5964 = vrot.slane %v5925, 4
        %v5965 = vsel %vm860, %v5949, %v5964
        %v5966 = vrot.slane %v5953, 4
        %v5967 = vsel %vm860, %v5966, %v5929
        %v5968 = vrot.slane %v5929, 4
        %v5969 = vsel %vm860, %v5953, %v5968
        %v5970 = vrot.slane %v5502, 4
        %v5971 = vsel %vm860, %v5970, %v5450
        %v5972 = vrot.slane %v5450, 4
        %v5973 = vsel %vm860, %v5502, %v5972
        %v5975 = vunpack.c.l.s4 1983009808
        %v5976 = vunpack.c.0.s8 %v5975
        %v5977 = vperm.slane %v5971, %v5976
        %v5979 = vunpack.c.l.s4 1983009808
        %v5980 = vunpack.c.0.s8 %v5979
        %v5981 = vperm.slane %v5973, %v5980
        %v5982 = vrot.slane %v5528, 4
        %v5983 = vsel %vm860, %v5982, %v5476
        %v5984 = vrot.slane %v5476, 4
        %v5985 = vsel %vm860, %v5528, %v5984
        %v5987 = vunpack.c.l.s4 1983009808
        %v5988 = vunpack.c.0.s8 %v5987
        %v5989 = vperm.slane %v5983, %v5988
        %v5991 = vunpack.c.l.s4 1983009808
        %v5992 = vunpack.c.0.s8 %v5991
        %v5993 = vperm.slane %v5985, %v5992
        %v5994 = vrot.slane %v5606, 4
        %v5995 = vsel %vm860, %v5994, %v5554
        %v5996 = vrot.slane %v5554, 4
        %v5997 = vsel %vm860, %v5606, %v5996
        %v5999 = vunpack.c.l.s4 1983009808
        %v6000 = vunpack.c.0.s8 %v5999
        %v6001 = vperm.slane %v5995, %v6000
        %v6003 = vunpack.c.l.s4 1983009808
        %v6004 = vunpack.c.0.s8 %v6003
        %v6005 = vperm.slane %v5997, %v6004
        %v6006 = vrot.slane %v5632, 4
        %v6007 = vsel %vm860, %v6006, %v5580
        %v6008 = vrot.slane %v5580, 4
        %v6009 = vsel %vm860, %v5632, %v6008
        %v6011 = vunpack.c.l.s4 1983009808
        %v6012 = vunpack.c.0.s8 %v6011
        %v6013 = vperm.slane %v6007, %v6012
        %v6015 = vunpack.c.l.s4 1983009808
        %v6016 = vunpack.c.0.s8 %v6015
        %v6017 = vperm.slane %v6009, %v6016
        %v6018 = vrot.slane %v5989, 4
        %v6019 = vsel %vm860, %v6018, %v5977
        %v6020 = vrot.slane %v5977, 4
        %v6021 = vsel %vm860, %v5989, %v6020
        %v6023 = vunpack.c.l.s4 1934713408
        %v6024 = vunpack.c.0.s8 %v6023
        %v6025 = vperm.slane %v6019, %v6024
        %v6027 = vunpack.c.l.s4 1934713408
        %v6028 = vunpack.c.0.s8 %v6027
        %v6029 = vperm.slane %v6021, %v6028
        %v6030 = vrot.slane %v5993, 4
        %v6031 = vsel %vm860, %v6030, %v5981
        %v6032 = vrot.slane %v5981, 4
        %v6033 = vsel %vm860, %v5993, %v6032
        %v6035 = vunpack.c.l.s4 1934713408
        %v6036 = vunpack.c.0.s8 %v6035
        %v6037 = vperm.slane %v6031, %v6036
        %v6039 = vunpack.c.l.s4 1934713408
        %v6040 = vunpack.c.0.s8 %v6039
        %v6041 = vperm.slane %v6033, %v6040
        %v6042 = vrot.slane %v6013, 4
        %v6043 = vsel %vm860, %v6042, %v6001
        %v6044 = vrot.slane %v6001, 4
        %v6045 = vsel %vm860, %v6013, %v6044
        %v6047 = vunpack.c.l.s4 1934713408
        %v6048 = vunpack.c.0.s8 %v6047
        %v6049 = vperm.slane %v6043, %v6048
        %v6051 = vunpack.c.l.s4 1934713408
        %v6052 = vunpack.c.0.s8 %v6051
        %v6053 = vperm.slane %v6045, %v6052
        %v6054 = vrot.slane %v6017, 4
        %v6055 = vsel %vm860, %v6054, %v6005
        %v6056 = vrot.slane %v6005, 4
        %v6057 = vsel %vm860, %v6017, %v6056
        %v6059 = vunpack.c.l.s4 1934713408
        %v6060 = vunpack.c.0.s8 %v6059
        %v6061 = vperm.slane %v6055, %v6060
        %v6063 = vunpack.c.l.s4 1934713408
        %v6064 = vunpack.c.0.s8 %v6063
        %v6065 = vperm.slane %v6057, %v6064
        %v6066 = vrot.slane %v6049, 4
        %v6067 = vsel %vm860, %v6066, %v6025
        %v6068 = vrot.slane %v6025, 4
        %v6069 = vsel %vm860, %v6049, %v6068
        %v6070 = vrot.slane %v6053, 4
        %v6071 = vsel %vm860, %v6070, %v6029
        %v6072 = vrot.slane %v6029, 4
        %v6073 = vsel %vm860, %v6053, %v6072
        %v6074 = vrot.slane %v6061, 4
        %v6075 = vsel %vm860, %v6074, %v6037
        %v6076 = vrot.slane %v6037, 4
        %v6077 = vsel %vm860, %v6061, %v6076
        %v6078 = vrot.slane %v6065, 4
        %v6079 = vsel %vm860, %v6078, %v6041
        %v6080 = vrot.slane %v6041, 4
        %v6081 = vsel %vm860, %v6065, %v6080
        %v6084 = vunpack.c.l.b16 %v5154
        %v6085 = vunpack.c.l.b16 %v5155
        %v6086 = vpack.c.b16 %v6085, %v6084
        %v6089 = vunpack.c.l.b16 %v1756
        %v6090 = vunpack.c.l.b16 %v1757
        %v6091 = vpack.c.b16 %v6090, %v6089
        %v6094 = vsel %vm3232, %v6086, 0
        %6096 = vmatpush.bf16.msra.mxu0 0
        %6097 = vmatpush.bf16.msra.mxu0 0
        %6098 = vmatpush.bf16.msra.mxu0 0
        %6099 = vmatpush.bf16.msra.mxu0 0
        %6100 = vmatpush.bf16.msra.mxu0 0
        %6101 = vmatpush.bf16.msra.mxu0 0
        %6102 = vmatpush.bf16.msra.mxu0 0
        %6103 = vmatpush.bf16.msra.mxu0 %v6091
        %6104 = vmatmul.bf16.gmra.mxu0 %v6094
        %v6105 = vpop.f32.mrf.mxu0
        %v6106 = vadd.f32 %v5731, %v6105
        %v6107 = vpop.f32.mrf.mxu0
        %v6108 = vadd.f32 %v5843, %v6107
        %6109 = vdwg.mxu0
        %v6112 = vunpack.c.l.b16 %v5156
        %v6113 = vunpack.c.l.b16 %v5157
        %v6114 = vpack.c.b16 %v6113, %v6112
        %v6117 = vunpack.c.l.b16 %v1758
        %v6118 = vunpack.c.l.b16 %v1759
        %v6119 = vpack.c.b16 %v6118, %v6117
        %v6122 = vsel %vm3232, %v6114, 0
        %6124 = vmatpush.bf16.msra.mxu0 0
        %6125 = vmatpush.bf16.msra.mxu0 0
        %6126 = vmatpush.bf16.msra.mxu0 0
        %6127 = vmatpush.bf16.msra.mxu0 0
        %6128 = vmatpush.bf16.msra.mxu0 0
        %6129 = vmatpush.bf16.msra.mxu0 0
        %6130 = vmatpush.bf16.msra.mxu0 0
        %6131 = vmatpush.bf16.msra.mxu0 %v6119
        %6132 = vmatmul.bf16.gmra.mxu0 %v6122
        %v6133 = vpop.f32.mrf.mxu0
        %v6134 = vadd.f32 %v5733, %v6133
        %v6135 = vpop.f32.mrf.mxu0
        %v6136 = vadd.f32 %v5845, %v6135
        %6137 = vdwg.mxu0
        %v6140 = vunpack.c.l.b16 %v5158
        %v6141 = vunpack.c.l.b16 %v5159
        %v6142 = vpack.c.b16 %v6141, %v6140
        %v6145 = vunpack.c.l.b16 %v1760
        %v6146 = vunpack.c.l.b16 %v1761
        %v6147 = vpack.c.b16 %v6146, %v6145
        %v6150 = vsel %vm3232, %v6142, 0
        %6152 = vmatpush.bf16.msra.mxu0 0
        %6153 = vmatpush.bf16.msra.mxu0 0
        %6154 = vmatpush.bf16.msra.mxu0 0
        %6155 = vmatpush.bf16.msra.mxu0 0
        %6156 = vmatpush.bf16.msra.mxu0 0
        %6157 = vmatpush.bf16.msra.mxu0 0
        %6158 = vmatpush.bf16.msra.mxu0 0
        %6159 = vmatpush.bf16.msra.mxu0 %v6147
        %6160 = vmatmul.bf16.gmra.mxu0 %v6150
        %v6161 = vpop.f32.mrf.mxu0
        %v6162 = vadd.f32 %v5735, %v6161
        %v6163 = vpop.f32.mrf.mxu0
        %v6164 = vadd.f32 %v5847, %v6163
        %6165 = vdwg.mxu0
        %v6168 = vunpack.c.l.b16 %v5160
        %v6169 = vunpack.c.l.b16 %v5161
        %v6170 = vpack.c.b16 %v6169, %v6168
        %v6173 = vunpack.c.l.b16 %v1762
        %v6174 = vunpack.c.l.b16 %v1763
        %v6175 = vpack.c.b16 %v6174, %v6173
        %v6178 = vsel %vm3232, %v6170, 0
        %6180 = vmatpush.bf16.msra.mxu0 0
        %6181 = vmatpush.bf16.msra.mxu0 0
        %6182 = vmatpush.bf16.msra.mxu0 0
        %6183 = vmatpush.bf16.msra.mxu0 0
        %6184 = vmatpush.bf16.msra.mxu0 0
        %6185 = vmatpush.bf16.msra.mxu0 0
        %6186 = vmatpush.bf16.msra.mxu0 0
        %6187 = vmatpush.bf16.msra.mxu0 %v6175
        %6188 = vmatmul.bf16.gmra.mxu0 %v6178
        %v6189 = vpop.f32.mrf.mxu0
        %v6190 = vadd.f32 %v5737, %v6189
        %v6191 = vpop.f32.mrf.mxu0
        %v6192 = vadd.f32 %v5849, %v6191
        %6193 = vdwg.mxu0
        %v6196 = vunpack.c.l.b16 %v5162
        %v6197 = vunpack.c.l.b16 %v5163
        %v6198 = vpack.c.b16 %v6197, %v6196
        %v6201 = vunpack.c.l.b16 %v1764
        %v6202 = vunpack.c.l.b16 %v1765
        %v6203 = vpack.c.b16 %v6202, %v6201
        %v6206 = vsel %vm3232, %v6198, 0
        %6208 = vmatpush.bf16.msra.mxu0 0
        %6209 = vmatpush.bf16.msra.mxu0 0
        %6210 = vmatpush.bf16.msra.mxu0 0
        %6211 = vmatpush.bf16.msra.mxu0 0
        %6212 = vmatpush.bf16.msra.mxu0 0
        %6213 = vmatpush.bf16.msra.mxu0 0
        %6214 = vmatpush.bf16.msra.mxu0 0
        %6215 = vmatpush.bf16.msra.mxu0 %v6203
        %6216 = vmatmul.bf16.gmra.mxu0 %v6206
        %v6217 = vpop.f32.mrf.mxu0
        %v6218 = vadd.f32 %v5739, %v6217
        %v6219 = vpop.f32.mrf.mxu0
        %v6220 = vadd.f32 %v5851, %v6219
        %6221 = vdwg.mxu0
        %v6224 = vunpack.c.l.b16 %v5164
        %v6225 = vunpack.c.l.b16 %v5165
        %v6226 = vpack.c.b16 %v6225, %v6224
        %v6229 = vunpack.c.l.b16 %v1766
        %v6230 = vunpack.c.l.b16 %v1767
        %v6231 = vpack.c.b16 %v6230, %v6229
        %v6234 = vsel %vm3232, %v6226, 0
        %6236 = vmatpush.bf16.msra.mxu0 0
        %6237 = vmatpush.bf16.msra.mxu0 0
        %6238 = vmatpush.bf16.msra.mxu0 0
        %6239 = vmatpush.bf16.msra.mxu0 0
        %6240 = vmatpush.bf16.msra.mxu0 0
        %6241 = vmatpush.bf16.msra.mxu0 0
        %6242 = vmatpush.bf16.msra.mxu0 0
        %6243 = vmatpush.bf16.msra.mxu0 %v6231
        %6244 = vmatmul.bf16.gmra.mxu0 %v6234
        %v6245 = vpop.f32.mrf.mxu0
        %v6246 = vadd.f32 %v5741, %v6245
        %v6247 = vpop.f32.mrf.mxu0
        %v6248 = vadd.f32 %v5853, %v6247
        %6249 = vdwg.mxu0
        %v6252 = vunpack.c.l.b16 %v5166
        %v6253 = vunpack.c.l.b16 %v5167
        %v6254 = vpack.c.b16 %v6253, %v6252
        %v6257 = vunpack.c.l.b16 %v1768
        %v6258 = vunpack.c.l.b16 %v1769
        %v6259 = vpack.c.b16 %v6258, %v6257
        %v6262 = vsel %vm3232, %v6254, 0
        %6264 = vmatpush.bf16.msra.mxu0 0
        %6265 = vmatpush.bf16.msra.mxu0 0
        %6266 = vmatpush.bf16.msra.mxu0 0
        %6267 = vmatpush.bf16.msra.mxu0 0
        %6268 = vmatpush.bf16.msra.mxu0 0
        %6269 = vmatpush.bf16.msra.mxu0 0
        %6270 = vmatpush.bf16.msra.mxu0 0
        %6271 = vmatpush.bf16.msra.mxu0 %v6259
        %6272 = vmatmul.bf16.gmra.mxu0 %v6262
        %v6273 = vpop.f32.mrf.mxu0
        %v6274 = vadd.f32 %v5743, %v6273
        %v6275 = vpop.f32.mrf.mxu0
        %v6276 = vadd.f32 %v5855, %v6275
        %6277 = vdwg.mxu0
        %v6280 = vunpack.c.l.b16 %v5168
        %v6281 = vunpack.c.l.b16 %v5169
        %v6282 = vpack.c.b16 %v6281, %v6280
        %v6285 = vunpack.c.l.b16 %v1770
        %v6286 = vunpack.c.l.b16 %v1771
        %v6287 = vpack.c.b16 %v6286, %v6285
        %v6290 = vsel %vm3232, %v6282, 0
        %6292 = vmatpush.bf16.msra.mxu0 0
        %6293 = vmatpush.bf16.msra.mxu0 0
        %6294 = vmatpush.bf16.msra.mxu0 0
        %6295 = vmatpush.bf16.msra.mxu0 0
        %6296 = vmatpush.bf16.msra.mxu0 0
        %6297 = vmatpush.bf16.msra.mxu0 0
        %6298 = vmatpush.bf16.msra.mxu0 0
        %6299 = vmatpush.bf16.msra.mxu0 %v6287
        %6300 = vmatmul.bf16.gmra.mxu0 %v6290
        %v6301 = vpop.f32.mrf.mxu0
        %v6302 = vadd.f32 %v5745, %v6301
        %v6303 = vpop.f32.mrf.mxu0
        %v6304 = vadd.f32 %v5857, %v6303
        %6305 = vdwg.mxu0
        %v6308 = vunpack.c.l.b16 %v5170
        %v6309 = vunpack.c.l.b16 %v5171
        %v6310 = vpack.c.b16 %v6309, %v6308
        %v6313 = vunpack.c.l.b16 %v1772
        %v6314 = vunpack.c.l.b16 %v1773
        %v6315 = vpack.c.b16 %v6314, %v6313
        %v6318 = vsel %vm3232, %v6310, 0
        %6320 = vmatpush.bf16.msra.mxu0 0
        %6321 = vmatpush.bf16.msra.mxu0 0
        %6322 = vmatpush.bf16.msra.mxu0 0
        %6323 = vmatpush.bf16.msra.mxu0 0
        %6324 = vmatpush.bf16.msra.mxu0 0
        %6325 = vmatpush.bf16.msra.mxu0 0
        %6326 = vmatpush.bf16.msra.mxu0 0
        %6327 = vmatpush.bf16.msra.mxu0 %v6315
        %6328 = vmatmul.bf16.gmra.mxu0 %v6318
        %v6329 = vpop.f32.mrf.mxu0
        %v6330 = vadd.f32 %v5955, %v6329
        %v6331 = vpop.f32.mrf.mxu0
        %v6332 = vadd.f32 %v6067, %v6331
        %6333 = vdwg.mxu0
        %v6336 = vunpack.c.l.b16 %v5172
        %v6337 = vunpack.c.l.b16 %v5173
        %v6338 = vpack.c.b16 %v6337, %v6336
        %v6341 = vunpack.c.l.b16 %v1774
        %v6342 = vunpack.c.l.b16 %v1775
        %v6343 = vpack.c.b16 %v6342, %v6341
        %v6346 = vsel %vm3232, %v6338, 0
        %6348 = vmatpush.bf16.msra.mxu0 0
        %6349 = vmatpush.bf16.msra.mxu0 0
        %6350 = vmatpush.bf16.msra.mxu0 0
        %6351 = vmatpush.bf16.msra.mxu0 0
        %6352 = vmatpush.bf16.msra.mxu0 0
        %6353 = vmatpush.bf16.msra.mxu0 0
        %6354 = vmatpush.bf16.msra.mxu0 0
        %6355 = vmatpush.bf16.msra.mxu0 %v6343
        %6356 = vmatmul.bf16.gmra.mxu0 %v6346
        %v6357 = vpop.f32.mrf.mxu0
        %v6358 = vadd.f32 %v5957, %v6357
        %v6359 = vpop.f32.mrf.mxu0
        %v6360 = vadd.f32 %v6069, %v6359
        %6361 = vdwg.mxu0
        %v6364 = vunpack.c.l.b16 %v5174
        %v6365 = vunpack.c.l.b16 %v5175
        %v6366 = vpack.c.b16 %v6365, %v6364
        %v6369 = vunpack.c.l.b16 %v1776
        %v6370 = vunpack.c.l.b16 %v1777
        %v6371 = vpack.c.b16 %v6370, %v6369
        %v6374 = vsel %vm3232, %v6366, 0
        %6376 = vmatpush.bf16.msra.mxu0 0
        %6377 = vmatpush.bf16.msra.mxu0 0
        %6378 = vmatpush.bf16.msra.mxu0 0
        %6379 = vmatpush.bf16.msra.mxu0 0
        %6380 = vmatpush.bf16.msra.mxu0 0
        %6381 = vmatpush.bf16.msra.mxu0 0
        %6382 = vmatpush.bf16.msra.mxu0 0
        %6383 = vmatpush.bf16.msra.mxu0 %v6371
        %6384 = vmatmul.bf16.gmra.mxu0 %v6374
        %v6385 = vpop.f32.mrf.mxu0
        %v6386 = vadd.f32 %v5959, %v6385
        %v6387 = vpop.f32.mrf.mxu0
        %v6388 = vadd.f32 %v6071, %v6387
        %6389 = vdwg.mxu0
        %v6392 = vunpack.c.l.b16 %v5176
        %v6393 = vunpack.c.l.b16 %v5177
        %v6394 = vpack.c.b16 %v6393, %v6392
        %v6397 = vunpack.c.l.b16 %v1778
        %v6398 = vunpack.c.l.b16 %v1779
        %v6399 = vpack.c.b16 %v6398, %v6397
        %v6402 = vsel %vm3232, %v6394, 0
        %6404 = vmatpush.bf16.msra.mxu0 0
        %6405 = vmatpush.bf16.msra.mxu0 0
        %6406 = vmatpush.bf16.msra.mxu0 0
        %6407 = vmatpush.bf16.msra.mxu0 0
        %6408 = vmatpush.bf16.msra.mxu0 0
        %6409 = vmatpush.bf16.msra.mxu0 0
        %6410 = vmatpush.bf16.msra.mxu0 0
        %6411 = vmatpush.bf16.msra.mxu0 %v6399
        %6412 = vmatmul.bf16.gmra.mxu0 %v6402
        %v6413 = vpop.f32.mrf.mxu0
        %v6414 = vadd.f32 %v5961, %v6413
        %v6415 = vpop.f32.mrf.mxu0
        %v6416 = vadd.f32 %v6073, %v6415
        %6417 = vdwg.mxu0
        %v6420 = vunpack.c.l.b16 %v5178
        %v6421 = vunpack.c.l.b16 %v5179
        %v6422 = vpack.c.b16 %v6421, %v6420
        %v6425 = vunpack.c.l.b16 %v1780
        %v6426 = vunpack.c.l.b16 %v1781
        %v6427 = vpack.c.b16 %v6426, %v6425
        %v6430 = vsel %vm3232, %v6422, 0
        %6432 = vmatpush.bf16.msra.mxu0 0
        %6433 = vmatpush.bf16.msra.mxu0 0
        %6434 = vmatpush.bf16.msra.mxu0 0
        %6435 = vmatpush.bf16.msra.mxu0 0
        %6436 = vmatpush.bf16.msra.mxu0 0
        %6437 = vmatpush.bf16.msra.mxu0 0
        %6438 = vmatpush.bf16.msra.mxu0 0
        %6439 = vmatpush.bf16.msra.mxu0 %v6427
        %6440 = vmatmul.bf16.gmra.mxu0 %v6430
        %v6441 = vpop.f32.mrf.mxu0
        %v6442 = vadd.f32 %v5963, %v6441
        %v6443 = vpop.f32.mrf.mxu0
        %v6444 = vadd.f32 %v6075, %v6443
        %6445 = vdwg.mxu0
        %v6448 = vunpack.c.l.b16 %v5180
        %v6449 = vunpack.c.l.b16 %v5181
        %v6450 = vpack.c.b16 %v6449, %v6448
        %v6453 = vunpack.c.l.b16 %v1782
        %v6454 = vunpack.c.l.b16 %v1783
        %v6455 = vpack.c.b16 %v6454, %v6453
        %v6458 = vsel %vm3232, %v6450, 0
        %6460 = vmatpush.bf16.msra.mxu0 0
        %6461 = vmatpush.bf16.msra.mxu0 0
        %6462 = vmatpush.bf16.msra.mxu0 0
        %6463 = vmatpush.bf16.msra.mxu0 0
        %6464 = vmatpush.bf16.msra.mxu0 0
        %6465 = vmatpush.bf16.msra.mxu0 0
        %6466 = vmatpush.bf16.msra.mxu0 0
        %6467 = vmatpush.bf16.msra.mxu0 %v6455
        %6468 = vmatmul.bf16.gmra.mxu0 %v6458
        %v6469 = vpop.f32.mrf.mxu0
        %v6470 = vadd.f32 %v5965, %v6469
        %v6471 = vpop.f32.mrf.mxu0
        %v6472 = vadd.f32 %v6077, %v6471
        %6473 = vdwg.mxu0
        %v6476 = vunpack.c.l.b16 %v5182
        %v6477 = vunpack.c.l.b16 %v5183
        %v6478 = vpack.c.b16 %v6477, %v6476
        %v6481 = vunpack.c.l.b16 %v1784
        %v6482 = vunpack.c.l.b16 %v1785
        %v6483 = vpack.c.b16 %v6482, %v6481
        %v6486 = vsel %vm3232, %v6478, 0
        %6488 = vmatpush.bf16.msra.mxu0 0
        %6489 = vmatpush.bf16.msra.mxu0 0
        %6490 = vmatpush.bf16.msra.mxu0 0
        %6491 = vmatpush.bf16.msra.mxu0 0
        %6492 = vmatpush.bf16.msra.mxu0 0
        %6493 = vmatpush.bf16.msra.mxu0 0
        %6494 = vmatpush.bf16.msra.mxu0 0
        %6495 = vmatpush.bf16.msra.mxu0 %v6483
        %6496 = vmatmul.bf16.gmra.mxu0 %v6486
        %v6497 = vpop.f32.mrf.mxu0
        %v6498 = vadd.f32 %v5967, %v6497
        %v6499 = vpop.f32.mrf.mxu0
        %v6500 = vadd.f32 %v6079, %v6499
        %6501 = vdwg.mxu0
        %v6504 = vunpack.c.l.b16 %v5184
        %v6505 = vunpack.c.l.b16 %v5185
        %v6506 = vpack.c.b16 %v6505, %v6504
        %v6509 = vunpack.c.l.b16 %v1786
        %v6510 = vunpack.c.l.b16 %v1787
        %v6511 = vpack.c.b16 %v6510, %v6509
        %v6514 = vsel %vm3232, %v6506, 0
        %6516 = vmatpush.bf16.msra.mxu0 0
        %6517 = vmatpush.bf16.msra.mxu0 0
        %6518 = vmatpush.bf16.msra.mxu0 0
        %6519 = vmatpush.bf16.msra.mxu0 0
        %6520 = vmatpush.bf16.msra.mxu0 0
        %6521 = vmatpush.bf16.msra.mxu0 0
        %6522 = vmatpush.bf16.msra.mxu0 0
        %6523 = vmatpush.bf16.msra.mxu0 %v6511
        %6524 = vmatmul.bf16.gmra.mxu0 %v6514
        %v6525 = vpop.f32.mrf.mxu0
        %v6526 = vadd.f32 %v5969, %v6525
        %v6527 = vpop.f32.mrf.mxu0
        %v6528 = vadd.f32 %v6081, %v6527
        %6529 = vdwg.mxu0
        %6531 = vset.pattern.permute.xlu0 0
        %6532 = vperm.xlu0 %6531, %v5122
        %v6533 = vpop.permute.xlu0 %6532
        %6536 = vset.pattern.permute.xlu0 0
        %6537 = vperm.xlu0 %6536, %v5123
        %v6538 = vpop.permute.xlu0 %6537
        %6541 = vset.pattern.permute.xlu0 0
        %6542 = vperm.xlu0 %6541, %v5124
        %v6543 = vpop.permute.xlu0 %6542
        %6546 = vset.pattern.permute.xlu0 0
        %6547 = vperm.xlu0 %6546, %v5125
        %v6548 = vpop.permute.xlu0 %6547
        %6551 = vset.pattern.permute.xlu0 0
        %6552 = vperm.xlu0 %6551, %v5126
        %v6553 = vpop.permute.xlu0 %6552
        %6556 = vset.pattern.permute.xlu0 0
        %6557 = vperm.xlu0 %6556, %v5127
        %v6558 = vpop.permute.xlu0 %6557
        %6561 = vset.pattern.permute.xlu0 0
        %6562 = vperm.xlu0 %6561, %v5128
        %v6563 = vpop.permute.xlu0 %6562
        %6566 = vset.pattern.permute.xlu0 0
        %6567 = vperm.xlu0 %6566, %v5129
        %v6568 = vpop.permute.xlu0 %6567
        %6571 = vset.pattern.permute.xlu0 0
        %6572 = vperm.xlu0 %6571, %v5130
        %v6573 = vpop.permute.xlu0 %6572
        %6576 = vset.pattern.permute.xlu0 0
        %6577 = vperm.xlu0 %6576, %v5131
        %v6578 = vpop.permute.xlu0 %6577
        %6581 = vset.pattern.permute.xlu0 0
        %6582 = vperm.xlu0 %6581, %v5132
        %v6583 = vpop.permute.xlu0 %6582
        %6586 = vset.pattern.permute.xlu0 0
        %6587 = vperm.xlu0 %6586, %v5133
        %v6588 = vpop.permute.xlu0 %6587
        %6591 = vset.pattern.permute.xlu0 0
        %6592 = vperm.xlu0 %6591, %v5134
        %v6593 = vpop.permute.xlu0 %6592
        %6596 = vset.pattern.permute.xlu0 0
        %6597 = vperm.xlu0 %6596, %v5135
        %v6598 = vpop.permute.xlu0 %6597
        %6601 = vset.pattern.permute.xlu0 0
        %6602 = vperm.xlu0 %6601, %v5136
        %v6603 = vpop.permute.xlu0 %6602
        %6606 = vset.pattern.permute.xlu0 0
        %6607 = vperm.xlu0 %6606, %v5137
        %v6608 = vpop.permute.xlu0 %6607
        %6611 = vset.pattern.permute.xlu0 0
        %6612 = vperm.xlu0 %6611, %v5138
        %v6613 = vpop.permute.xlu0 %6612
        %6616 = vset.pattern.permute.xlu0 0
        %6617 = vperm.xlu0 %6616, %v5139
        %v6618 = vpop.permute.xlu0 %6617
        %6621 = vset.pattern.permute.xlu0 0
        %6622 = vperm.xlu0 %6621, %v5140
        %v6623 = vpop.permute.xlu0 %6622
        %6626 = vset.pattern.permute.xlu0 0
        %6627 = vperm.xlu0 %6626, %v5141
        %v6628 = vpop.permute.xlu0 %6627
        %6631 = vset.pattern.permute.xlu0 0
        %6632 = vperm.xlu0 %6631, %v5142
        %v6633 = vpop.permute.xlu0 %6632
        %6636 = vset.pattern.permute.xlu0 0
        %6637 = vperm.xlu0 %6636, %v5143
        %v6638 = vpop.permute.xlu0 %6637
        %6641 = vset.pattern.permute.xlu0 0
        %6642 = vperm.xlu0 %6641, %v5144
        %v6643 = vpop.permute.xlu0 %6642
        %6646 = vset.pattern.permute.xlu0 0
        %6647 = vperm.xlu0 %6646, %v5145
        %v6648 = vpop.permute.xlu0 %6647
        %6651 = vset.pattern.permute.xlu0 0
        %6652 = vperm.xlu0 %6651, %v5146
        %v6653 = vpop.permute.xlu0 %6652
        %6656 = vset.pattern.permute.xlu0 0
        %6657 = vperm.xlu0 %6656, %v5147
        %v6658 = vpop.permute.xlu0 %6657
        %6661 = vset.pattern.permute.xlu0 0
        %6662 = vperm.xlu0 %6661, %v5148
        %v6663 = vpop.permute.xlu0 %6662
        %6666 = vset.pattern.permute.xlu0 0
        %6667 = vperm.xlu0 %6666, %v5149
        %v6668 = vpop.permute.xlu0 %6667
        %6671 = vset.pattern.permute.xlu0 0
        %6672 = vperm.xlu0 %6671, %v5150
        %v6673 = vpop.permute.xlu0 %6672
        %6676 = vset.pattern.permute.xlu0 0
        %6677 = vperm.xlu0 %6676, %v5151
        %v6678 = vpop.permute.xlu0 %6677
        %6681 = vset.pattern.permute.xlu0 0
        %6682 = vperm.xlu0 %6681, %v5152
        %v6683 = vpop.permute.xlu0 %6682
        %6686 = vset.pattern.permute.xlu0 0
        %6687 = vperm.xlu0 %6686, %v5153
        %v6688 = vpop.permute.xlu0 %6687
        %v6690 = vmul.f32 %v6533, %v6106
        %v6691 = vmul.f32 %v6538, %v6108
        %v6692 = vmul.f32 %v6543, %v6134
        %v6693 = vmul.f32 %v6548, %v6136
        %v6694 = vmul.f32 %v6553, %v6162
        %v6695 = vmul.f32 %v6558, %v6164
        %v6696 = vmul.f32 %v6563, %v6190
        %v6697 = vmul.f32 %v6568, %v6192
        %v6698 = vmul.f32 %v6573, %v6218
        %v6699 = vmul.f32 %v6578, %v6220
        %v6700 = vmul.f32 %v6583, %v6246
        %v6701 = vmul.f32 %v6588, %v6248
        %v6702 = vmul.f32 %v6593, %v6274
        %v6703 = vmul.f32 %v6598, %v6276
        %v6704 = vmul.f32 %v6603, %v6302
        %v6705 = vmul.f32 %v6608, %v6304
        %v6706 = vmul.f32 %v6613, %v6330
        %v6707 = vmul.f32 %v6618, %v6332
        %v6708 = vmul.f32 %v6623, %v6358
        %v6709 = vmul.f32 %v6628, %v6360
        %v6710 = vmul.f32 %v6633, %v6386
        %v6711 = vmul.f32 %v6638, %v6388
        %v6712 = vmul.f32 %v6643, %v6414
        %v6713 = vmul.f32 %v6648, %v6416
        %v6714 = vmul.f32 %v6653, %v6442
        %v6715 = vmul.f32 %v6658, %v6444
        %v6716 = vmul.f32 %v6663, %v6470
        %v6717 = vmul.f32 %v6668, %v6472
        %v6718 = vmul.f32 %v6673, %v6498
        %v6719 = vmul.f32 %v6678, %v6500
        %v6720 = vmul.f32 %v6683, %v6526
        %v6721 = vmul.f32 %v6688, %v6528
        %v6722 = vadd.f32 %v6690, %v355
        %v6723 = vadd.f32 %v6691, %v356
        %v6724 = vadd.f32 %v6692, %v357
        %v6725 = vadd.f32 %v6693, %v358
        %v6726 = vadd.f32 %v6694, %v359
        %v6727 = vadd.f32 %v6695, %v360
        %v6728 = vadd.f32 %v6696, %v361
        %v6729 = vadd.f32 %v6697, %v362
        %v6730 = vadd.f32 %v6698, %v363
        %v6731 = vadd.f32 %v6699, %v364
        %v6732 = vadd.f32 %v6700, %v365
        %v6733 = vadd.f32 %v6701, %v366
        %v6734 = vadd.f32 %v6702, %v367
        %v6735 = vadd.f32 %v6703, %v368
        %v6736 = vadd.f32 %v6704, %v369
        %v6737 = vadd.f32 %v6705, %v370
        %v6738 = vadd.f32 %v6706, %v371
        %v6739 = vadd.f32 %v6707, %v372
        %v6740 = vadd.f32 %v6708, %v373
        %v6741 = vadd.f32 %v6709, %v374
        %v6742 = vadd.f32 %v6710, %v375
        %v6743 = vadd.f32 %v6711, %v376
        %v6744 = vadd.f32 %v6712, %v377
        %v6745 = vadd.f32 %v6713, %v378
        %v6746 = vadd.f32 %v6714, %v379
        %v6747 = vadd.f32 %v6715, %v380
        %v6748 = vadd.f32 %v6716, %v381
        %v6749 = vadd.f32 %v6717, %v382
        %v6750 = vadd.f32 %v6718, %v383
        %v6751 = vadd.f32 %v6719, %v384
        %v6752 = vadd.f32 %v6720, %v385
        %v6753 = vadd.f32 %v6721, %v386
        %6754 = vst.msk [vmem:[%s353] sm:$0xff] %vm399, %v6722
        %6755 = vst.msk [vmem:[%s353 + $0x8] sm:$0xff] %vm399, %v6723
        %6756 = vst.msk [vmem:[%s353 + $0x10] sm:$0xff] %vm399, %v6724
        %6757 = vst.msk [vmem:[%s353 + $0x18] sm:$0xff] %vm399, %v6725
        %6758 = vst.msk [vmem:[%s353 + $0x20] sm:$0xff] %vm399, %v6726
        %6759 = vst.msk [vmem:[%s353 + $0x28] sm:$0xff] %vm399, %v6727
        %6760 = vst.msk [vmem:[%s353 + $0x30] sm:$0xff] %vm399, %v6728
        %6761 = vst.msk [vmem:[%s353 + $0x38] sm:$0xff] %vm399, %v6729
        %6762 = vst.msk [vmem:[%s353 + $0x40] sm:$0xff] %vm399, %v6730
        %6763 = vst.msk [vmem:[%s353 + $0x48] sm:$0xff] %vm399, %v6731
        %6764 = vst.msk [vmem:[%s353 + $0x50] sm:$0xff] %vm399, %v6732
        %6765 = vst.msk [vmem:[%s353 + $0x58] sm:$0xff] %vm399, %v6733
        %6766 = vst.msk [vmem:[%s353 + $0x60] sm:$0xff] %vm399, %v6734
        %6767 = vst.msk [vmem:[%s353 + $0x68] sm:$0xff] %vm399, %v6735
        %6768 = vst.msk [vmem:[%s353 + $0x70] sm:$0xff] %vm399, %v6736
        %6769 = vst.msk [vmem:[%s353 + $0x78] sm:$0xff] %vm399, %v6737
        %6770 = vst.msk [vmem:[%s353 + $0x80] sm:$0xff] %vm399, %v6738
        %6771 = vst.msk [vmem:[%s353 + $0x88] sm:$0xff] %vm399, %v6739
        %6772 = vst.msk [vmem:[%s353 + $0x90] sm:$0xff] %vm399, %v6740
        %6773 = vst.msk [vmem:[%s353 + $0x98] sm:$0xff] %vm399, %v6741
        %6774 = vst.msk [vmem:[%s353 + $0xa0] sm:$0xff] %vm399, %v6742
        %6775 = vst.msk [vmem:[%s353 + $0xa8] sm:$0xff] %vm399, %v6743
        %6776 = vst.msk [vmem:[%s353 + $0xb0] sm:$0xff] %vm399, %v6744
        %6777 = vst.msk [vmem:[%s353 + $0xb8] sm:$0xff] %vm399, %v6745
        %6778 = vst.msk [vmem:[%s353 + $0xc0] sm:$0xff] %vm399, %v6746
        %6779 = vst.msk [vmem:[%s353 + $0xc8] sm:$0xff] %vm399, %v6747
        %6780 = vst.msk [vmem:[%s353 + $0xd0] sm:$0xff] %vm399, %v6748
        %6781 = vst.msk [vmem:[%s353 + $0xd8] sm:$0xff] %vm399, %v6749
        %6782 = vst.msk [vmem:[%s353 + $0xe0] sm:$0xff] %vm399, %v6750
        %6783 = vst.msk [vmem:[%s353 + $0xe8] sm:$0xff] %vm399, %v6751
        %6784 = vst.msk [vmem:[%s353 + $0xf0] sm:$0xff] %vm399, %v6752
        %6785 = vst.msk [vmem:[%s353 + $0xf8] sm:$0xff] %vm399, %v6753
        %s6786 = sand.u32 %s229, 1
        %s6787 = scalar_lea.sflag [#allocation5], %s6786
        %s6788 = sand.u32 %s229, 1
        %s6789 = smul.addr %s6788, 256
        %s6790 = scalar_lea.vmem [#allocation6], %s6789
        // Predicated region
        $region61: #{criss_cross_attention_forward.1} parent=55 // pred_check
          %p6791 = pneg %p239
        $region62: #{criss_cross_attention_forward.1} parent=55 // pred_check_branch
          %6793 = sbr.rel (%p6791) target = $region64
        $region63: #{criss_cross_attention_forward.1} parent=55 // pred_region
          %6795 = vsyncadd %s6787, 0
          %s6796 = smul.addr %s27, 32
          %s6797 = smul.addr %s6796, 8
          %s6798 = scalar_lea.hbm %s9, %s6797
          %s6799 = sshll.u32 %s6790, 4
          %s6800 = int_to_ptr.vmem [resolvable:$true] %s6799
          %s6801 = sshll.u32 %s6798, 4
          %s6802 = int_to_ptr.hbm [resolvable:$true] %s6801
          %6807 = dma.vmem_to_hbm [thread:$0]  %s6800, 4096, %s6802, %s6787, 128, 128, 8
        $region64: #{criss_cross_attention_forward.1} parent=55 // pred_fallthru
          _
      $region56: #{criss_cross_attention_forward.1} parent=5 // pred_fallthru
        _
      %p6808 = scmp.le.s32.totalorder 2, %s22
      // Predicated region
      $region65: #{criss_cross_attention_forward.1} parent=5 // pred_check
        %p6809 = pneg %p6808
      $region66: #{criss_cross_attention_forward.1} parent=5 // pred_check_branch
        %6811 = sbr.rel (%p6809) target = $region68
      $region67: #{criss_cross_attention_forward.1} parent=5 // pred_region
        %s6812 = ssub.s32 %s22, 2
        // Predicated region
        $region69: #{criss_cross_attention_forward.1} parent=67 // pred_check
          %p6813 = pneg %p245
        $region70: #{criss_cross_attention_forward.1} parent=67 // pred_check_branch
          %6815 = sbr.rel (%p6813) target = $region72
        $region71: #{criss_cross_attention_forward.1} parent=67 // pred_region
          %s6816 = sand.u32 %s230, 1
          %s6817 = scalar_lea.sflag [#allocation5], %s6816
          %s6818 = sand.u32 %s230, 1
          %s6819 = smul.addr %s6818, 256
          %s6820 = scalar_lea.vmem [#allocation6], %s6819
          %6822 = dma.done %s6817, 4096
        $region72: #{criss_cross_attention_forward.1} parent=67 // pred_fallthru
          _
      $region68: #{criss_cross_attention_forward.1} parent=5 // pred_fallthru
        _
    $region6: #{criss_cross_attention_forward.1} parent=1 // loop_footer
      %s26 = sadd.s32 1, %s22
    $region7: #{criss_cross_attention_forward.1} parent=1 // loop_footer_branch
      %21 = sbr.rel target = $region3
    $region8: #{criss_cross_attention_forward.1} parent=1 // loop_exit
      _
    %6823 = vsyncpa [#allocation4], 1
    %s6824 = scalar_lea.sflag [#allocation4], 1
    %6825 = vsyncpa %s6824, 1
    %6826 = vsyncpa [#allocation5], 1
    %s6827 = scalar_lea.sflag [#allocation5], 1
    %6828 = vsyncpa %s6827, 1

</llo_original>
